<compile_context>
chip_gen: v6e
topology: v6e:2x2x1
jax: 0.10.0
libtpu: 0.0.40
codegen_flags: <defaults>
</compile_context>

<pallas_src>
import functools

import jax
import jax.numpy as jnp
from jax.experimental import pallas as pl
from jax.experimental.pallas import tpu as pltpu

# ----- PhotometricAugmentation hyper-parameters -----
MIN_GAMMA, MAX_GAMMA = 0.8, 1.2
MIN_BRGHT, MAX_BRGHT = 0.5, 2.0
MIN_SHIFT, MAX_SHIFT = 0.8, 1.2
# ----- kitti_random_crop hyper-parameters -----
CROP_MIN_SCALE, CROP_MAX_SCALE = 0.94, 1.0


# ============================ Pallas kernel ============================

def _crop_resize_photo_kernel(photo_ref, wy_ref, wxt_ref,
                              l1_ref, l2_ref, r1_ref, r2_ref,
                              o1_ref, o2_ref, o3_ref, o4_ref,
                              *, c_blk, wy_first):
    """Fused crop+resize (separable bilinear on the MXU, bf16 inputs / f32 accumulation)
    plus a pl.when-gated photometric epilogue.

    photo_ref: SMEM (B, 6) = [gamma, brightness, shift_r, shift_g, shift_b, apply_flag].
    wy_ref:    VMEM (H_r, H)   row-interpolation weights (crop folded in), bf16, resident.
    wxt_ref:   VMEM (W, W_r)   column-interpolation weights, PRE-TRANSPOSED, bf16, resident.
    *_ref img: VMEM (1, C_blk, H, W) f32 blocks; outputs (1, C_blk, H_r, W_r) f32.
    """
    b = pl.program_id(0)   # batch index
    j = pl.program_id(1)   # channel-chunk index

    gamma = photo_ref[b, 0]
    bright = photo_ref[b, 1]
    apply_photo = photo_ref[b, 5] > 0.5

    h_r, h_o = wy_ref.shape
    w_o, w_r = wxt_ref.shape
    wy = wy_ref[...]       # (H_r, H)  bf16
    wxt = wxt_ref[...]     # (W, W_r)  bf16

    def epilogue_store(out_ref, ch, res):
        # res: (H_r, W_r) f32.  RGB shift repeats with period 3 within each image.
        if c_blk % 3 == 0:
            sh = photo_ref[b, 2 + (ch % 3)]                    # static column index
        else:
            sh = photo_ref[b, 2 + (j * c_blk + ch) % 3]        # dynamic SMEM scalar read

        @pl.when(apply_photo)
        def _():
            pos = res > 0.0
            powed = jnp.where(pos, jnp.exp(gamma * jnp.log(jnp.where(pos, res, 1.0))), 0.0)
            out_ref[0, ch, :, :] = jnp.clip(powed * (bright * sh), 0.0, 1.0).astype(out_ref.dtype)

        @pl.when(jnp.logical_not(apply_photo))
        def _():
            out_ref[0, ch, :, :] = res.astype(out_ref.dtype)

    for img_ref, out_ref in ((l1_ref, o1_ref), (l2_ref, o2_ref),
                             (r1_ref, o3_ref), (r2_ref, o4_ref)):
        if wy_first:
            # H-axis contraction first (fewer MACs), then one merged W-axis matmul.
            rows = []
            for ch in range(c_blk):
                row = jnp.dot(wy, img_ref[0, ch, :, :].astype(jnp.bfloat16),
                              preferred_element_type=jnp.float32)        # (H_r, W) f32
                rows.append(row.astype(jnp.bfloat16))
            merged = rows[0] if c_blk == 1 else jnp.concatenate(rows, axis=0)  # (C_blk*H_r, W)
            res_all = jnp.dot(merged, wxt, preferred_element_type=jnp.float32)  # (C_blk*H_r, W_r)
            for ch in range(c_blk):
                epilogue_store(out_ref, ch, res_all[ch * h_r:(ch + 1) * h_r, :])
        else:
            # W-axis contraction first: one merged matmul with M = C_blk*H, then per-channel Wy.
            img = img_ref[...].astype(jnp.bfloat16).reshape(c_blk * h_o, w_o)
            tmp = jnp.dot(img, wxt, preferred_element_type=jnp.float32)   # (C_blk*H, W_r)
            tmp = tmp.reshape(c_blk, h_o, w_r)
            for ch in range(c_blk):
                res = jnp.dot(wy, tmp[ch].astype(jnp.bfloat16),
                              preferred_element_type=jnp.float32)         # (H_r, W_r)
                epilogue_store(out_ref, ch, res)


# ======================= VMEM sizing / block choice =======================

def _vmem_need_bytes(c_blk, h, w, h_r, w_r, wy_first):
    f32, bf16 = 4, 2
    need = 2 * 4 * c_blk * h * w * f32            # 4 input images, double-buffered f32 blocks
    need += 2 * 4 * c_blk * h_r * w_r * f32       # 4 output images, double-buffered f32 blocks
    need += (h_r * h + w * w_r) * bf16            # weights: single-buffered VMEM residents
    inter = c_blk * (h_r * w if wy_first else h * w_r)
    per_img = (c_blk * h * w * bf16               # bf16 cast of the input block
               + inter * (f32 + bf16)             # first-matmul result + its bf16 recast
               + c_blk * h_r * w_r * f32)         # second-matmul result feeding the epilogue
    # A static Python unroll over the 4 images does not bound live ranges: conservatively
    # assume all 4 images' intermediates can be co-live (review item; avoids spills/OOM).
    need += 4 * per_img
    return need + (2 << 20)                       # vreg spill / misc headroom


def _vmem_capacity_bytes():
    try:
        cap = int(pltpu.get_tpu_info().vmem_capacity_bytes)
        if cap >= (32 << 20):
            return cap
    except Exception:
        pass
    return 64 << 20                               # conservative default (v7x per-core VMEM)


def _pick_channel_block(b, c, h, w, h_r, w_r, budget, wy_first):
    """Largest divisor of C fitting the generation-aware VMEM budget, preferring choices
    that keep >= 2 total grid steps so both v7x TensorCores get work."""
    fits = [d for d in range(c, 0, -1)
            if c % d == 0 and _vmem_need_bytes(d, h, w, h_r, w_r, wy_first) <= budget]
    if not fits:
        return 1                                  # best effort; vmem_limit is raised to match
    for d in fits:                                # largest first
        if b * (c // d) >= 2:
            return d
    return fits[0]


def crop_resize_photo(im_l1, im_l2, im_r1, im_r2, wy, wxt, photo):
    """Run the fused kernel.  images: (B, C, H, W) f32; wy: (H_r, H); wxt: (W, W_r); photo: (B, 6)."""
    b, c, h, w = im_l1.shape
    h_r = wy.shape[0]
    w_r = wxt.shape[1]

    # Pick the cheaper contraction order at trace time (all shapes are static).
    wy_first = h_r * w * (h + w_r) <= h * w_r * (w + h_r)

    cap = _vmem_capacity_bytes()
    budget = min(cap - (16 << 20), (cap * 3) // 4)   # ~96 MiB on v5e/v6e, ~48 MiB on v7x
    c_blk = _pick_channel_block(b, c, h, w, h_r, w_r, budget, wy_first)
    n_chunks = c // c_blk
    need = _vmem_need_bytes(c_blk, h, w, h_r, w_r, wy_first)
    vmem_limit = int(min(max(need, 32 << 20), cap))  # never clamp below the estimated need

    kernel = functools.partial(_crop_resize_photo_kernel, c_blk=c_blk, wy_first=wy_first)

    img_spec = pl.BlockSpec((1, c_blk, h, w), lambda i, j: (i, j, 0, 0))
    out_spec = pl.BlockSpec((1, c_blk, h_r, w_r), lambda i, j: (i, j, 0, 0))
    # Whole-array VMEM residents: loaded once, single-buffered (no per-step double buffer).
    weight_spec = pl.BlockSpec(memory_space=pltpu.MemorySpace.VMEM)
    smem_spec = pl.BlockSpec(memory_space=pltpu.MemorySpace.SMEM)
    out_sds = jax.ShapeDtypeStruct((b, c, h_r, w_r), im_l1.dtype)

    return pl.pallas_call(
        kernel,
        out_shape=(out_sds, out_sds, out_sds, out_sds),
        grid=(b, n_chunks),
        in_specs=[smem_spec, weight_spec, weight_spec,
                  img_spec, img_spec, img_spec, img_spec],
        out_specs=(out_spec, out_spec, out_spec, out_spec),
        compiler_params=pltpu.CompilerParams(
            dimension_semantics=("parallel", "parallel"),
            vmem_limit_bytes=vmem_limit),
    )(photo, wy.astype(jnp.bfloat16), wxt.astype(jnp.bfloat16),
      im_l1, im_l2, im_r1, im_r2)


# ============================ plain-JAX glue ============================

def build_interp_weights(src, n_in):
    """Bilinear row weights for align_corners=True interpolation with index clamping
    (matches torch.nn.functional.interpolate).  src: (n_out,) -> (n_out, n_in) f32."""
    x0 = jnp.floor(src)
    frac = (src - x0)[:, None]
    x0c = jnp.clip(x0, 0.0, n_in - 1.0)[:, None]
    x1c = jnp.clip(x0 + 1.0, 0.0, n_in - 1.0)[:, None]
    k = jnp.arange(n_in, dtype=src.dtype)[None, :]
    w = jnp.where(k == x0c, 1.0 - frac, 0.0) + jnp.where(k == x1c, frac, 0.0)
    return w.astype(jnp.float32)


def augmentation_sceneflow_finetuning_forward(example_dict, key,
                                              imgsize=(256, 832), photometric=True):
    im_l1 = example_dict["input_l1"]
    im_l2 = example_dict["input_l2"]
    im_r1 = example_dict["input_r1"]
    im_r2 = example_dict["input_r2"]

    b, c, h, w = im_l1.shape
    assert c == 3, "PhotometricAugmentation's RGB shift assumes 3-channel images"
    h_r, w_r = int(imgsize[0]), int(imgsize[1])

    k_scale, k_x, k_y, k_flag, k_gamma, k_bright, k_shift = jax.random.split(key, 7)

    # ---- kitti_random_crop parameters (one draw shared by the batch, like np.random) ----
    scale = jax.random.uniform(k_scale, (), jnp.float32, CROP_MIN_SCALE, CROP_MAX_SCALE)
    crop_h = jnp.floor(scale * h)
    crop_w = jnp.floor(scale * w)
    x0 = jax.random.uniform(k_x, (), jnp.float32, 0.0, w - crop_w + 1.0)
    y0 = jax.random.uniform(k_y, (), jnp.float32, 0.0, h - crop_h + 1.0)
    str_x = jnp.floor(x0)
    str_y = jnp.floor(y0)

    # ---- fused crop + bilinear resize as separable interpolation weights ----
    iy = jnp.arange(h_r, dtype=jnp.float32)
    ix = jnp.arange(w_r, dtype=jnp.float32)
    src_y = str_y + iy * (crop_h - 1.0) / float(h_r - 1)
    src_x = str_x + ix * (crop_w - 1.0) / float(w_r - 1)
    wy = build_interp_weights(src_y, h)          # (H_r, H)
    wxt = build_interp_weights(src_x, w).T       # (W, W_r), pre-transposed for the MXU

    # ---- photometric parameters packed for SMEM: [gamma, bright, s_r, s_g, s_b, apply] ----
    if photometric:
        apply = (jax.random.uniform(k_flag, (), jnp.float32) > 0.5).astype(jnp.float32)
        gamma = jax.random.uniform(k_gamma, (b,), jnp.float32, MIN_GAMMA, MAX_GAMMA)
        bright = jax.random.uniform(k_bright, (b,), jnp.float32, MIN_BRGHT, MAX_BRGHT)
        shift = jax.random.uniform(k_shift, (b, 3), jnp.float32, MIN_SHIFT, MAX_SHIFT)
    else:
        apply = jnp.float32(0.0)
        gamma = jnp.ones((b,), jnp.float32)
        bright = jnp.ones((b,), jnp.float32)
        shift = jnp.ones((b, 3), jnp.float32)
    photo = jnp.concatenate(
        [gamma[:, None], bright[:, None], shift, jnp.full((b, 1), apply, jnp.float32)],
        axis=1)                                   # (B, 6)

    # ---- single fused Pallas kernel: crop + resize + photometric ----
    l1_aug, l2_aug, r1_aug, r2_aug = crop_resize_photo(
        im_l1, im_l2, im_r1, im_r2, wy, wxt, photo)

    # ---- intrinsics: crop then scale (tiny 3x3 math, plain JAX) ----
    sx = float(w_r) / crop_w
    sy = float(h_r) / crop_h

    def crop_intrinsic(kk):
        out = kk.at[:, 0, 2].add(-str_x)
        return out.at[:, 1, 2].add(-str_y)

    def scale_intrinsic(kk):
        out = kk.at[:, 0, 0].multiply(sx)
        out = out.at[:, 0, 2].multiply(sx)
        out = out.at[:, 1, 1].multiply(sy)
        return out.at[:, 1, 2].multiply(sy)

    def flip_intrinsic(kk):
        # torch reference: k_flip[:, 0, 2] = im.size(3) - k_flip[:, 0, 2]  (size(3) == W_r)
        return kk.at[:, 0, 2].set(float(w_r) - kk[:, 0, 2])

    k_l1_c = crop_intrinsic(example_dict["input_k_l1"])
    k_l2_c = crop_intrinsic(example_dict["input_k_l2"])
    k_r1_c = crop_intrinsic(example_dict["input_k_r1"])
    k_r2_c = crop_intrinsic(example_dict["input_k_r2"])
    k_l1_aug = scale_intrinsic(k_l1_c)
    k_l2_aug = scale_intrinsic(k_l2_c)
    k_r1_aug = scale_intrinsic(k_r1_c)
    k_r2_aug = scale_intrinsic(k_r2_c)

    input_size = example_dict["input_size"]
    new_input_size = jnp.concatenate(
        [jnp.full((b, 1), crop_h, input_size.dtype),
         jnp.full((b, 1), crop_w, input_size.dtype)], axis=1)

    aug_size = jnp.zeros_like(input_size)
    aug_size = aug_size.at[:, 0].set(float(h_r))
    aug_size = aug_size.at[:, 1].set(float(w_r))

    out = dict(example_dict)
    # mirror kitti_random_crop's in-place mutations that keep static shapes
    out["input_k_l1"] = k_l1_c
    out["input_k_l2"] = k_l2_c
    out["input_k_r1"] = k_r1_c
    out["input_k_r2"] = k_r2_c
    out["input_size"] = new_input_size
    # TODO(synk): the cropped full-resolution tensors (input_l1..r2, target_flow/disp/masks)
    # have data-dependent shapes under jit and are not materialized; the crop is instead fused
    # into the resize weights above.
    out["input_l1_aug"] = l1_aug
    out["input_l2_aug"] = l2_aug
    out["input_r1_aug"] = r1_aug
    out["input_r2_aug"] = r2_aug
    out["input_k_l1_aug"] = k_l1_aug
    out["input_k_l2_aug"] = k_l2_aug
    out["input_k_r1_aug"] = k_r1_aug
    out["input_k_r2_aug"] = k_r2_aug
    out["input_k_l1_flip_aug"] = flip_intrinsic(k_l1_aug)
    out["input_k_l2_flip_aug"] = flip_intrinsic(k_l2_aug)
    out["input_k_r1_flip_aug"] = flip_intrinsic(k_r1_aug)
    out["input_k_r2_flip_aug"] = flip_intrinsic(k_r2_aug)
    out["aug_size"] = aug_size
    return out


# ================================ main ================================

if __name__ == "__main__":
    key = jax.random.PRNGKey(0)
    b, c, h, w = 2, 3, 24, 32          # small NCHW images (C must be 3 for the RGB shift)
    imgsize = (16, 24)                 # small stand-in for the default [256, 832]

    keys = jax.random.split(key, 6)
    base_k = jnp.array([[w * 0.9, 0.0, w * 0.5],
                        [0.0, h * 0.9, h * 0.5],
                        [0.0, 0.0, 1.0]], jnp.float32)

    example_dict = {}
    for i, name in enumerate(["l1", "l2", "r1", "r2"]):
        example_dict[f"input_{name}"] = jax.random.uniform(
            keys[i], (b, c, h, w), jnp.float32)
        example_dict[f"input_k_{name}"] = jnp.broadcast_to(base_k, (b, 3, 3)).astype(jnp.float32)
    example_dict["input_size"] = jnp.tile(
        jnp.array([[float(h), float(w)]], jnp.float32), (b, 1))

    fwd = jax.jit(functools.partial(augmentation_sceneflow_finetuning_forward,
                                    imgsize=imgsize, photometric=True))
    out = fwd(example_dict, keys[5])
    jax.block_until_ready(out)

    # basic sanity checks (loose range tolerance: bf16 MXU inputs -> ~1e-3 bilinear error)
    assert out["input_l1_aug"].shape == (b, c, imgsize[0], imgsize[1])
    assert out["input_r2_aug"].shape == (b, c, imgsize[0], imgsize[1])
    assert out["input_k_l1_aug"].shape == (b, 3, 3)
    assert out["aug_size"].shape == (b, 2)
    for name in ["l1", "l2", "r1", "r2"]:
        img = out[f"input_{name}_aug"]
        assert bool(jnp.all(jnp.isfinite(img)))
        assert bool(jnp.all(img >= -5e-2))
        assert bool(jnp.all(img <= 1.0 + 5e-2))

    print("KERNEL_OK")
</pallas_src>

<mosaic_0001>
module attributes {stable_mosaic.version = 11 : i64} {
  func.func @_crop_resize_photo_kernel(%arg0: i32, %arg1: i32, %arg2: memref<2x6xf32, #tpu.memory_space<smem>>, %arg3: memref<16x24xbf16, #tpu.memory_space<vmem>>, %arg4: memref<32x24xbf16, #tpu.memory_space<vmem>>, %arg5: memref<1x3x24x32xf32, #tpu.memory_space<vmem>>, %arg6: memref<1x3x24x32xf32, #tpu.memory_space<vmem>>, %arg7: memref<1x3x24x32xf32, #tpu.memory_space<vmem>>, %arg8: memref<1x3x24x32xf32, #tpu.memory_space<vmem>>, %arg9: memref<1x3x16x24xf32, #tpu.memory_space<vmem>>, %arg10: memref<1x3x16x24xf32, #tpu.memory_space<vmem>>, %arg11: memref<1x3x16x24xf32, #tpu.memory_space<vmem>>, %arg12: memref<1x3x16x24xf32, #tpu.memory_space<vmem>>) attributes {dimension_semantics = [#tpu.dimension_semantics<parallel>, #tpu.dimension_semantics<parallel>], iteration_bounds = array<i64: 2, 1>, scalar_prefetch = 0 : i64, scratch_operands = 0 : i64, tpu.core_type = #tpu.core_type<tc>, window_params = [{transform_indices = @transform_0, window_bounds = array<i64: 2, 6>}, {pipeline_mode = #tpu.pipeline_mode<synchronous>, transform_indices = @transform_1, window_bounds = array<i64: 16, 24>}, {pipeline_mode = #tpu.pipeline_mode<synchronous>, transform_indices = @transform_2, window_bounds = array<i64: 32, 24>}, {transform_indices = @transform_3, window_bounds = array<i64: 1, 3, 24, 32>}, {transform_indices = @transform_4, window_bounds = array<i64: 1, 3, 24, 32>}, {transform_indices = @transform_5, window_bounds = array<i64: 1, 3, 24, 32>}, {transform_indices = @transform_6, window_bounds = array<i64: 1, 3, 24, 32>}, {transform_indices = @transform_7, window_bounds = array<i64: 1, 3, 16, 24>}, {transform_indices = @transform_8, window_bounds = array<i64: 1, 3, 16, 24>}, {transform_indices = @transform_9, window_bounds = array<i64: 1, 3, 16, 24>}, {transform_indices = @transform_10, window_bounds = array<i64: 1, 3, 16, 24>}]} {
    %0 = arith.index_cast %arg0 : i32 to index
    %c0 = arith.constant 0 : index
    %1 = memref.load %arg2[%0, %c0] : memref<2x6xf32, #tpu.memory_space<smem>>
    %2 = arith.index_cast %arg0 : i32 to index
    %c1 = arith.constant 1 : index
    %3 = memref.load %arg2[%2, %c1] : memref<2x6xf32, #tpu.memory_space<smem>>
    %4 = arith.index_cast %arg0 : i32 to index
    %c5 = arith.constant 5 : index
    %5 = memref.load %arg2[%4, %c5] : memref<2x6xf32, #tpu.memory_space<smem>>
    %cst = arith.constant 5.000000e-01 : f32
    %6 = arith.cmpf ogt, %5, %cst : f32
    %c0_0 = arith.constant 0 : index
    %c0_1 = arith.constant 0 : index
    %7 = vector.load %arg3[%c0_0, %c0_1] : memref<16x24xbf16, #tpu.memory_space<vmem>>, vector<16x24xbf16>
    %c0_2 = arith.constant 0 : index
    %c0_3 = arith.constant 0 : index
    %8 = vector.load %arg4[%c0_2, %c0_3] : memref<32x24xbf16, #tpu.memory_space<vmem>>, vector<32x24xbf16>
    %c0_4 = arith.constant 0 : index
    %c0_5 = arith.constant 0 : index
    %c0_6 = arith.constant 0 : index
    %c0_7 = arith.constant 0 : index
    %9 = vector.load %arg5[%c0_4, %c0_5, %c0_6, %c0_7] : memref<1x3x24x32xf32, #tpu.memory_space<vmem>>, vector<1x1x24x32xf32>
    %10 = vector.shape_cast %9 : vector<1x1x24x32xf32> to vector<24x32xf32>
    %11 = arith.truncf %10 : vector<24x32xf32> to vector<24x32xbf16>
    %cst_8 = arith.constant dense<0.000000e+00> : vector<16x32xf32>
    %12 = tpu.matmul %7, %11, %cst_8 {dimension_numbers = #tpu.dot_dimension_numbers<[1], [0], [0], [1], [0, 0, 1, 1], [], []>} : vector<16x24xbf16>, vector<24x32xbf16>, vector<16x32xf32> -> vector<16x32xf32>
    %13 = arith.truncf %12 : vector<16x32xf32> to vector<16x32xbf16>
    %c0_9 = arith.constant 0 : index
    %c1_10 = arith.constant 1 : index
    %c0_11 = arith.constant 0 : index
    %c0_12 = arith.constant 0 : index
    %14 = vector.load %arg5[%c0_9, %c1_10, %c0_11, %c0_12] : memref<1x3x24x32xf32, #tpu.memory_space<vmem>>, vector<1x1x24x32xf32>
    %15 = vector.shape_cast %14 : vector<1x1x24x32xf32> to vector<24x32xf32>
    %16 = arith.truncf %15 : vector<24x32xf32> to vector<24x32xbf16>
    %cst_13 = arith.constant dense<0.000000e+00> : vector<16x32xf32>
    %17 = tpu.matmul %7, %16, %cst_13 {dimension_numbers = #tpu.dot_dimension_numbers<[1], [0], [0], [1], [0, 0, 1, 1], [], []>} : vector<16x24xbf16>, vector<24x32xbf16>, vector<16x32xf32> -> vector<16x32xf32>
    %18 = arith.truncf %17 : vector<16x32xf32> to vector<16x32xbf16>
    %c0_14 = arith.constant 0 : index
    %c2 = arith.constant 2 : index
    %c0_15 = arith.constant 0 : index
    %c0_16 = arith.constant 0 : index
    %19 = vector.load %arg5[%c0_14, %c2, %c0_15, %c0_16] : memref<1x3x24x32xf32, #tpu.memory_space<vmem>>, vector<1x1x24x32xf32>
    %20 = vector.shape_cast %19 : vector<1x1x24x32xf32> to vector<24x32xf32>
    %21 = arith.truncf %20 : vector<24x32xf32> to vector<24x32xbf16>
    %cst_17 = arith.constant dense<0.000000e+00> : vector<16x32xf32>
    %22 = tpu.matmul %7, %21, %cst_17 {dimension_numbers = #tpu.dot_dimension_numbers<[1], [0], [0], [1], [0, 0, 1, 1], [], []>} : vector<16x24xbf16>, vector<24x32xbf16>, vector<16x32xf32> -> vector<16x32xf32>
    %23 = arith.truncf %22 : vector<16x32xf32> to vector<16x32xbf16>
    %24 = tpu.concatenate %13, %18, %23 in 0 : vector<16x32xbf16>, vector<16x32xbf16>, vector<16x32xbf16> -> vector<48x32xbf16>
    %cst_18 = arith.constant dense<0.000000e+00> : vector<48x24xf32>
    %25 = tpu.matmul %24, %8, %cst_18 {dimension_numbers = #tpu.dot_dimension_numbers<[1], [0], [0], [1], [0, 0, 1, 1], [], []>} : vector<48x32xbf16>, vector<32x24xbf16>, vector<48x24xf32> -> vector<48x24xf32>
    %26 = vector.extract_strided_slice %25 {offsets = [0, 0], sizes = [16, 24], strides = [1, 1]} : vector<48x24xf32> to vector<16x24xf32>
    %27 = arith.index_cast %arg0 : i32 to index
    %c2_19 = arith.constant 2 : index
    %28 = memref.load %arg2[%27, %c2_19] : memref<2x6xf32, #tpu.memory_space<smem>>
    %29 = arith.extui %6 : i1 to i32
    %c0_i32 = arith.constant 0 : i32
    %30 = arith.cmpi ne, %29, %c0_i32 : i32
    scf.if %30 {
      %cst_111 = arith.constant 0.000000e+00 : f32
      %173 = vector.broadcast %cst_111 : f32 to vector<16x24xf32>
      %174 = arith.cmpf ogt, %26, %173 : vector<16x24xf32>
      %cst_112 = arith.constant 1.000000e+00 : f32
      %175 = vector.broadcast %cst_112 : f32 to vector<16x24xf32>
      %176 = arith.select %174, %26, %175 : vector<16x24xi1>, vector<16x24xf32>
      %177 = math.log %176 : vector<16x24xf32>
      %178 = vector.broadcast %1 : f32 to vector<16x24xf32>
      %179 = arith.mulf %178, %177 : vector<16x24xf32>
      %180 = math.exp %179 : vector<16x24xf32>
      %cst_113 = arith.constant 0.000000e+00 : f32
      %181 = vector.broadcast %cst_113 : f32 to vector<16x24xf32>
      %182 = arith.select %174, %180, %181 : vector<16x24xi1>, vector<16x24xf32>
      %183 = arith.mulf %3, %28 : f32
      %184 = vector.broadcast %183 : f32 to vector<16x24xf32>
      %185 = arith.mulf %182, %184 : vector<16x24xf32>
      %cst_114 = arith.constant 0.000000e+00 : f32
      %cst_115 = arith.constant 1.000000e+00 : f32
      %186 = vector.broadcast %cst_114 : f32 to vector<16x24xf32>
      %187 = arith.maximumf %186, %185 : vector<16x24xf32>
      %188 = vector.broadcast %cst_115 : f32 to vector<16x24xf32>
      %189 = arith.minimumf %188, %187 : vector<16x24xf32>
      %c0_116 = arith.constant 0 : index
      %c0_117 = arith.constant 0 : index
      %c0_118 = arith.constant 0 : index
      %c0_119 = arith.constant 0 : index
      %190 = vector.load %arg9[%c0_116, %c0_117, %c0_118, %c0_119] : memref<1x3x16x24xf32, #tpu.memory_space<vmem>>, vector<1x1x16x24xf32>
      %191 = vector.shape_cast %190 : vector<1x1x16x24xf32> to vector<16x24xf32>
      %192 = vector.shape_cast %189 : vector<16x24xf32> to vector<1x1x16x24xf32>
      tpu.vector_store %arg9[%c0_116, %c0_117, %c0_118, %c0_119], %192 {strides = array<i32>} : memref<1x3x16x24xf32, #tpu.memory_space<vmem>>, vector<1x1x16x24xf32>,
    } else {
    }
    %true = arith.constant true
    %31 = arith.xori %6, %true : i1
    %32 = arith.extui %31 : i1 to i32
    %c0_i32_20 = arith.constant 0 : i32
    %33 = arith.cmpi ne, %32, %c0_i32_20 : i32
    scf.if %33 {
      %c0_111 = arith.constant 0 : index
      %c0_112 = arith.constant 0 : index
      %c0_113 = arith.constant 0 : index
      %c0_114 = arith.constant 0 : index
      %173 = vector.load %arg9[%c0_111, %c0_112, %c0_113, %c0_114] : memref<1x3x16x24xf32, #tpu.memory_space<vmem>>, vector<1x1x16x24xf32>
      %174 = vector.shape_cast %173 : vector<1x1x16x24xf32> to vector<16x24xf32>
      %175 = vector.shape_cast %26 : vector<16x24xf32> to vector<1x1x16x24xf32>
      tpu.vector_store %arg9[%c0_111, %c0_112, %c0_113, %c0_114], %175 {strides = array<i32>} : memref<1x3x16x24xf32, #tpu.memory_space<vmem>>, vector<1x1x16x24xf32>,
    } else {
    }
    %34 = vector.extract_strided_slice %25 {offsets = [16, 0], sizes = [16, 24], strides = [1, 1]} : vector<48x24xf32> to vector<16x24xf32>
    %35 = arith.index_cast %arg0 : i32 to index
    %c3 = arith.constant 3 : index
    %36 = memref.load %arg2[%35, %c3] : memref<2x6xf32, #tpu.memory_space<smem>>
    %37 = arith.extui %6 : i1 to i32
    %c0_i32_21 = arith.constant 0 : i32
    %38 = arith.cmpi ne, %37, %c0_i32_21 : i32
    scf.if %38 {
      %cst_111 = arith.constant 0.000000e+00 : f32
      %173 = vector.broadcast %cst_111 : f32 to vector<16x24xf32>
      %174 = arith.cmpf ogt, %34, %173 : vector<16x24xf32>
      %cst_112 = arith.constant 1.000000e+00 : f32
      %175 = vector.broadcast %cst_112 : f32 to vector<16x24xf32>
      %176 = arith.select %174, %34, %175 : vector<16x24xi1>, vector<16x24xf32>
      %177 = math.log %176 : vector<16x24xf32>
      %178 = vector.broadcast %1 : f32 to vector<16x24xf32>
      %179 = arith.mulf %178, %177 : vector<16x24xf32>
      %180 = math.exp %179 : vector<16x24xf32>
      %cst_113 = arith.constant 0.000000e+00 : f32
      %181 = vector.broadcast %cst_113 : f32 to vector<16x24xf32>
      %182 = arith.select %174, %180, %181 : vector<16x24xi1>, vector<16x24xf32>
      %183 = arith.mulf %3, %36 : f32
      %184 = vector.broadcast %183 : f32 to vector<16x24xf32>
      %185 = arith.mulf %182, %184 : vector<16x24xf32>
      %cst_114 = arith.constant 0.000000e+00 : f32
      %cst_115 = arith.constant 1.000000e+00 : f32
      %186 = vector.broadcast %cst_114 : f32 to vector<16x24xf32>
      %187 = arith.maximumf %186, %185 : vector<16x24xf32>
      %188 = vector.broadcast %cst_115 : f32 to vector<16x24xf32>
      %189 = arith.minimumf %188, %187 : vector<16x24xf32>
      %c0_116 = arith.constant 0 : index
      %c1_117 = arith.constant 1 : index
      %c0_118 = arith.constant 0 : index
      %c0_119 = arith.constant 0 : index
      %190 = vector.load %arg9[%c0_116, %c1_117, %c0_118, %c0_119] : memref<1x3x16x24xf32, #tpu.memory_space<vmem>>, vector<1x1x16x24xf32>
      %191 = vector.shape_cast %190 : vector<1x1x16x24xf32> to vector<16x24xf32>
      %192 = vector.shape_cast %189 : vector<16x24xf32> to vector<1x1x16x24xf32>
      tpu.vector_store %arg9[%c0_116, %c1_117, %c0_118, %c0_119], %192 {strides = array<i32>} : memref<1x3x16x24xf32, #tpu.memory_space<vmem>>, vector<1x1x16x24xf32>,
    } else {
    }
    %true_22 = arith.constant true
    %39 = arith.xori %6, %true_22 : i1
    %40 = arith.extui %39 : i1 to i32
    %c0_i32_23 = arith.constant 0 : i32
    %41 = arith.cmpi ne, %40, %c0_i32_23 : i32
    scf.if %41 {
      %c0_111 = arith.constant 0 : index
      %c1_112 = arith.constant 1 : index
      %c0_113 = arith.constant 0 : index
      %c0_114 = arith.constant 0 : index
      %173 = vector.load %arg9[%c0_111, %c1_112, %c0_113, %c0_114] : memref<1x3x16x24xf32, #tpu.memory_space<vmem>>, vector<1x1x16x24xf32>
      %174 = vector.shape_cast %173 : vector<1x1x16x24xf32> to vector<16x24xf32>
      %175 = vector.shape_cast %34 : vector<16x24xf32> to vector<1x1x16x24xf32>
      tpu.vector_store %arg9[%c0_111, %c1_112, %c0_113, %c0_114], %175 {strides = array<i32>} : memref<1x3x16x24xf32, #tpu.memory_space<vmem>>, vector<1x1x16x24xf32>,
    } else {
    }
    %42 = vector.extract_strided_slice %25 {offsets = [32, 0], sizes = [16, 24], strides = [1, 1]} : vector<48x24xf32> to vector<16x24xf32>
    %43 = arith.index_cast %arg0 : i32 to index
    %c4 = arith.constant 4 : index
    %44 = memref.load %arg2[%43, %c4] : memref<2x6xf32, #tpu.memory_space<smem>>
    %45 = arith.extui %6 : i1 to i32
    %c0_i32_24 = arith.constant 0 : i32
    %46 = arith.cmpi ne, %45, %c0_i32_24 : i32
    scf.if %46 {
      %cst_111 = arith.constant 0.000000e+00 : f32
      %173 = vector.broadcast %cst_111 : f32 to vector<16x24xf32>
      %174 = arith.cmpf ogt, %42, %173 : vector<16x24xf32>
      %cst_112 = arith.constant 1.000000e+00 : f32
      %175 = vector.broadcast %cst_112 : f32 to vector<16x24xf32>
      %176 = arith.select %174, %42, %175 : vector<16x24xi1>, vector<16x24xf32>
      %177 = math.log %176 : vector<16x24xf32>
      %178 = vector.broadcast %1 : f32 to vector<16x24xf32>
      %179 = arith.mulf %178, %177 : vector<16x24xf32>
      %180 = math.exp %179 : vector<16x24xf32>
      %cst_113 = arith.constant 0.000000e+00 : f32
      %181 = vector.broadcast %cst_113 : f32 to vector<16x24xf32>
      %182 = arith.select %174, %180, %181 : vector<16x24xi1>, vector<16x24xf32>
      %183 = arith.mulf %3, %44 : f32
      %184 = vector.broadcast %183 : f32 to vector<16x24xf32>
      %185 = arith.mulf %182, %184 : vector<16x24xf32>
      %cst_114 = arith.constant 0.000000e+00 : f32
      %cst_115 = arith.constant 1.000000e+00 : f32
      %186 = vector.broadcast %cst_114 : f32 to vector<16x24xf32>
      %187 = arith.maximumf %186, %185 : vector<16x24xf32>
      %188 = vector.broadcast %cst_115 : f32 to vector<16x24xf32>
      %189 = arith.minimumf %188, %187 : vector<16x24xf32>
      %c0_116 = arith.constant 0 : index
      %c2_117 = arith.constant 2 : index
      %c0_118 = arith.constant 0 : index
      %c0_119 = arith.constant 0 : index
      %190 = vector.load %arg9[%c0_116, %c2_117, %c0_118, %c0_119] : memref<1x3x16x24xf32, #tpu.memory_space<vmem>>, vector<1x1x16x24xf32>
      %191 = vector.shape_cast %190 : vector<1x1x16x24xf32> to vector<16x24xf32>
      %192 = vector.shape_cast %189 : vector<16x24xf32> to vector<1x1x16x24xf32>
      tpu.vector_store %arg9[%c0_116, %c2_117, %c0_118, %c0_119], %192 {strides = array<i32>} : memref<1x3x16x24xf32, #tpu.memory_space<vmem>>, vector<1x1x16x24xf32>,
    } else {
    }
    %true_25 = arith.constant true
    %47 = arith.xori %6, %true_25 : i1
    %48 = arith.extui %47 : i1 to i32
    %c0_i32_26 = arith.constant 0 : i32
    %49 = arith.cmpi ne, %48, %c0_i32_26 : i32
    scf.if %49 {
      %c0_111 = arith.constant 0 : index
      %c2_112 = arith.constant 2 : index
      %c0_113 = arith.constant 0 : index
      %c0_114 = arith.constant 0 : index
      %173 = vector.load %arg9[%c0_111, %c2_112, %c0_113, %c0_114] : memref<1x3x16x24xf32, #tpu.memory_space<vmem>>, vector<1x1x16x24xf32>
      %174 = vector.shape_cast %173 : vector<1x1x16x24xf32> to vector<16x24xf32>
      %175 = vector.shape_cast %42 : vector<16x24xf32> to vector<1x1x16x24xf32>
      tpu.vector_store %arg9[%c0_111, %c2_112, %c0_113, %c0_114], %175 {strides = array<i32>} : memref<1x3x16x24xf32, #tpu.memory_space<vmem>>, vector<1x1x16x24xf32>,
    } else {
    }
    %c0_27 = arith.constant 0 : index
    %c0_28 = arith.constant 0 : index
    %c0_29 = arith.constant 0 : index
    %c0_30 = arith.constant 0 : index
    %50 = vector.load %arg6[%c0_27, %c0_28, %c0_29, %c0_30] : memref<1x3x24x32xf32, #tpu.memory_space<vmem>>, vector<1x1x24x32xf32>
    %51 = vector.shape_cast %50 : vector<1x1x24x32xf32> to vector<24x32xf32>
    %52 = arith.truncf %51 : vector<24x32xf32> to vector<24x32xbf16>
    %cst_31 = arith.constant dense<0.000000e+00> : vector<16x32xf32>
    %53 = tpu.matmul %7, %52, %cst_31 {dimension_numbers = #tpu.dot_dimension_numbers<[1], [0], [0], [1], [0, 0, 1, 1], [], []>} : vector<16x24xbf16>, vector<24x32xbf16>, vector<16x32xf32> -> vector<16x32xf32>
    %54 = arith.truncf %53 : vector<16x32xf32> to vector<16x32xbf16>
    %c0_32 = arith.constant 0 : index
    %c1_33 = arith.constant 1 : index
    %c0_34 = arith.constant 0 : index
    %c0_35 = arith.constant 0 : index
    %55 = vector.load %arg6[%c0_32, %c1_33, %c0_34, %c0_35] : memref<1x3x24x32xf32, #tpu.memory_space<vmem>>, vector<1x1x24x32xf32>
    %56 = vector.shape_cast %55 : vector<1x1x24x32xf32> to vector<24x32xf32>
    %57 = arith.truncf %56 : vector<24x32xf32> to vector<24x32xbf16>
    %cst_36 = arith.constant dense<0.000000e+00> : vector<16x32xf32>
    %58 = tpu.matmul %7, %57, %cst_36 {dimension_numbers = #tpu.dot_dimension_numbers<[1], [0], [0], [1], [0, 0, 1, 1], [], []>} : vector<16x24xbf16>, vector<24x32xbf16>, vector<16x32xf32> -> vector<16x32xf32>
    %59 = arith.truncf %58 : vector<16x32xf32> to vector<16x32xbf16>
    %c0_37 = arith.constant 0 : index
    %c2_38 = arith.constant 2 : index
    %c0_39 = arith.constant 0 : index
    %c0_40 = arith.constant 0 : index
    %60 = vector.load %arg6[%c0_37, %c2_38, %c0_39, %c0_40] : memref<1x3x24x32xf32, #tpu.memory_space<vmem>>, vector<1x1x24x32xf32>
    %61 = vector.shape_cast %60 : vector<1x1x24x32xf32> to vector<24x32xf32>
    %62 = arith.truncf %61 : vector<24x32xf32> to vector<24x32xbf16>
    %cst_41 = arith.constant dense<0.000000e+00> : vector<16x32xf32>
    %63 = tpu.matmul %7, %62, %cst_41 {dimension_numbers = #tpu.dot_dimension_numbers<[1], [0], [0], [1], [0, 0, 1, 1], [], []>} : vector<16x24xbf16>, vector<24x32xbf16>, vector<16x32xf32> -> vector<16x32xf32>
    %64 = arith.truncf %63 : vector<16x32xf32> to vector<16x32xbf16>
    %65 = tpu.concatenate %54, %59, %64 in 0 : vector<16x32xbf16>, vector<16x32xbf16>, vector<16x32xbf16> -> vector<48x32xbf16>
    %cst_42 = arith.constant dense<0.000000e+00> : vector<48x24xf32>
    %66 = tpu.matmul %65, %8, %cst_42 {dimension_numbers = #tpu.dot_dimension_numbers<[1], [0], [0], [1], [0, 0, 1, 1], [], []>} : vector<48x32xbf16>, vector<32x24xbf16>, vector<48x24xf32> -> vector<48x24xf32>
    %67 = vector.extract_strided_slice %66 {offsets = [0, 0], sizes = [16, 24], strides = [1, 1]} : vector<48x24xf32> to vector<16x24xf32>
    %68 = arith.index_cast %arg0 : i32 to index
    %c2_43 = arith.constant 2 : index
    %69 = memref.load %arg2[%68, %c2_43] : memref<2x6xf32, #tpu.memory_space<smem>>
    %70 = arith.extui %6 : i1 to i32
    %c0_i32_44 = arith.constant 0 : i32
    %71 = arith.cmpi ne, %70, %c0_i32_44 : i32
    scf.if %71 {
      %cst_111 = arith.constant 0.000000e+00 : f32
      %173 = vector.broadcast %cst_111 : f32 to vector<16x24xf32>
      %174 = arith.cmpf ogt, %67, %173 : vector<16x24xf32>
      %cst_112 = arith.constant 1.000000e+00 : f32
      %175 = vector.broadcast %cst_112 : f32 to vector<16x24xf32>
      %176 = arith.select %174, %67, %175 : vector<16x24xi1>, vector<16x24xf32>
      %177 = math.log %176 : vector<16x24xf32>
      %178 = vector.broadcast %1 : f32 to vector<16x24xf32>
      %179 = arith.mulf %178, %177 : vector<16x24xf32>
      %180 = math.exp %179 : vector<16x24xf32>
      %cst_113 = arith.constant 0.000000e+00 : f32
      %181 = vector.broadcast %cst_113 : f32 to vector<16x24xf32>
      %182 = arith.select %174, %180, %181 : vector<16x24xi1>, vector<16x24xf32>
      %183 = arith.mulf %3, %69 : f32
      %184 = vector.broadcast %183 : f32 to vector<16x24xf32>
      %185 = arith.mulf %182, %184 : vector<16x24xf32>
      %cst_114 = arith.constant 0.000000e+00 : f32
      %cst_115 = arith.constant 1.000000e+00 : f32
      %186 = vector.broadcast %cst_114 : f32 to vector<16x24xf32>
      %187 = arith.maximumf %186, %185 : vector<16x24xf32>
      %188 = vector.broadcast %cst_115 : f32 to vector<16x24xf32>
      %189 = arith.minimumf %188, %187 : vector<16x24xf32>
      %c0_116 = arith.constant 0 : index
      %c0_117 = arith.constant 0 : index
      %c0_118 = arith.constant 0 : index
      %c0_119 = arith.constant 0 : index
      %190 = vector.load %arg10[%c0_116, %c0_117, %c0_118, %c0_119] : memref<1x3x16x24xf32, #tpu.memory_space<vmem>>, vector<1x1x16x24xf32>
      %191 = vector.shape_cast %190 : vector<1x1x16x24xf32> to vector<16x24xf32>
      %192 = vector.shape_cast %189 : vector<16x24xf32> to vector<1x1x16x24xf32>
      tpu.vector_store %arg10[%c0_116, %c0_117, %c0_118, %c0_119], %192 {strides = array<i32>} : memref<1x3x16x24xf32, #tpu.memory_space<vmem>>, vector<1x1x16x24xf32>,
    } else {
    }
    %true_45 = arith.constant true
    %72 = arith.xori %6, %true_45 : i1
    %73 = arith.extui %72 : i1 to i32
    %c0_i32_46 = arith.constant 0 : i32
    %74 = arith.cmpi ne, %73, %c0_i32_46 : i32
    scf.if %74 {
      %c0_111 = arith.constant 0 : index
      %c0_112 = arith.constant 0 : index
      %c0_113 = arith.constant 0 : index
      %c0_114 = arith.constant 0 : index
      %173 = vector.load %arg10[%c0_111, %c0_112, %c0_113, %c0_114] : memref<1x3x16x24xf32, #tpu.memory_space<vmem>>, vector<1x1x16x24xf32>
      %174 = vector.shape_cast %173 : vector<1x1x16x24xf32> to vector<16x24xf32>
      %175 = vector.shape_cast %67 : vector<16x24xf32> to vector<1x1x16x24xf32>
      tpu.vector_store %arg10[%c0_111, %c0_112, %c0_113, %c0_114], %175 {strides = array<i32>} : memref<1x3x16x24xf32, #tpu.memory_space<vmem>>, vector<1x1x16x24xf32>,
    } else {
    }
    %75 = vector.extract_strided_slice %66 {offsets = [16, 0], sizes = [16, 24], strides = [1, 1]} : vector<48x24xf32> to vector<16x24xf32>
    %76 = arith.index_cast %arg0 : i32 to index
    %c3_47 = arith.constant 3 : index
    %77 = memref.load %arg2[%76, %c3_47] : memref<2x6xf32, #tpu.memory_space<smem>>
    %78 = arith.extui %6 : i1 to i32
    %c0_i32_48 = arith.constant 0 : i32
    %79 = arith.cmpi ne, %78, %c0_i32_48 : i32
    scf.if %79 {
      %cst_111 = arith.constant 0.000000e+00 : f32
      %173 = vector.broadcast %cst_111 : f32 to vector<16x24xf32>
      %174 = arith.cmpf ogt, %75, %173 : vector<16x24xf32>
      %cst_112 = arith.constant 1.000000e+00 : f32
      %175 = vector.broadcast %cst_112 : f32 to vector<16x24xf32>
      %176 = arith.select %174, %75, %175 : vector<16x24xi1>, vector<16x24xf32>
      %177 = math.log %176 : vector<16x24xf32>
      %178 = vector.broadcast %1 : f32 to vector<16x24xf32>
      %179 = arith.mulf %178, %177 : vector<16x24xf32>
      %180 = math.exp %179 : vector<16x24xf32>
      %cst_113 = arith.constant 0.000000e+00 : f32
      %181 = vector.broadcast %cst_113 : f32 to vector<16x24xf32>
      %182 = arith.select %174, %180, %181 : vector<16x24xi1>, vector<16x24xf32>
      %183 = arith.mulf %3, %77 : f32
      %184 = vector.broadcast %183 : f32 to vector<16x24xf32>
      %185 = arith.mulf %182, %184 : vector<16x24xf32>
      %cst_114 = arith.constant 0.000000e+00 : f32
      %cst_115 = arith.constant 1.000000e+00 : f32
      %186 = vector.broadcast %cst_114 : f32 to vector<16x24xf32>
      %187 = arith.maximumf %186, %185 : vector<16x24xf32>
      %188 = vector.broadcast %cst_115 : f32 to vector<16x24xf32>
      %189 = arith.minimumf %188, %187 : vector<16x24xf32>
      %c0_116 = arith.constant 0 : index
      %c1_117 = arith.constant 1 : index
      %c0_118 = arith.constant 0 : index
      %c0_119 = arith.constant 0 : index
      %190 = vector.load %arg10[%c0_116, %c1_117, %c0_118, %c0_119] : memref<1x3x16x24xf32, #tpu.memory_space<vmem>>, vector<1x1x16x24xf32>
      %191 = vector.shape_cast %190 : vector<1x1x16x24xf32> to vector<16x24xf32>
      %192 = vector.shape_cast %189 : vector<16x24xf32> to vector<1x1x16x24xf32>
      tpu.vector_store %arg10[%c0_116, %c1_117, %c0_118, %c0_119], %192 {strides = array<i32>} : memref<1x3x16x24xf32, #tpu.memory_space<vmem>>, vector<1x1x16x24xf32>,
    } else {
    }
    %true_49 = arith.constant true
    %80 = arith.xori %6, %true_49 : i1
    %81 = arith.extui %80 : i1 to i32
    %c0_i32_50 = arith.constant 0 : i32
    %82 = arith.cmpi ne, %81, %c0_i32_50 : i32
    scf.if %82 {
      %c0_111 = arith.constant 0 : index
      %c1_112 = arith.constant 1 : index
      %c0_113 = arith.constant 0 : index
      %c0_114 = arith.constant 0 : index
      %173 = vector.load %arg10[%c0_111, %c1_112, %c0_113, %c0_114] : memref<1x3x16x24xf32, #tpu.memory_space<vmem>>, vector<1x1x16x24xf32>
      %174 = vector.shape_cast %173 : vector<1x1x16x24xf32> to vector<16x24xf32>
      %175 = vector.shape_cast %75 : vector<16x24xf32> to vector<1x1x16x24xf32>
      tpu.vector_store %arg10[%c0_111, %c1_112, %c0_113, %c0_114], %175 {strides = array<i32>} : memref<1x3x16x24xf32, #tpu.memory_space<vmem>>, vector<1x1x16x24xf32>,
    } else {
    }
    %83 = vector.extract_strided_slice %66 {offsets = [32, 0], sizes = [16, 24], strides = [1, 1]} : vector<48x24xf32> to vector<16x24xf32>
    %84 = arith.index_cast %arg0 : i32 to index
    %c4_51 = arith.constant 4 : index
    %85 = memref.load %arg2[%84, %c4_51] : memref<2x6xf32, #tpu.memory_space<smem>>
    %86 = arith.extui %6 : i1 to i32
    %c0_i32_52 = arith.constant 0 : i32
    %87 = arith.cmpi ne, %86, %c0_i32_52 : i32
    scf.if %87 {
      %cst_111 = arith.constant 0.000000e+00 : f32
      %173 = vector.broadcast %cst_111 : f32 to vector<16x24xf32>
      %174 = arith.cmpf ogt, %83, %173 : vector<16x24xf32>
      %cst_112 = arith.constant 1.000000e+00 : f32
      %175 = vector.broadcast %cst_112 : f32 to vector<16x24xf32>
      %176 = arith.select %174, %83, %175 : vector<16x24xi1>, vector<16x24xf32>
      %177 = math.log %176 : vector<16x24xf32>
      %178 = vector.broadcast %1 : f32 to vector<16x24xf32>
      %179 = arith.mulf %178, %177 : vector<16x24xf32>
      %180 = math.exp %179 : vector<16x24xf32>
      %cst_113 = arith.constant 0.000000e+00 : f32
      %181 = vector.broadcast %cst_113 : f32 to vector<16x24xf32>
      %182 = arith.select %174, %180, %181 : vector<16x24xi1>, vector<16x24xf32>
      %183 = arith.mulf %3, %85 : f32
      %184 = vector.broadcast %183 : f32 to vector<16x24xf32>
      %185 = arith.mulf %182, %184 : vector<16x24xf32>
      %cst_114 = arith.constant 0.000000e+00 : f32
      %cst_115 = arith.constant 1.000000e+00 : f32
      %186 = vector.broadcast %cst_114 : f32 to vector<16x24xf32>
      %187 = arith.maximumf %186, %185 : vector<16x24xf32>
      %188 = vector.broadcast %cst_115 : f32 to vector<16x24xf32>
      %189 = arith.minimumf %188, %187 : vector<16x24xf32>
      %c0_116 = arith.constant 0 : index
      %c2_117 = arith.constant 2 : index
      %c0_118 = arith.constant 0 : index
      %c0_119 = arith.constant 0 : index
      %190 = vector.load %arg10[%c0_116, %c2_117, %c0_118, %c0_119] : memref<1x3x16x24xf32, #tpu.memory_space<vmem>>, vector<1x1x16x24xf32>
      %191 = vector.shape_cast %190 : vector<1x1x16x24xf32> to vector<16x24xf32>
      %192 = vector.shape_cast %189 : vector<16x24xf32> to vector<1x1x16x24xf32>
      tpu.vector_store %arg10[%c0_116, %c2_117, %c0_118, %c0_119], %192 {strides = array<i32>} : memref<1x3x16x24xf32, #tpu.memory_space<vmem>>, vector<1x1x16x24xf32>,
    } else {
    }
    %true_53 = arith.constant true
    %88 = arith.xori %6, %true_53 : i1
    %89 = arith.extui %88 : i1 to i32
    %c0_i32_54 = arith.constant 0 : i32
    %90 = arith.cmpi ne, %89, %c0_i32_54 : i32
    scf.if %90 {
      %c0_111 = arith.constant 0 : index
      %c2_112 = arith.constant 2 : index
      %c0_113 = arith.constant 0 : index
      %c0_114 = arith.constant 0 : index
      %173 = vector.load %arg10[%c0_111, %c2_112, %c0_113, %c0_114] : memref<1x3x16x24xf32, #tpu.memory_space<vmem>>, vector<1x1x16x24xf32>
      %174 = vector.shape_cast %173 : vector<1x1x16x24xf32> to vector<16x24xf32>
      %175 = vector.shape_cast %83 : vector<16x24xf32> to vector<1x1x16x24xf32>
      tpu.vector_store %arg10[%c0_111, %c2_112, %c0_113, %c0_114], %175 {strides = array<i32>} : memref<1x3x16x24xf32, #tpu.memory_space<vmem>>, vector<1x1x16x24xf32>,
    } else {
    }
    %c0_55 = arith.constant 0 : index
    %c0_56 = arith.constant 0 : index
    %c0_57 = arith.constant 0 : index
    %c0_58 = arith.constant 0 : index
    %91 = vector.load %arg7[%c0_55, %c0_56, %c0_57, %c0_58] : memref<1x3x24x32xf32, #tpu.memory_space<vmem>>, vector<1x1x24x32xf32>
    %92 = vector.shape_cast %91 : vector<1x1x24x32xf32> to vector<24x32xf32>
    %93 = arith.truncf %92 : vector<24x32xf32> to vector<24x32xbf16>
    %cst_59 = arith.constant dense<0.000000e+00> : vector<16x32xf32>
    %94 = tpu.matmul %7, %93, %cst_59 {dimension_numbers = #tpu.dot_dimension_numbers<[1], [0], [0], [1], [0, 0, 1, 1], [], []>} : vector<16x24xbf16>, vector<24x32xbf16>, vector<16x32xf32> -> vector<16x32xf32>
    %95 = arith.truncf %94 : vector<16x32xf32> to vector<16x32xbf16>
    %c0_60 = arith.constant 0 : index
    %c1_61 = arith.constant 1 : index
    %c0_62 = arith.constant 0 : index
    %c0_63 = arith.constant 0 : index
    %96 = vector.load %arg7[%c0_60, %c1_61, %c0_62, %c0_63] : memref<1x3x24x32xf32, #tpu.memory_space<vmem>>, vector<1x1x24x32xf32>
    %97 = vector.shape_cast %96 : vector<1x1x24x32xf32> to vector<24x32xf32>
    %98 = arith.truncf %97 : vector<24x32xf32> to vector<24x32xbf16>
    %cst_64 = arith.constant dense<0.000000e+00> : vector<16x32xf32>
    %99 = tpu.matmul %7, %98, %cst_64 {dimension_numbers = #tpu.dot_dimension_numbers<[1], [0], [0], [1], [0, 0, 1, 1], [], []>} : vector<16x24xbf16>, vector<24x32xbf16>, vector<16x32xf32> -> vector<16x32xf32>
    %100 = arith.truncf %99 : vector<16x32xf32> to vector<16x32xbf16>
    %c0_65 = arith.constant 0 : index
    %c2_66 = arith.constant 2 : index
    %c0_67 = arith.constant 0 : index
    %c0_68 = arith.constant 0 : index
    %101 = vector.load %arg7[%c0_65, %c2_66, %c0_67, %c0_68] : memref<1x3x24x32xf32, #tpu.memory_space<vmem>>, vector<1x1x24x32xf32>
    %102 = vector.shape_cast %101 : vector<1x1x24x32xf32> to vector<24x32xf32>
    %103 = arith.truncf %102 : vector<24x32xf32> to vector<24x32xbf16>
    %cst_69 = arith.constant dense<0.000000e+00> : vector<16x32xf32>
    %104 = tpu.matmul %7, %103, %cst_69 {dimension_numbers = #tpu.dot_dimension_numbers<[1], [0], [0], [1], [0, 0, 1, 1], [], []>} : vector<16x24xbf16>, vector<24x32xbf16>, vector<16x32xf32> -> vector<16x32xf32>
    %105 = arith.truncf %104 : vector<16x32xf32> to vector<16x32xbf16>
    %106 = tpu.concatenate %95, %100, %105 in 0 : vector<16x32xbf16>, vector<16x32xbf16>, vector<16x32xbf16> -> vector<48x32xbf16>
    %cst_70 = arith.constant dense<0.000000e+00> : vector<48x24xf32>
    %107 = tpu.matmul %106, %8, %cst_70 {dimension_numbers = #tpu.dot_dimension_numbers<[1], [0], [0], [1], [0, 0, 1, 1], [], []>} : vector<48x32xbf16>, vector<32x24xbf16>, vector<48x24xf32> -> vector<48x24xf32>
    %108 = vector.extract_strided_slice %107 {offsets = [0, 0], sizes = [16, 24], strides = [1, 1]} : vector<48x24xf32> to vector<16x24xf32>
    %109 = arith.index_cast %arg0 : i32 to index
    %c2_71 = arith.constant 2 : index
    %110 = memref.load %arg2[%109, %c2_71] : memref<2x6xf32, #tpu.memory_space<smem>>
    %111 = arith.extui %6 : i1 to i32
    %c0_i32_72 = arith.constant 0 : i32
    %112 = arith.cmpi ne, %111, %c0_i32_72 : i32
    scf.if %112 {
      %cst_111 = arith.constant 0.000000e+00 : f32
      %173 = vector.broadcast %cst_111 : f32 to vector<16x24xf32>
      %174 = arith.cmpf ogt, %108, %173 : vector<16x24xf32>
      %cst_112 = arith.constant 1.000000e+00 : f32
      %175 = vector.broadcast %cst_112 : f32 to vector<16x24xf32>
      %176 = arith.select %174, %108, %175 : vector<16x24xi1>, vector<16x24xf32>
      %177 = math.log %176 : vector<16x24xf32>
      %178 = vector.broadcast %1 : f32 to vector<16x24xf32>
      %179 = arith.mulf %178, %177 : vector<16x24xf32>
      %180 = math.exp %179 : vector<16x24xf32>
      %cst_113 = arith.constant 0.000000e+00 : f32
      %181 = vector.broadcast %cst_113 : f32 to vector<16x24xf32>
      %182 = arith.select %174, %180, %181 : vector<16x24xi1>, vector<16x24xf32>
      %183 = arith.mulf %3, %110 : f32
      %184 = vector.broadcast %183 : f32 to vector<16x24xf32>
      %185 = arith.mulf %182, %184 : vector<16x24xf32>
      %cst_114 = arith.constant 0.000000e+00 : f32
      %cst_115 = arith.constant 1.000000e+00 : f32
      %186 = vector.broadcast %cst_114 : f32 to vector<16x24xf32>
      %187 = arith.maximumf %186, %185 : vector<16x24xf32>
      %188 = vector.broadcast %cst_115 : f32 to vector<16x24xf32>
      %189 = arith.minimumf %188, %187 : vector<16x24xf32>
      %c0_116 = arith.constant 0 : index
      %c0_117 = arith.constant 0 : index
      %c0_118 = arith.constant 0 : index
      %c0_119 = arith.constant 0 : index
      %190 = vector.load %arg11[%c0_116, %c0_117, %c0_118, %c0_119] : memref<1x3x16x24xf32, #tpu.memory_space<vmem>>, vector<1x1x16x24xf32>
      %191 = vector.shape_cast %190 : vector<1x1x16x24xf32> to vector<16x24xf32>
      %192 = vector.shape_cast %189 : vector<16x24xf32> to vector<1x1x16x24xf32>
      tpu.vector_store %arg11[%c0_116, %c0_117, %c0_118, %c0_119], %192 {strides = array<i32>} : memref<1x3x16x24xf32, #tpu.memory_space<vmem>>, vector<1x1x16x24xf32>,
    } else {
    }
    %true_73 = arith.constant true
    %113 = arith.xori %6, %true_73 : i1
    %114 = arith.extui %113 : i1 to i32
    %c0_i32_74 = arith.constant 0 : i32
    %115 = arith.cmpi ne, %114, %c0_i32_74 : i32
    scf.if %115 {
      %c0_111 = arith.constant 0 : index
      %c0_112 = arith.constant 0 : index
      %c0_113 = arith.constant 0 : index
      %c0_114 = arith.constant 0 : index
      %173 = vector.load %arg11[%c0_111, %c0_112, %c0_113, %c0_114] : memref<1x3x16x24xf32, #tpu.memory_space<vmem>>, vector<1x1x16x24xf32>
      %174 = vector.shape_cast %173 : vector<1x1x16x24xf32> to vector<16x24xf32>
      %175 = vector.shape_cast %108 : vector<16x24xf32> to vector<1x1x16x24xf32>
      tpu.vector_store %arg11[%c0_111, %c0_112, %c0_113, %c0_114], %175 {strides = array<i32>} : memref<1x3x16x24xf32, #tpu.memory_space<vmem>>, vector<1x1x16x24xf32>,
    } else {
    }
    %116 = vector.extract_strided_slice %107 {offsets = [16, 0], sizes = [16, 24], strides = [1, 1]} : vector<48x24xf32> to vector<16x24xf32>
    %117 = arith.index_cast %arg0 : i32 to index
    %c3_75 = arith.constant 3 : index
    %118 = memref.load %arg2[%117, %c3_75] : memref<2x6xf32, #tpu.memory_space<smem>>
    %119 = arith.extui %6 : i1 to i32
    %c0_i32_76 = arith.constant 0 : i32
    %120 = arith.cmpi ne, %119, %c0_i32_76 : i32
    scf.if %120 {
      %cst_111 = arith.constant 0.000000e+00 : f32
      %173 = vector.broadcast %cst_111 : f32 to vector<16x24xf32>
      %174 = arith.cmpf ogt, %116, %173 : vector<16x24xf32>
      %cst_112 = arith.constant 1.000000e+00 : f32
      %175 = vector.broadcast %cst_112 : f32 to vector<16x24xf32>
      %176 = arith.select %174, %116, %175 : vector<16x24xi1>, vector<16x24xf32>
      %177 = math.log %176 : vector<16x24xf32>
      %178 = vector.broadcast %1 : f32 to vector<16x24xf32>
      %179 = arith.mulf %178, %177 : vector<16x24xf32>
      %180 = math.exp %179 : vector<16x24xf32>
      %cst_113 = arith.constant 0.000000e+00 : f32
      %181 = vector.broadcast %cst_113 : f32 to vector<16x24xf32>
      %182 = arith.select %174, %180, %181 : vector<16x24xi1>, vector<16x24xf32>
      %183 = arith.mulf %3, %118 : f32
      %184 = vector.broadcast %183 : f32 to vector<16x24xf32>
      %185 = arith.mulf %182, %184 : vector<16x24xf32>
      %cst_114 = arith.constant 0.000000e+00 : f32
      %cst_115 = arith.constant 1.000000e+00 : f32
      %186 = vector.broadcast %cst_114 : f32 to vector<16x24xf32>
      %187 = arith.maximumf %186, %185 : vector<16x24xf32>
      %188 = vector.broadcast %cst_115 : f32 to vector<16x24xf32>
      %189 = arith.minimumf %188, %187 : vector<16x24xf32>
      %c0_116 = arith.constant 0 : index
      %c1_117 = arith.constant 1 : index
      %c0_118 = arith.constant 0 : index
      %c0_119 = arith.constant 0 : index
      %190 = vector.load %arg11[%c0_116, %c1_117, %c0_118, %c0_119] : memref<1x3x16x24xf32, #tpu.memory_space<vmem>>, vector<1x1x16x24xf32>
      %191 = vector.shape_cast %190 : vector<1x1x16x24xf32> to vector<16x24xf32>
      %192 = vector.shape_cast %189 : vector<16x24xf32> to vector<1x1x16x24xf32>
      tpu.vector_store %arg11[%c0_116, %c1_117, %c0_118, %c0_119], %192 {strides = array<i32>} : memref<1x3x16x24xf32, #tpu.memory_space<vmem>>, vector<1x1x16x24xf32>,
    } else {
    }
    %true_77 = arith.constant true
    %121 = arith.xori %6, %true_77 : i1
    %122 = arith.extui %121 : i1 to i32
    %c0_i32_78 = arith.constant 0 : i32
    %123 = arith.cmpi ne, %122, %c0_i32_78 : i32
    scf.if %123 {
      %c0_111 = arith.constant 0 : index
      %c1_112 = arith.constant 1 : index
      %c0_113 = arith.constant 0 : index
      %c0_114 = arith.constant 0 : index
      %173 = vector.load %arg11[%c0_111, %c1_112, %c0_113, %c0_114] : memref<1x3x16x24xf32, #tpu.memory_space<vmem>>, vector<1x1x16x24xf32>
      %174 = vector.shape_cast %173 : vector<1x1x16x24xf32> to vector<16x24xf32>
      %175 = vector.shape_cast %116 : vector<16x24xf32> to vector<1x1x16x24xf32>
      tpu.vector_store %arg11[%c0_111, %c1_112, %c0_113, %c0_114], %175 {strides = array<i32>} : memref<1x3x16x24xf32, #tpu.memory_space<vmem>>, vector<1x1x16x24xf32>,
    } else {
    }
    %124 = vector.extract_strided_slice %107 {offsets = [32, 0], sizes = [16, 24], strides = [1, 1]} : vector<48x24xf32> to vector<16x24xf32>
    %125 = arith.index_cast %arg0 : i32 to index
    %c4_79 = arith.constant 4 : index
    %126 = memref.load %arg2[%125, %c4_79] : memref<2x6xf32, #tpu.memory_space<smem>>
    %127 = arith.extui %6 : i1 to i32
    %c0_i32_80 = arith.constant 0 : i32
    %128 = arith.cmpi ne, %127, %c0_i32_80 : i32
    scf.if %128 {
      %cst_111 = arith.constant 0.000000e+00 : f32
      %173 = vector.broadcast %cst_111 : f32 to vector<16x24xf32>
      %174 = arith.cmpf ogt, %124, %173 : vector<16x24xf32>
      %cst_112 = arith.constant 1.000000e+00 : f32
      %175 = vector.broadcast %cst_112 : f32 to vector<16x24xf32>
      %176 = arith.select %174, %124, %175 : vector<16x24xi1>, vector<16x24xf32>
      %177 = math.log %176 : vector<16x24xf32>
      %178 = vector.broadcast %1 : f32 to vector<16x24xf32>
      %179 = arith.mulf %178, %177 : vector<16x24xf32>
      %180 = math.exp %179 : vector<16x24xf32>
      %cst_113 = arith.constant 0.000000e+00 : f32
      %181 = vector.broadcast %cst_113 : f32 to vector<16x24xf32>
      %182 = arith.select %174, %180, %181 : vector<16x24xi1>, vector<16x24xf32>
      %183 = arith.mulf %3, %126 : f32
      %184 = vector.broadcast %183 : f32 to vector<16x24xf32>
      %185 = arith.mulf %182, %184 : vector<16x24xf32>
      %cst_114 = arith.constant 0.000000e+00 : f32
      %cst_115 = arith.constant 1.000000e+00 : f32
      %186 = vector.broadcast %cst_114 : f32 to vector<16x24xf32>
      %187 = arith.maximumf %186, %185 : vector<16x24xf32>
      %188 = vector.broadcast %cst_115 : f32 to vector<16x24xf32>
      %189 = arith.minimumf %188, %187 : vector<16x24xf32>
      %c0_116 = arith.constant 0 : index
      %c2_117 = arith.constant 2 : index
      %c0_118 = arith.constant 0 : index
      %c0_119 = arith.constant 0 : index
      %190 = vector.load %arg11[%c0_116, %c2_117, %c0_118, %c0_119] : memref<1x3x16x24xf32, #tpu.memory_space<vmem>>, vector<1x1x16x24xf32>
      %191 = vector.shape_cast %190 : vector<1x1x16x24xf32> to vector<16x24xf32>
      %192 = vector.shape_cast %189 : vector<16x24xf32> to vector<1x1x16x24xf32>
      tpu.vector_store %arg11[%c0_116, %c2_117, %c0_118, %c0_119], %192 {strides = array<i32>} : memref<1x3x16x24xf32, #tpu.memory_space<vmem>>, vector<1x1x16x24xf32>,
    } else {
    }
    %true_81 = arith.constant true
    %129 = arith.xori %6, %true_81 : i1
    %130 = arith.extui %129 : i1 to i32
    %c0_i32_82 = arith.constant 0 : i32
    %131 = arith.cmpi ne, %130, %c0_i32_82 : i32
    scf.if %131 {
      %c0_111 = arith.constant 0 : index
      %c2_112 = arith.constant 2 : index
      %c0_113 = arith.constant 0 : index
      %c0_114 = arith.constant 0 : index
      %173 = vector.load %arg11[%c0_111, %c2_112, %c0_113, %c0_114] : memref<1x3x16x24xf32, #tpu.memory_space<vmem>>, vector<1x1x16x24xf32>
      %174 = vector.shape_cast %173 : vector<1x1x16x24xf32> to vector<16x24xf32>
      %175 = vector.shape_cast %124 : vector<16x24xf32> to vector<1x1x16x24xf32>
      tpu.vector_store %arg11[%c0_111, %c2_112, %c0_113, %c0_114], %175 {strides = array<i32>} : memref<1x3x16x24xf32, #tpu.memory_space<vmem>>, vector<1x1x16x24xf32>,
    } else {
    }
    %c0_83 = arith.constant 0 : index
    %c0_84 = arith.constant 0 : index
    %c0_85 = arith.constant 0 : index
    %c0_86 = arith.constant 0 : index
    %132 = vector.load %arg8[%c0_83, %c0_84, %c0_85, %c0_86] : memref<1x3x24x32xf32, #tpu.memory_space<vmem>>, vector<1x1x24x32xf32>
    %133 = vector.shape_cast %132 : vector<1x1x24x32xf32> to vector<24x32xf32>
    %134 = arith.truncf %133 : vector<24x32xf32> to vector<24x32xbf16>
    %cst_87 = arith.constant dense<0.000000e+00> : vector<16x32xf32>
    %135 = tpu.matmul %7, %134, %cst_87 {dimension_numbers = #tpu.dot_dimension_numbers<[1], [0], [0], [1], [0, 0, 1, 1], [], []>} : vector<16x24xbf16>, vector<24x32xbf16>, vector<16x32xf32> -> vector<16x32xf32>
    %136 = arith.truncf %135 : vector<16x32xf32> to vector<16x32xbf16>
    %c0_88 = arith.constant 0 : index
    %c1_89 = arith.constant 1 : index
    %c0_90 = arith.constant 0 : index
    %c0_91 = arith.constant 0 : index
    %137 = vector.load %arg8[%c0_88, %c1_89, %c0_90, %c0_91] : memref<1x3x24x32xf32, #tpu.memory_space<vmem>>, vector<1x1x24x32xf32>
    %138 = vector.shape_cast %137 : vector<1x1x24x32xf32> to vector<24x32xf32>
    %139 = arith.truncf %138 : vector<24x32xf32> to vector<24x32xbf16>
    %cst_92 = arith.constant dense<0.000000e+00> : vector<16x32xf32>
    %140 = tpu.matmul %7, %139, %cst_92 {dimension_numbers = #tpu.dot_dimension_numbers<[1], [0], [0], [1], [0, 0, 1, 1], [], []>} : vector<16x24xbf16>, vector<24x32xbf16>, vector<16x32xf32> -> vector<16x32xf32>
    %141 = arith.truncf %140 : vector<16x32xf32> to vector<16x32xbf16>
    %c0_93 = arith.constant 0 : index
    %c2_94 = arith.constant 2 : index
    %c0_95 = arith.constant 0 : index
    %c0_96 = arith.constant 0 : index
    %142 = vector.load %arg8[%c0_93, %c2_94, %c0_95, %c0_96] : memref<1x3x24x32xf32, #tpu.memory_space<vmem>>, vector<1x1x24x32xf32>
    %143 = vector.shape_cast %142 : vector<1x1x24x32xf32> to vector<24x32xf32>
    %144 = arith.truncf %143 : vector<24x32xf32> to vector<24x32xbf16>
    %cst_97 = arith.constant dense<0.000000e+00> : vector<16x32xf32>
    %145 = tpu.matmul %7, %144, %cst_97 {dimension_numbers = #tpu.dot_dimension_numbers<[1], [0], [0], [1], [0, 0, 1, 1], [], []>} : vector<16x24xbf16>, vector<24x32xbf16>, vector<16x32xf32> -> vector<16x32xf32>
    %146 = arith.truncf %145 : vector<16x32xf32> to vector<16x32xbf16>
    %147 = tpu.concatenate %136, %141, %146 in 0 : vector<16x32xbf16>, vector<16x32xbf16>, vector<16x32xbf16> -> vector<48x32xbf16>
    %cst_98 = arith.constant dense<0.000000e+00> : vector<48x24xf32>
    %148 = tpu.matmul %147, %8, %cst_98 {dimension_numbers = #tpu.dot_dimension_numbers<[1], [0], [0], [1], [0, 0, 1, 1], [], []>} : vector<48x32xbf16>, vector<32x24xbf16>, vector<48x24xf32> -> vector<48x24xf32>
    %149 = vector.extract_strided_slice %148 {offsets = [0, 0], sizes = [16, 24], strides = [1, 1]} : vector<48x24xf32> to vector<16x24xf32>
    %150 = arith.index_cast %arg0 : i32 to index
    %c2_99 = arith.constant 2 : index
    %151 = memref.load %arg2[%150, %c2_99] : memref<2x6xf32, #tpu.memory_space<smem>>
    %152 = arith.extui %6 : i1 to i32
    %c0_i32_100 = arith.constant 0 : i32
    %153 = arith.cmpi ne, %152, %c0_i32_100 : i32
    scf.if %153 {
      %cst_111 = arith.constant 0.000000e+00 : f32
      %173 = vector.broadcast %cst_111 : f32 to vector<16x24xf32>
      %174 = arith.cmpf ogt, %149, %173 : vector<16x24xf32>
      %cst_112 = arith.constant 1.000000e+00 : f32
      %175 = vector.broadcast %cst_112 : f32 to vector<16x24xf32>
      %176 = arith.select %174, %149, %175 : vector<16x24xi1>, vector<16x24xf32>
      %177 = math.log %176 : vector<16x24xf32>
      %178 = vector.broadcast %1 : f32 to vector<16x24xf32>
      %179 = arith.mulf %178, %177 : vector<16x24xf32>
      %180 = math.exp %179 : vector<16x24xf32>
      %cst_113 = arith.constant 0.000000e+00 : f32
      %181 = vector.broadcast %cst_113 : f32 to vector<16x24xf32>
      %182 = arith.select %174, %180, %181 : vector<16x24xi1>, vector<16x24xf32>
      %183 = arith.mulf %3, %151 : f32
      %184 = vector.broadcast %183 : f32 to vector<16x24xf32>
      %185 = arith.mulf %182, %184 : vector<16x24xf32>
      %cst_114 = arith.constant 0.000000e+00 : f32
      %cst_115 = arith.constant 1.000000e+00 : f32
      %186 = vector.broadcast %cst_114 : f32 to vector<16x24xf32>
      %187 = arith.maximumf %186, %185 : vector<16x24xf32>
      %188 = vector.broadcast %cst_115 : f32 to vector<16x24xf32>
      %189 = arith.minimumf %188, %187 : vector<16x24xf32>
      %c0_116 = arith.constant 0 : index
      %c0_117 = arith.constant 0 : index
      %c0_118 = arith.constant 0 : index
      %c0_119 = arith.constant 0 : index
      %190 = vector.load %arg12[%c0_116, %c0_117, %c0_118, %c0_119] : memref<1x3x16x24xf32, #tpu.memory_space<vmem>>, vector<1x1x16x24xf32>
      %191 = vector.shape_cast %190 : vector<1x1x16x24xf32> to vector<16x24xf32>
      %192 = vector.shape_cast %189 : vector<16x24xf32> to vector<1x1x16x24xf32>
      tpu.vector_store %arg12[%c0_116, %c0_117, %c0_118, %c0_119], %192 {strides = array<i32>} : memref<1x3x16x24xf32, #tpu.memory_space<vmem>>, vector<1x1x16x24xf32>,
    } else {
    }
    %true_101 = arith.constant true
    %154 = arith.xori %6, %true_101 : i1
    %155 = arith.extui %154 : i1 to i32
    %c0_i32_102 = arith.constant 0 : i32
    %156 = arith.cmpi ne, %155, %c0_i32_102 : i32
    scf.if %156 {
      %c0_111 = arith.constant 0 : index
      %c0_112 = arith.constant 0 : index
      %c0_113 = arith.constant 0 : index
      %c0_114 = arith.constant 0 : index
      %173 = vector.load %arg12[%c0_111, %c0_112, %c0_113, %c0_114] : memref<1x3x16x24xf32, #tpu.memory_space<vmem>>, vector<1x1x16x24xf32>
      %174 = vector.shape_cast %173 : vector<1x1x16x24xf32> to vector<16x24xf32>
      %175 = vector.shape_cast %149 : vector<16x24xf32> to vector<1x1x16x24xf32>
      tpu.vector_store %arg12[%c0_111, %c0_112, %c0_113, %c0_114], %175 {strides = array<i32>} : memref<1x3x16x24xf32, #tpu.memory_space<vmem>>, vector<1x1x16x24xf32>,
    } else {
    }
    %157 = vector.extract_strided_slice %148 {offsets = [16, 0], sizes = [16, 24], strides = [1, 1]} : vector<48x24xf32> to vector<16x24xf32>
    %158 = arith.index_cast %arg0 : i32 to index
    %c3_103 = arith.constant 3 : index
    %159 = memref.load %arg2[%158, %c3_103] : memref<2x6xf32, #tpu.memory_space<smem>>
    %160 = arith.extui %6 : i1 to i32
    %c0_i32_104 = arith.constant 0 : i32
    %161 = arith.cmpi ne, %160, %c0_i32_104 : i32
    scf.if %161 {
      %cst_111 = arith.constant 0.000000e+00 : f32
      %173 = vector.broadcast %cst_111 : f32 to vector<16x24xf32>
      %174 = arith.cmpf ogt, %157, %173 : vector<16x24xf32>
      %cst_112 = arith.constant 1.000000e+00 : f32
      %175 = vector.broadcast %cst_112 : f32 to vector<16x24xf32>
      %176 = arith.select %174, %157, %175 : vector<16x24xi1>, vector<16x24xf32>
      %177 = math.log %176 : vector<16x24xf32>
      %178 = vector.broadcast %1 : f32 to vector<16x24xf32>
      %179 = arith.mulf %178, %177 : vector<16x24xf32>
      %180 = math.exp %179 : vector<16x24xf32>
      %cst_113 = arith.constant 0.000000e+00 : f32
      %181 = vector.broadcast %cst_113 : f32 to vector<16x24xf32>
      %182 = arith.select %174, %180, %181 : vector<16x24xi1>, vector<16x24xf32>
      %183 = arith.mulf %3, %159 : f32
      %184 = vector.broadcast %183 : f32 to vector<16x24xf32>
      %185 = arith.mulf %182, %184 : vector<16x24xf32>
      %cst_114 = arith.constant 0.000000e+00 : f32
      %cst_115 = arith.constant 1.000000e+00 : f32
      %186 = vector.broadcast %cst_114 : f32 to vector<16x24xf32>
      %187 = arith.maximumf %186, %185 : vector<16x24xf32>
      %188 = vector.broadcast %cst_115 : f32 to vector<16x24xf32>
      %189 = arith.minimumf %188, %187 : vector<16x24xf32>
      %c0_116 = arith.constant 0 : index
      %c1_117 = arith.constant 1 : index
      %c0_118 = arith.constant 0 : index
      %c0_119 = arith.constant 0 : index
      %190 = vector.load %arg12[%c0_116, %c1_117, %c0_118, %c0_119] : memref<1x3x16x24xf32, #tpu.memory_space<vmem>>, vector<1x1x16x24xf32>
      %191 = vector.shape_cast %190 : vector<1x1x16x24xf32> to vector<16x24xf32>
      %192 = vector.shape_cast %189 : vector<16x24xf32> to vector<1x1x16x24xf32>
      tpu.vector_store %arg12[%c0_116, %c1_117, %c0_118, %c0_119], %192 {strides = array<i32>} : memref<1x3x16x24xf32, #tpu.memory_space<vmem>>, vector<1x1x16x24xf32>,
    } else {
    }
    %true_105 = arith.constant true
    %162 = arith.xori %6, %true_105 : i1
    %163 = arith.extui %162 : i1 to i32
    %c0_i32_106 = arith.constant 0 : i32
    %164 = arith.cmpi ne, %163, %c0_i32_106 : i32
    scf.if %164 {
      %c0_111 = arith.constant 0 : index
      %c1_112 = arith.constant 1 : index
      %c0_113 = arith.constant 0 : index
      %c0_114 = arith.constant 0 : index
      %173 = vector.load %arg12[%c0_111, %c1_112, %c0_113, %c0_114] : memref<1x3x16x24xf32, #tpu.memory_space<vmem>>, vector<1x1x16x24xf32>
      %174 = vector.shape_cast %173 : vector<1x1x16x24xf32> to vector<16x24xf32>
      %175 = vector.shape_cast %157 : vector<16x24xf32> to vector<1x1x16x24xf32>
      tpu.vector_store %arg12[%c0_111, %c1_112, %c0_113, %c0_114], %175 {strides = array<i32>} : memref<1x3x16x24xf32, #tpu.memory_space<vmem>>, vector<1x1x16x24xf32>,
    } else {
    }
    %165 = vector.extract_strided_slice %148 {offsets = [32, 0], sizes = [16, 24], strides = [1, 1]} : vector<48x24xf32> to vector<16x24xf32>
    %166 = arith.index_cast %arg0 : i32 to index
    %c4_107 = arith.constant 4 : index
    %167 = memref.load %arg2[%166, %c4_107] : memref<2x6xf32, #tpu.memory_space<smem>>
    %168 = arith.extui %6 : i1 to i32
    %c0_i32_108 = arith.constant 0 : i32
    %169 = arith.cmpi ne, %168, %c0_i32_108 : i32
    scf.if %169 {
      %cst_111 = arith.constant 0.000000e+00 : f32
      %173 = vector.broadcast %cst_111 : f32 to vector<16x24xf32>
      %174 = arith.cmpf ogt, %165, %173 : vector<16x24xf32>
      %cst_112 = arith.constant 1.000000e+00 : f32
      %175 = vector.broadcast %cst_112 : f32 to vector<16x24xf32>
      %176 = arith.select %174, %165, %175 : vector<16x24xi1>, vector<16x24xf32>
      %177 = math.log %176 : vector<16x24xf32>
      %178 = vector.broadcast %1 : f32 to vector<16x24xf32>
      %179 = arith.mulf %178, %177 : vector<16x24xf32>
      %180 = math.exp %179 : vector<16x24xf32>
      %cst_113 = arith.constant 0.000000e+00 : f32
      %181 = vector.broadcast %cst_113 : f32 to vector<16x24xf32>
      %182 = arith.select %174, %180, %181 : vector<16x24xi1>, vector<16x24xf32>
      %183 = arith.mulf %3, %167 : f32
      %184 = vector.broadcast %183 : f32 to vector<16x24xf32>
      %185 = arith.mulf %182, %184 : vector<16x24xf32>
      %cst_114 = arith.constant 0.000000e+00 : f32
      %cst_115 = arith.constant 1.000000e+00 : f32
      %186 = vector.broadcast %cst_114 : f32 to vector<16x24xf32>
      %187 = arith.maximumf %186, %185 : vector<16x24xf32>
      %188 = vector.broadcast %cst_115 : f32 to vector<16x24xf32>
      %189 = arith.minimumf %188, %187 : vector<16x24xf32>
      %c0_116 = arith.constant 0 : index
      %c2_117 = arith.constant 2 : index
      %c0_118 = arith.constant 0 : index
      %c0_119 = arith.constant 0 : index
      %190 = vector.load %arg12[%c0_116, %c2_117, %c0_118, %c0_119] : memref<1x3x16x24xf32, #tpu.memory_space<vmem>>, vector<1x1x16x24xf32>
      %191 = vector.shape_cast %190 : vector<1x1x16x24xf32> to vector<16x24xf32>
      %192 = vector.shape_cast %189 : vector<16x24xf32> to vector<1x1x16x24xf32>
      tpu.vector_store %arg12[%c0_116, %c2_117, %c0_118, %c0_119], %192 {strides = array<i32>} : memref<1x3x16x24xf32, #tpu.memory_space<vmem>>, vector<1x1x16x24xf32>,
    } else {
    }
    %true_109 = arith.constant true
    %170 = arith.xori %6, %true_109 : i1
    %171 = arith.extui %170 : i1 to i32
    %c0_i32_110 = arith.constant 0 : i32
    %172 = arith.cmpi ne, %171, %c0_i32_110 : i32
    scf.if %172 {
      %c0_111 = arith.constant 0 : index
      %c2_112 = arith.constant 2 : index
      %c0_113 = arith.constant 0 : index
      %c0_114 = arith.constant 0 : index
      %173 = vector.load %arg12[%c0_111, %c2_112, %c0_113, %c0_114] : memref<1x3x16x24xf32, #tpu.memory_space<vmem>>, vector<1x1x16x24xf32>
      %174 = vector.shape_cast %173 : vector<1x1x16x24xf32> to vector<16x24xf32>
      %175 = vector.shape_cast %165 : vector<16x24xf32> to vector<1x1x16x24xf32>
      tpu.vector_store %arg12[%c0_111, %c2_112, %c0_113, %c0_114], %175 {strides = array<i32>} : memref<1x3x16x24xf32, #tpu.memory_space<vmem>>, vector<1x1x16x24xf32>,
    } else {
    }
    return
  }
  func.func @transform_0(%arg0: i32, %arg1: i32) -> (i32, i32) {
    %c0_i32 = arith.constant 0 : i32
    %c0_i32_0 = arith.constant 0 : i32
    %c0_i32_1 = arith.constant 0 : i32
    return %c0_i32, %c0_i32_0 : i32, i32
  }
  func.func @transform_1(%arg0: i32, %arg1: i32) -> (i32, i32) {
    %c0_i32 = arith.constant 0 : i32
    %c0_i32_0 = arith.constant 0 : i32
    %c0_i32_1 = arith.constant 0 : i32
    return %c0_i32, %c0_i32_0 : i32, i32
  }
  func.func @transform_2(%arg0: i32, %arg1: i32) -> (i32, i32) {
    %c0_i32 = arith.constant 0 : i32
    %c0_i32_0 = arith.constant 0 : i32
    %c0_i32_1 = arith.constant 0 : i32
    return %c0_i32, %c0_i32_0 : i32, i32
  }
  func.func @transform_3(%arg0: i32, %arg1: i32) -> (i32, i32, i32, i32) {
    %c0_i32 = arith.constant 0 : i32
    %c0_i32_0 = arith.constant 0 : i32
    %c0_i32_1 = arith.constant 0 : i32
    return %arg0, %arg1, %c0_i32, %c0_i32_0 : i32, i32, i32, i32
  }
  func.func @transform_4(%arg0: i32, %arg1: i32) -> (i32, i32, i32, i32) {
    %c0_i32 = arith.constant 0 : i32
    %c0_i32_0 = arith.constant 0 : i32
    %c0_i32_1 = arith.constant 0 : i32
    return %arg0, %arg1, %c0_i32, %c0_i32_0 : i32, i32, i32, i32
  }
  func.func @transform_5(%arg0: i32, %arg1: i32) -> (i32, i32, i32, i32) {
    %c0_i32 = arith.constant 0 : i32
    %c0_i32_0 = arith.constant 0 : i32
    %c0_i32_1 = arith.constant 0 : i32
    return %arg0, %arg1, %c0_i32, %c0_i32_0 : i32, i32, i32, i32
  }
  func.func @transform_6(%arg0: i32, %arg1: i32) -> (i32, i32, i32, i32) {
    %c0_i32 = arith.constant 0 : i32
    %c0_i32_0 = arith.constant 0 : i32
    %c0_i32_1 = arith.constant 0 : i32
    return %arg0, %arg1, %c0_i32, %c0_i32_0 : i32, i32, i32, i32
  }
  func.func @transform_7(%arg0: i32, %arg1: i32) -> (i32, i32, i32, i32) {
    %c0_i32 = arith.constant 0 : i32
    %c0_i32_0 = arith.constant 0 : i32
    %c0_i32_1 = arith.constant 0 : i32
    return %arg0, %arg1, %c0_i32, %c0_i32_0 : i32, i32, i32, i32
  }
  func.func @transform_8(%arg0: i32, %arg1: i32) -> (i32, i32, i32, i32) {
    %c0_i32 = arith.constant 0 : i32
    %c0_i32_0 = arith.constant 0 : i32
    %c0_i32_1 = arith.constant 0 : i32
    return %arg0, %arg1, %c0_i32, %c0_i32_0 : i32, i32, i32, i32
  }
  func.func @transform_9(%arg0: i32, %arg1: i32) -> (i32, i32, i32, i32) {
    %c0_i32 = arith.constant 0 : i32
    %c0_i32_0 = arith.constant 0 : i32
    %c0_i32_1 = arith.constant 0 : i32
    return %arg0, %arg1, %c0_i32, %c0_i32_0 : i32, i32, i32, i32
  }
  func.func @transform_10(%arg0: i32, %arg1: i32) -> (i32, i32, i32, i32) {
    %c0_i32 = arith.constant 0 : i32
    %c0_i32_0 = arith.constant 0 : i32
    %c0_i32_1 = arith.constant 0 : i32
    return %arg0, %arg1, %c0_i32, %c0_i32_0 : i32, i32, i32, i32
  }
}

</mosaic_0001>

<llo_original>
// kernel: augmentation_sceneflow_finetuning_forward.3
$region0: #{augmentation_sceneflow_finetuning_forward.3}
  #allocation0 [shape = 'u32[]', space=smem, size = 0x4, offset = 0x4, fixed_abs, tag = 'smem constant byte address 0x4 - core index']
  #allocation1 [shape = 'u32[144,128]{1,0:T(1,128)}', space=vmem, size = 0x12000, scoped, tag = 'internal scratch']
  %s0 = inlined_call_operand.vmem [shape: f32[2,6], index: 0, kind: input, shape index: {}]
  %s1 = inlined_call_operand.vmem [shape: bf16[16,24], index: 1, kind: input, shape index: {}]
  %s2 = inlined_call_operand.vmem [shape: bf16[32,24], index: 2, kind: input, shape index: {}]
  %s3 = inlined_call_operand.vmem [shape: f32[2,3,24,32], index: 3, kind: input, shape index: {}]
  %s4 = inlined_call_operand.vmem [shape: f32[2,3,24,32], index: 4, kind: input, shape index: {}]
  %s5 = inlined_call_operand.vmem [shape: f32[2,3,24,32], index: 5, kind: input, shape index: {}]
  %s6 = inlined_call_operand.vmem [shape: f32[2,3,24,32], index: 6, kind: input, shape index: {}]
  %s7 = inlined_call_operand.hbm [shape: f32[2,3,16,24], index: 7, kind: output, shape index: {0}]
  %s8 = inlined_call_operand.hbm [shape: f32[2,3,16,24], index: 8, kind: output, shape index: {1}]
  %s9 = inlined_call_operand.hbm [shape: f32[2,3,16,24], index: 9, kind: output, shape index: {2}]
  %s10 = inlined_call_operand.hbm [shape: f32[2,3,16,24], index: 10, kind: output, shape index: {3}]
  %11 = xla_tuple %s7, %s8, %s9, %s10
  %s12 = sld [smem:[#allocation0]]
  $region185: #{augmentation_sceneflow_finetuning_forward.3} parent=0
    _
  %s14 = ssub.s32 1, %s12
  %s15 = scalar_select 0, %s14, %s12
  $region1: #{augmentation_sceneflow_finetuning_forward.3} parent=0
    #allocation2 [shape = 'u8[1024]{0}', space=smem, size = 0x400, scoped, tag = 'input window, operand 0, single buffered']
    #allocation3 [shape = 's32[2]{0}', space=sflag, size = 0x8, scoped, tag = 'scoped memory for augmentation_sceneflow_finetuning_forward.3']
    #allocation4 [shape = 's32[2]{0}', space=sflag, size = 0x8, scoped, tag = 'scoped memory for augmentation_sceneflow_finetuning_forward.3']
    #allocation5 [shape = 'u8[49152]{0}', space=vmem, size = 0xc000, scoped, tag = 'output window, operand 0']
    #allocation6 [shape = 'u8[49152]{0}', space=vmem, size = 0xc000, scoped, tag = 'output window, operand 1']
    #allocation7 [shape = 's32[2]{0}', space=sflag, size = 0x8, scoped, tag = 'scoped memory for augmentation_sceneflow_finetuning_forward.3']
    #allocation8 [shape = 'u8[49152]{0}', space=vmem, size = 0xc000, scoped, tag = 'output window, operand 2']
    #allocation9 [shape = 'u8[49152]{0}', space=vmem, size = 0xc000, scoped, tag = 'output window, operand 3']
    #allocation10 [shape = 's32[2]{0}', space=sflag, size = 0x8, scoped, tag = 'scoped memory for augmentation_sceneflow_finetuning_forward.3']
    %16 = vsyncpa [#allocation4], 0
    %17 = vsyncpa [#allocation3], 0
    %s18 = scalar_lea.sflag [#allocation3], 1
    %19 = vsyncpa %s18, 0
    %20 = vsyncpa [#allocation7], 0
    %s21 = scalar_lea.sflag [#allocation7], 1
    %22 = vsyncpa %s21, 0
    %23 = vsyncpa [#allocation10], 0
    %s24 = scalar_lea.sflag [#allocation10], 1
    %25 = vsyncpa %s24, 0
    loop: start=0, step=1, limit=4
    $region2: #{augmentation_sceneflow_finetuning_forward.3} parent=1 // loop_pre_header
      _
    $region3: #{augmentation_sceneflow_finetuning_forward.3} parent=1 // loop_header
      %s27 = sphi 0, %s31
      %p28 = scmp.ge.s32.totalorder %s27, 4
      %s34 = sphi 0, %s46
      %s35 = sphi 0, %s42
      %s36 = sphi 0, %s34
      %s37 = sphi 0, %s35
      %s38 = sphi 0, %s36
      %s39 = sphi 0, %s37
      %s47 = sphi 0, %s47
      %s49 = sphi 0, %s47
      %s50 = sphi 0, %s49
      %s64 = sphi 0, %s50
      %s68 = sphi 0, %s68
      %s70 = sphi 0, %s68
      %s71 = sphi 0, %s70
      %s85 = sphi 0, %s71
      %s89 = sphi 0, %s89
      %s91 = sphi 0, %s89
      %s92 = sphi 0, %s91
      %s106 = sphi 0, %s92
      %s114 = sphi 0, %s116
      %s117 = sphi 0, %s114
      %s118 = sphi 0, %s117
      %s134 = sphi 0, %s118
      %s142 = sphi 0, %s144
      %s145 = sphi 0, %s142
      %s146 = sphi 0, %s145
      %s162 = sphi 0, %s146
      %s170 = sphi 0, %s172
      %s173 = sphi 0, %s170
      %s174 = sphi 0, %s173
      %s190 = sphi 0, %s174
      %s198 = sphi 0, %s200
      %s201 = sphi 0, %s198
      %s202 = sphi 0, %s201
      %s218 = sphi 0, %s202
      %s226 = sphi 0, %s228
      %s229 = sphi 0, %s226
      %s230 = sphi 0, %s229
      %s246 = sphi 0, %s230
      %s254 = sphi 0, %s256
      %s257 = sphi 0, %s254
      %s258 = sphi 0, %s257
      %s274 = sphi 0, %s258
      %s282 = sphi 0, %s284
      %s285 = sphi 0, %s282
      %s286 = sphi 0, %s285
      %s302 = sphi 0, %s286
      %s310 = sphi 0, %s312
      %s313 = sphi 0, %s310
      %s314 = sphi 0, %s313
      %s330 = sphi 0, %s314
    $region4: #{augmentation_sceneflow_finetuning_forward.3} parent=1 // loop_header_branch
      %30 = sbr.rel (%p28) target = $region8
    $region5: #{augmentation_sceneflow_finetuning_forward.3} parent=1 // loop_body
      %s32 = ssub.s32 %s27, 1
      %s33 = ssub.s32 %s27, 2
      %s40 = sadd.s32 1, %s35
      %p41 = scmp.ge.s32.totalorder %s40, 1
      %s42 = scalar_select %p41, 0, %s40
      %s43 = sadd.s32 1, %s34
      %s44 = scalar_select %p41, %s43, %s34
      %p45 = scmp.ge.s32.totalorder %s44, 2
      %s46 = scalar_select %p45, 0, %s44
      %s48 = sadd.s32 %s47, 1
      %p51 = scmp.eq.s32.totalorder %s27, 1
      %p52 = scmp.ne.s32.totalorder %s47, %s49
      %p53 = scmp.eq.s32.totalorder %s27, 0
      %p54 = por %p52, %p53
      %p55 = scmp.ne.s32.totalorder %s47, %s49
      %p56 = scmp.eq.s32.totalorder %s32, 1
      %p57 = por %p55, %p56
      %p58 = scmp.ne.s32.totalorder %s49, %s50
      %p59 = scmp.eq.s32.totalorder %s32, 0
      %p60 = por %p58, %p59
      %p61 = scmp.ne.s32.totalorder %s49, %s50
      %p62 = scmp.eq.s32.totalorder %s33, 1
      %p63 = por %p61, %p62
      %p65 = scmp.ne.s32.totalorder %s50, %s64
      %p66 = scmp.eq.s32.totalorder %s33, 0
      %p67 = por %p65, %p66
      %s69 = sadd.s32 %s68, 1
      %p72 = scmp.eq.s32.totalorder %s27, 1
      %p73 = scmp.ne.s32.totalorder %s68, %s70
      %p74 = scmp.eq.s32.totalorder %s27, 0
      %p75 = por %p73, %p74
      %p76 = scmp.ne.s32.totalorder %s68, %s70
      %p77 = scmp.eq.s32.totalorder %s32, 1
      %p78 = por %p76, %p77
      %p79 = scmp.ne.s32.totalorder %s70, %s71
      %p80 = scmp.eq.s32.totalorder %s32, 0
      %p81 = por %p79, %p80
      %p82 = scmp.ne.s32.totalorder %s70, %s71
      %p83 = scmp.eq.s32.totalorder %s33, 1
      %p84 = por %p82, %p83
      %p86 = scmp.ne.s32.totalorder %s71, %s85
      %p87 = scmp.eq.s32.totalorder %s33, 0
      %p88 = por %p86, %p87
      %s90 = sadd.s32 %s89, 1
      %p93 = scmp.eq.s32.totalorder %s27, 1
      %p94 = scmp.ne.s32.totalorder %s89, %s91
      %p95 = scmp.eq.s32.totalorder %s27, 0
      %p96 = por %p94, %p95
      %p97 = scmp.ne.s32.totalorder %s89, %s91
      %p98 = scmp.eq.s32.totalorder %s32, 1
      %p99 = por %p97, %p98
      %p100 = scmp.ne.s32.totalorder %s91, %s92
      %p101 = scmp.eq.s32.totalorder %s32, 0
      %p102 = por %p100, %p101
      %p103 = scmp.ne.s32.totalorder %s91, %s92
      %p104 = scmp.eq.s32.totalorder %s33, 1
      %p105 = por %p103, %p104
      %p107 = scmp.ne.s32.totalorder %s92, %s106
      %p108 = scmp.eq.s32.totalorder %s33, 0
      %p109 = por %p107, %p108
      %s110 = ssub.s32 %s34, %s46
      %s111 = ssub.s32 %s35, %s42
      %s112 = sor.u32 %s110, %s111
      %p113 = scmp.eq.s32.totalorder %s112, 0
      %s115 = sadd.s32 %s114, 1
      %s116 = scalar_select %p113, %s114, %s115
      %p119 = pneg %p113
      %p120 = scmp.eq.s32.totalorder %s27, 1
      %p121 = por %p119, %p120
      %p122 = scmp.ne.s32.totalorder %s114, %s117
      %p123 = scmp.eq.s32.totalorder %s27, 0
      %p124 = por %p122, %p123
      %p125 = scmp.ne.s32.totalorder %s114, %s117
      %p126 = scmp.eq.s32.totalorder %s32, 1
      %p127 = por %p125, %p126
      %p128 = scmp.ne.s32.totalorder %s117, %s118
      %p129 = scmp.eq.s32.totalorder %s32, 0
      %p130 = por %p128, %p129
      %p131 = scmp.ne.s32.totalorder %s117, %s118
      %p132 = scmp.eq.s32.totalorder %s33, 1
      %p133 = por %p131, %p132
      %p135 = scmp.ne.s32.totalorder %s118, %s134
      %p136 = scmp.eq.s32.totalorder %s33, 0
      %p137 = por %p135, %p136
      %s138 = ssub.s32 %s34, %s46
      %s139 = ssub.s32 %s35, %s42
      %s140 = sor.u32 %s138, %s139
      %p141 = scmp.eq.s32.totalorder %s140, 0
      %s143 = sadd.s32 %s142, 1
      %s144 = scalar_select %p141, %s142, %s143
      %p147 = pneg %p141
      %p148 = scmp.eq.s32.totalorder %s27, 1
      %p149 = por %p147, %p148
      %p150 = scmp.ne.s32.totalorder %s142, %s145
      %p151 = scmp.eq.s32.totalorder %s27, 0
      %p152 = por %p150, %p151
      %p153 = scmp.ne.s32.totalorder %s142, %s145
      %p154 = scmp.eq.s32.totalorder %s32, 1
      %p155 = por %p153, %p154
      %p156 = scmp.ne.s32.totalorder %s145, %s146
      %p157 = scmp.eq.s32.totalorder %s32, 0
      %p158 = por %p156, %p157
      %p159 = scmp.ne.s32.totalorder %s145, %s146
      %p160 = scmp.eq.s32.totalorder %s33, 1
      %p161 = por %p159, %p160
      %p163 = scmp.ne.s32.totalorder %s146, %s162
      %p164 = scmp.eq.s32.totalorder %s33, 0
      %p165 = por %p163, %p164
      %s166 = ssub.s32 %s34, %s46
      %s167 = ssub.s32 %s35, %s42
      %s168 = sor.u32 %s166, %s167
      %p169 = scmp.eq.s32.totalorder %s168, 0
      %s171 = sadd.s32 %s170, 1
      %s172 = scalar_select %p169, %s170, %s171
      %p175 = pneg %p169
      %p176 = scmp.eq.s32.totalorder %s27, 1
      %p177 = por %p175, %p176
      %p178 = scmp.ne.s32.totalorder %s170, %s173
      %p179 = scmp.eq.s32.totalorder %s27, 0
      %p180 = por %p178, %p179
      %p181 = scmp.ne.s32.totalorder %s170, %s173
      %p182 = scmp.eq.s32.totalorder %s32, 1
      %p183 = por %p181, %p182
      %p184 = scmp.ne.s32.totalorder %s173, %s174
      %p185 = scmp.eq.s32.totalorder %s32, 0
      %p186 = por %p184, %p185
      %p187 = scmp.ne.s32.totalorder %s173, %s174
      %p188 = scmp.eq.s32.totalorder %s33, 1
      %p189 = por %p187, %p188
      %p191 = scmp.ne.s32.totalorder %s174, %s190
      %p192 = scmp.eq.s32.totalorder %s33, 0
      %p193 = por %p191, %p192
      %s194 = ssub.s32 %s34, %s46
      %s195 = ssub.s32 %s35, %s42
      %s196 = sor.u32 %s194, %s195
      %p197 = scmp.eq.s32.totalorder %s196, 0
      %s199 = sadd.s32 %s198, 1
      %s200 = scalar_select %p197, %s198, %s199
      %p203 = pneg %p197
      %p204 = scmp.eq.s32.totalorder %s27, 1
      %p205 = por %p203, %p204
      %p206 = scmp.ne.s32.totalorder %s198, %s201
      %p207 = scmp.eq.s32.totalorder %s27, 0
      %p208 = por %p206, %p207
      %p209 = scmp.ne.s32.totalorder %s198, %s201
      %p210 = scmp.eq.s32.totalorder %s32, 1
      %p211 = por %p209, %p210
      %p212 = scmp.ne.s32.totalorder %s201, %s202
      %p213 = scmp.eq.s32.totalorder %s32, 0
      %p214 = por %p212, %p213
      %p215 = scmp.ne.s32.totalorder %s201, %s202
      %p216 = scmp.eq.s32.totalorder %s33, 1
      %p217 = por %p215, %p216
      %p219 = scmp.ne.s32.totalorder %s202, %s218
      %p220 = scmp.eq.s32.totalorder %s33, 0
      %p221 = por %p219, %p220
      %s222 = ssub.s32 %s34, %s46
      %s223 = ssub.s32 %s35, %s42
      %s224 = sor.u32 %s222, %s223
      %p225 = scmp.eq.s32.totalorder %s224, 0
      %s227 = sadd.s32 %s226, 1
      %s228 = scalar_select %p225, %s226, %s227
      %p231 = pneg %p225
      %p232 = scmp.eq.s32.totalorder %s27, 1
      %p233 = por %p231, %p232
      %p234 = scmp.ne.s32.totalorder %s226, %s229
      %p235 = scmp.eq.s32.totalorder %s27, 0
      %p236 = por %p234, %p235
      %p237 = scmp.ne.s32.totalorder %s226, %s229
      %p238 = scmp.eq.s32.totalorder %s32, 1
      %p239 = por %p237, %p238
      %p240 = scmp.ne.s32.totalorder %s229, %s230
      %p241 = scmp.eq.s32.totalorder %s32, 0
      %p242 = por %p240, %p241
      %p243 = scmp.ne.s32.totalorder %s229, %s230
      %p244 = scmp.eq.s32.totalorder %s33, 1
      %p245 = por %p243, %p244
      %p247 = scmp.ne.s32.totalorder %s230, %s246
      %p248 = scmp.eq.s32.totalorder %s33, 0
      %p249 = por %p247, %p248
      %s250 = ssub.s32 %s34, %s46
      %s251 = ssub.s32 %s35, %s42
      %s252 = sor.u32 %s250, %s251
      %p253 = scmp.eq.s32.totalorder %s252, 0
      %s255 = sadd.s32 %s254, 1
      %s256 = scalar_select %p253, %s254, %s255
      %p259 = pneg %p253
      %p260 = scmp.eq.s32.totalorder %s27, 1
      %p261 = por %p259, %p260
      %p262 = scmp.ne.s32.totalorder %s254, %s257
      %p263 = scmp.eq.s32.totalorder %s27, 0
      %p264 = por %p262, %p263
      %p265 = scmp.ne.s32.totalorder %s254, %s257
      %p266 = scmp.eq.s32.totalorder %s32, 1
      %p267 = por %p265, %p266
      %p268 = scmp.ne.s32.totalorder %s257, %s258
      %p269 = scmp.eq.s32.totalorder %s32, 0
      %p270 = por %p268, %p269
      %p271 = scmp.ne.s32.totalorder %s257, %s258
      %p272 = scmp.eq.s32.totalorder %s33, 1
      %p273 = por %p271, %p272
      %p275 = scmp.ne.s32.totalorder %s258, %s274
      %p276 = scmp.eq.s32.totalorder %s33, 0
      %p277 = por %p275, %p276
      %s278 = ssub.s32 %s34, %s46
      %s279 = ssub.s32 %s35, %s42
      %s280 = sor.u32 %s278, %s279
      %p281 = scmp.eq.s32.totalorder %s280, 0
      %s283 = sadd.s32 %s282, 1
      %s284 = scalar_select %p281, %s282, %s283
      %p287 = pneg %p281
      %p288 = scmp.eq.s32.totalorder %s27, 1
      %p289 = por %p287, %p288
      %p290 = scmp.ne.s32.totalorder %s282, %s285
      %p291 = scmp.eq.s32.totalorder %s27, 0
      %p292 = por %p290, %p291
      %p293 = scmp.ne.s32.totalorder %s282, %s285
      %p294 = scmp.eq.s32.totalorder %s32, 1
      %p295 = por %p293, %p294
      %p296 = scmp.ne.s32.totalorder %s285, %s286
      %p297 = scmp.eq.s32.totalorder %s32, 0
      %p298 = por %p296, %p297
      %p299 = scmp.ne.s32.totalorder %s285, %s286
      %p300 = scmp.eq.s32.totalorder %s33, 1
      %p301 = por %p299, %p300
      %p303 = scmp.ne.s32.totalorder %s286, %s302
      %p304 = scmp.eq.s32.totalorder %s33, 0
      %p305 = por %p303, %p304
      %s306 = ssub.s32 %s34, %s46
      %s307 = ssub.s32 %s35, %s42
      %s308 = sor.u32 %s306, %s307
      %p309 = scmp.eq.s32.totalorder %s308, 0
      %s311 = sadd.s32 %s310, 1
      %s312 = scalar_select %p309, %s310, %s311
      %p315 = pneg %p309
      %p316 = scmp.eq.s32.totalorder %s27, 1
      %p317 = por %p315, %p316
      %p318 = scmp.ne.s32.totalorder %s310, %s313
      %p319 = scmp.eq.s32.totalorder %s27, 0
      %p320 = por %p318, %p319
      %p321 = scmp.ne.s32.totalorder %s310, %s313
      %p322 = scmp.eq.s32.totalorder %s32, 1
      %p323 = por %p321, %p322
      %p324 = scmp.ne.s32.totalorder %s313, %s314
      %p325 = scmp.eq.s32.totalorder %s32, 0
      %p326 = por %p324, %p325
      %p327 = scmp.ne.s32.totalorder %s313, %s314
      %p328 = scmp.eq.s32.totalorder %s33, 1
      %p329 = por %p327, %p328
      %p331 = scmp.ne.s32.totalorder %s314, %s330
      %p332 = scmp.eq.s32.totalorder %s33, 0
      %p333 = por %p331, %p332
      %p334 = scmp.le.s32.totalorder 1, %s27
      %p335 = scmp.lt.s32.totalorder %s27, 3
      %p336 = pnand %p334, %p335
      %p337 = pneg %p336
      // Predicated region
      $region9: #{augmentation_sceneflow_finetuning_forward.3} parent=5 // pred_check
        _
      $region10: #{augmentation_sceneflow_finetuning_forward.3} parent=5 // pred_check_branch
        %339 = sbr.rel (%p336) target = $region12
      $region11: #{augmentation_sceneflow_finetuning_forward.3} parent=5 // pred_region
        %s340 = ssub.s32 %s27, 1
        // Predicated region
        $region13: #{augmentation_sceneflow_finetuning_forward.3} parent=11 // pred_check
          %p341 = pneg %p60
        $region14: #{augmentation_sceneflow_finetuning_forward.3} parent=11 // pred_check_branch
          %343 = sbr.rel (%p341) target = $region16
        $region15: #{augmentation_sceneflow_finetuning_forward.3} parent=11 // pred_region
          %s345 = ssub.s32 32, 32
          %346 = vsyncadd [#allocation4], %s345
          %s348 = sshll.u32 %s0, 4
          %s349 = int_to_ptr.vmem [resolvable:$true] %s348
          %351 = dma.vmem_to_smem %s349, 32, [#allocation2], [#allocation4]
        $region16: #{augmentation_sceneflow_finetuning_forward.3} parent=11 // pred_fallthru
          _
        // Predicated region
        $region17: #{augmentation_sceneflow_finetuning_forward.3} parent=11 // pred_check
          %p352 = pneg %p81
        $region18: #{augmentation_sceneflow_finetuning_forward.3} parent=11 // pred_check_branch
          %354 = sbr.rel (%p352) target = $region20
        $region19: #{augmentation_sceneflow_finetuning_forward.3} parent=11 // pred_region
          _
        $region20: #{augmentation_sceneflow_finetuning_forward.3} parent=11 // pred_fallthru
          _
        // Predicated region
        $region21: #{augmentation_sceneflow_finetuning_forward.3} parent=11 // pred_check
          %p355 = pneg %p102
        $region22: #{augmentation_sceneflow_finetuning_forward.3} parent=11 // pred_check_branch
          %357 = sbr.rel (%p355) target = $region24
        $region23: #{augmentation_sceneflow_finetuning_forward.3} parent=11 // pred_region
          _
        $region24: #{augmentation_sceneflow_finetuning_forward.3} parent=11 // pred_fallthru
          _
      $region12: #{augmentation_sceneflow_finetuning_forward.3} parent=5 // pred_fallthru
        _
      %p358 = scmp.lt.s32.totalorder %s27, 2
      // Predicated region
      $region25: #{augmentation_sceneflow_finetuning_forward.3} parent=5 // pred_check
        %p359 = pneg %p358
      $region26: #{augmentation_sceneflow_finetuning_forward.3} parent=5 // pred_check_branch
        %361 = sbr.rel (%p359) target = $region28
      $region27: #{augmentation_sceneflow_finetuning_forward.3} parent=5 // pred_region
        // Predicated region
        $region29: #{augmentation_sceneflow_finetuning_forward.3} parent=27 // pred_check
          %p362 = pneg %p124
        $region30: #{augmentation_sceneflow_finetuning_forward.3} parent=27 // pred_check_branch
          %364 = sbr.rel (%p362) target = $region32
        $region31: #{augmentation_sceneflow_finetuning_forward.3} parent=27 // pred_region
          %s365 = smul.u32 3, %s35
          %p366 = scmp.lt.s32.totalorder %s34, 1
          %s367 = scalar_select %p366, %s34, 1
          %p368 = scmp.lt.s32.totalorder %s365, 2
          %s369 = scalar_select %p368, %s365, 2
          %s370 = smul.addr %s369, 3
          %s371 = smul.addr %s367, 9
          %s372 = sadd.s32 %s370, %s371
          %s373 = smul.addr %s372, 8
          %s374 = scalar_lea.vmem %s3, %s373
          %s375 = smul.u32 3, %s35
        $region32: #{augmentation_sceneflow_finetuning_forward.3} parent=27 // pred_fallthru
          _
        // Predicated region
        $region33: #{augmentation_sceneflow_finetuning_forward.3} parent=27 // pred_check
          %p376 = pneg %p152
        $region34: #{augmentation_sceneflow_finetuning_forward.3} parent=27 // pred_check_branch
          %378 = sbr.rel (%p376) target = $region36
        $region35: #{augmentation_sceneflow_finetuning_forward.3} parent=27 // pred_region
          %s379 = smul.u32 3, %s35
          %p380 = scmp.lt.s32.totalorder %s34, 1
          %s381 = scalar_select %p380, %s34, 1
          %p382 = scmp.lt.s32.totalorder %s379, 2
          %s383 = scalar_select %p382, %s379, 2
          %s384 = smul.addr %s383, 3
          %s385 = smul.addr %s381, 9
          %s386 = sadd.s32 %s384, %s385
          %s387 = smul.addr %s386, 8
          %s388 = scalar_lea.vmem %s4, %s387
          %s389 = smul.u32 3, %s35
        $region36: #{augmentation_sceneflow_finetuning_forward.3} parent=27 // pred_fallthru
          _
        // Predicated region
        $region37: #{augmentation_sceneflow_finetuning_forward.3} parent=27 // pred_check
          %p390 = pneg %p180
        $region38: #{augmentation_sceneflow_finetuning_forward.3} parent=27 // pred_check_branch
          %392 = sbr.rel (%p390) target = $region40
        $region39: #{augmentation_sceneflow_finetuning_forward.3} parent=27 // pred_region
          %s393 = smul.u32 3, %s35
          %p394 = scmp.lt.s32.totalorder %s34, 1
          %s395 = scalar_select %p394, %s34, 1
          %p396 = scmp.lt.s32.totalorder %s393, 2
          %s397 = scalar_select %p396, %s393, 2
          %s398 = smul.addr %s397, 3
          %s399 = smul.addr %s395, 9
          %s400 = sadd.s32 %s398, %s399
          %s401 = smul.addr %s400, 8
          %s402 = scalar_lea.vmem %s5, %s401
          %s403 = smul.u32 3, %s35
        $region40: #{augmentation_sceneflow_finetuning_forward.3} parent=27 // pred_fallthru
          _
        // Predicated region
        $region41: #{augmentation_sceneflow_finetuning_forward.3} parent=27 // pred_check
          %p404 = pneg %p208
        $region42: #{augmentation_sceneflow_finetuning_forward.3} parent=27 // pred_check_branch
          %406 = sbr.rel (%p404) target = $region44
        $region43: #{augmentation_sceneflow_finetuning_forward.3} parent=27 // pred_region
          %s407 = smul.u32 3, %s35
          %p408 = scmp.lt.s32.totalorder %s34, 1
          %s409 = scalar_select %p408, %s34, 1
          %p410 = scmp.lt.s32.totalorder %s407, 2
          %s411 = scalar_select %p410, %s407, 2
          %s412 = smul.addr %s411, 3
          %s413 = smul.addr %s409, 9
          %s414 = sadd.s32 %s412, %s413
          %s415 = smul.addr %s414, 8
          %s416 = scalar_lea.vmem %s6, %s415
          %s417 = smul.u32 3, %s35
        $region44: #{augmentation_sceneflow_finetuning_forward.3} parent=27 // pred_fallthru
          _
      $region28: #{augmentation_sceneflow_finetuning_forward.3} parent=5 // pred_fallthru
        _
      %p418 = scmp.le.s32.totalorder 1, %s27
      %p419 = scmp.lt.s32.totalorder %s27, 3
      %p420 = pnand %p418, %p419
      %p421 = pneg %p420
      // Predicated region
      $region45: #{augmentation_sceneflow_finetuning_forward.3} parent=5 // pred_check
        _
      $region46: #{augmentation_sceneflow_finetuning_forward.3} parent=5 // pred_check_branch
        %423 = sbr.rel (%p420) target = $region48
      $region47: #{augmentation_sceneflow_finetuning_forward.3} parent=5 // pred_region
        %s424 = ssub.s32 %s27, 1
        // Predicated region
        $region49: #{augmentation_sceneflow_finetuning_forward.3} parent=47 // pred_check
          %p425 = pneg %p60
        $region50: #{augmentation_sceneflow_finetuning_forward.3} parent=47 // pred_check_branch
          %427 = sbr.rel (%p425) target = $region52
        $region51: #{augmentation_sceneflow_finetuning_forward.3} parent=47 // pred_region
          %428 = dma.done [#allocation4], 32
        $region52: #{augmentation_sceneflow_finetuning_forward.3} parent=47 // pred_fallthru
          _
        %429 = sfence
        %p430 = pneg %p60
        %p431 = pneg %p57
        %p432 = pneg %p81
        %p433 = pneg %p78
        %p434 = pneg %p102
        %p435 = pneg %p99
        %s436 = smul.u32 3, %s37
        %p437 = scmp.lt.s32.totalorder %s36, 1
        %s438 = scalar_select %p437, %s36, 1
        %p439 = scmp.lt.s32.totalorder %s436, 2
        %s440 = scalar_select %p439, %s436, 2
        %s441 = smul.addr %s440, 3
        %s442 = smul.addr %s438, 9
        %s443 = sadd.s32 %s441, %s442
        %s444 = smul.addr %s443, 8
        %s445 = scalar_lea.vmem %s3, %s444
        %p446 = pneg %p130
        %p447 = pneg %p127
        %s448 = smul.u32 3, %s37
        %p449 = scmp.lt.s32.totalorder %s36, 1
        %s450 = scalar_select %p449, %s36, 1
        %p451 = scmp.lt.s32.totalorder %s448, 2
        %s452 = scalar_select %p451, %s448, 2
        %s453 = smul.addr %s452, 3
        %s454 = smul.addr %s450, 9
        %s455 = sadd.s32 %s453, %s454
        %s456 = smul.addr %s455, 8
        %s457 = scalar_lea.vmem %s4, %s456
        %p458 = pneg %p158
        %p459 = pneg %p155
        %s460 = smul.u32 3, %s37
        %p461 = scmp.lt.s32.totalorder %s36, 1
        %s462 = scalar_select %p461, %s36, 1
        %p463 = scmp.lt.s32.totalorder %s460, 2
        %s464 = scalar_select %p463, %s460, 2
        %s465 = smul.addr %s464, 3
        %s466 = smul.addr %s462, 9
        %s467 = sadd.s32 %s465, %s466
        %s468 = smul.addr %s467, 8
        %s469 = scalar_lea.vmem %s5, %s468
        %p470 = pneg %p186
        %p471 = pneg %p183
        %s472 = smul.u32 3, %s37
        %p473 = scmp.lt.s32.totalorder %s36, 1
        %s474 = scalar_select %p473, %s36, 1
        %p475 = scmp.lt.s32.totalorder %s472, 2
        %s476 = scalar_select %p475, %s472, 2
        %s477 = smul.addr %s476, 3
        %s478 = smul.addr %s474, 9
        %s479 = sadd.s32 %s477, %s478
        %s480 = smul.addr %s479, 8
        %s481 = scalar_lea.vmem %s6, %s480
        %p482 = pneg %p214
        %p483 = pneg %p211
        %p484 = pneg %p242
        %p485 = pneg %p239
        %s486 = sand.u32 %s229, 1
        %s487 = scalar_lea.sflag [#allocation3], %s486
        %s488 = sand.u32 %s229, 1
        %s489 = smul.addr %s488, 48
        %s490 = scalar_lea.vmem [#allocation5], %s489
        %p491 = pneg %p270
        %p492 = pneg %p267
        %s493 = sand.u32 %s32, 1
        %s494 = scalar_lea.sflag [#allocation7], %s493
        %s495 = sand.u32 %s257, 1
        %s496 = smul.addr %s495, 48
        %s497 = scalar_lea.vmem [#allocation6], %s496
        %p498 = pneg %p298
        %p499 = pneg %p295
        %s500 = sand.u32 %s32, 1
        %s501 = scalar_lea.sflag [#allocation7], %s500
        %s502 = sand.u32 %s285, 1
        %s503 = smul.addr %s502, 48
        %s504 = scalar_lea.vmem [#allocation8], %s503
        %p505 = pneg %p326
        %p506 = pneg %p323
        %s507 = sand.u32 %s313, 1
        %s508 = scalar_lea.sflag [#allocation10], %s507
        %s509 = sand.u32 %s313, 1
        %s510 = smul.addr %s509, 48
        %s511 = scalar_lea.vmem [#allocation9], %s510
        %s512 = smul.u32 3, %s37
        %p513 = scmp.lt.s32.totalorder %s36, 1
        %s514 = scalar_select %p513, %s36, 1
        %p515 = scmp.lt.s32.totalorder %s512, 2
        %s516 = scalar_select %p515, %s512, 2
        %s517 = smul.addr %s516, 3
        %s518 = smul.addr %s514, 9
        %s519 = sadd.s32 %s517, %s518
        %s520 = smul.addr %s519, 8
        %s521 = scalar_lea.vmem %s3, %s520
        %s522 = smul.u32 3, %s37
        %s523 = smul.u32 3, %s37
        %p524 = scmp.lt.s32.totalorder %s36, 1
        %s525 = scalar_select %p524, %s36, 1
        %p526 = scmp.lt.s32.totalorder %s523, 2
        %s527 = scalar_select %p526, %s523, 2
        %s528 = smul.addr %s527, 3
        %s529 = smul.addr %s525, 9
        %s530 = sadd.s32 %s528, %s529
        %s531 = smul.addr %s530, 8
        %s532 = scalar_lea.vmem %s4, %s531
        %s533 = smul.u32 3, %s37
        %s534 = smul.u32 3, %s37
        %p535 = scmp.lt.s32.totalorder %s36, 1
        %s536 = scalar_select %p535, %s36, 1
        %p537 = scmp.lt.s32.totalorder %s534, 2
        %s538 = scalar_select %p537, %s534, 2
        %s539 = smul.addr %s538, 3
        %s540 = smul.addr %s536, 9
        %s541 = sadd.s32 %s539, %s540
        %s542 = smul.addr %s541, 8
        %s543 = scalar_lea.vmem %s5, %s542
        %s544 = smul.u32 3, %s37
        %s545 = smul.u32 3, %s37
        %p546 = scmp.lt.s32.totalorder %s36, 1
        %s547 = scalar_select %p546, %s36, 1
        %p548 = scmp.lt.s32.totalorder %s545, 2
        %s549 = scalar_select %p548, %s545, 2
        %s550 = smul.addr %s549, 3
        %s551 = smul.addr %s547, 9
        %s552 = sadd.s32 %s550, %s551
        %s553 = smul.addr %s552, 8
        %s554 = scalar_lea.vmem %s6, %s553
        %s555 = smul.u32 3, %s37
        %s556 = smul.u32 3, %s37
        %s557 = smul.u32 3, %s37
        %s558 = smul.u32 3, %s37
        %s559 = smul.u32 3, %s37
        %s561 = smul.u32 %s36, 128
        %s562 = sld [smem:[#allocation2 + %s561]]
        %s563 = sadd.s32 %s561, 1
        %s564 = sld [smem:[#allocation2 + %s563]]
        %s565 = sadd.s32 %s561, 5
        %s566 = sld [smem:[#allocation2 + %s565]]
        %p567 = scmp.gt.f32.partialorder %s566, 0.5
        %v568 = vld [vmem:[%s1] sm:$0xf]
        %v569 = vld [vmem:[%s1 + $0x4] sm:$0xf]
        %v570 = vld [vmem:[%s2] sm:$0xf]
        %v571 = vld [vmem:[%s2 + $0x4] sm:$0xf]
        %v572 = vld [vmem:[%s2 + $0x8] sm:$0xf]
        %v573 = vld [vmem:[%s2 + $0xc] sm:$0xf]
        %v574 = vld [vmem:[%s521] sm:$0xff]
        %v575 = vld [vmem:[%s521 + $0x8] sm:$0xff]
        %v576 = vld [vmem:[%s521 + $0x10] sm:$0xff]
        %v577 = vpack.c.bf16 %v575, %v574
        %v578 = vpack.c.bf16 %v576, %v576
        %v581 = vunpack.c.l.b16 %v568
        %v582 = vunpack.c.l.b16 %v569
        %v583 = vpack.c.b16 %v582, %v581
        %vm584 = vcmask 195584
        %v586 = vsel %vm584, %v583, 0
        %vm588 = vcmask 1043456
        %v590 = vsel %vm588, %v578, 0
        %592 = vmatprep.subr.bf16.mxu0 0
        %593 = vmatpush1.bf16.msra.mxu0 0
        %594 = vmatprep.subr.bf16.mxu0 0
        %595 = vmatpush1.bf16.msra.mxu0 0
        %596 = vmatprep.subr.bf16.mxu0 0
        %597 = vmatpush1.bf16.msra.mxu0 0
        %598 = vmatprep.subr.bf16.mxu0 0
        %599 = vmatpush1.bf16.msra.mxu0 0
        %600 = vmatprep.subr.bf16.mxu0 0
        %601 = vmatpush1.bf16.msra.mxu0 0
        %602 = vmatprep.subr.bf16.mxu0 0
        %603 = vmatpush1.bf16.msra.mxu0 0
        %604 = vmatprep.subr.bf16.mxu0 0
        %605 = vmatpush1.bf16.msra.mxu0 %v590
        %606 = vmatprep.subr.bf16.mxu0 0
        %607 = vmatpush1.bf16.msra.mxu0 %v577
        %608 = vmatprep.subr.bf16.mxu0 0
        %609 = vmatpush2.bf16.msra.mxu0 0
        %610 = vmatprep.subr.bf16.mxu0 0
        %611 = vmatpush2.bf16.msra.mxu0 0
        %612 = vmatprep.subr.bf16.mxu0 0
        %613 = vmatpush2.bf16.msra.mxu0 0
        %614 = vmatprep.subr.bf16.mxu0 0
        %615 = vmatpush2.bf16.msra.mxu0 0
        %616 = vmatprep.subr.bf16.mxu0 0
        %617 = vmatpush2.bf16.msra.mxu0 0
        %618 = vmatprep.subr.bf16.mxu0 0
        %619 = vmatpush2.bf16.msra.mxu0 0
        %620 = vmatprep.subr.bf16.mxu0 0
        %621 = vmatpush2.bf16.msra.mxu0 0
        %622 = vmatprep.subr.bf16.mxu0 0
        %623 = vmatpush2.bf16.msra.mxu0 0
        %624 = vmatprep.mubr.bf16.mxu0 0
        %625 = vmatmul.mubr.bf16.gmra.mxu0 %v586
        %v626 = vpop.f32.mrf.mxu0
        %v627 = vadd.f32 0.0, %v626
        %v628 = vpop.f32.mrf.mxu0
        %v629 = vpop.f32.mrf.mxu0
        %v630 = vadd.f32 0.0, %v629
        %v631 = vpop.f32.mrf.mxu0
        %632 = vdwg.mxu0
        %v633 = vpack.c.bf16 %v630, %v627
        %s634 = scalar_lea.vmem %s521, 24
        %v635 = vld [vmem:[%s634] sm:$0xff]
        %v636 = vld [vmem:[%s634 + $0x8] sm:$0xff]
        %v637 = vld [vmem:[%s634 + $0x10] sm:$0xff]
        %v638 = vpack.c.bf16 %v636, %v635
        %v639 = vpack.c.bf16 %v637, %v637
        %v641 = vsel %vm588, %v639, 0
        %643 = vmatprep.subr.bf16.mxu0 0
        %644 = vmatpush1.bf16.msra.mxu0 0
        %645 = vmatprep.subr.bf16.mxu0 0
        %646 = vmatpush1.bf16.msra.mxu0 0
        %647 = vmatprep.subr.bf16.mxu0 0
        %648 = vmatpush1.bf16.msra.mxu0 0
        %649 = vmatprep.subr.bf16.mxu0 0
        %650 = vmatpush1.bf16.msra.mxu0 0
        %651 = vmatprep.subr.bf16.mxu0 0
        %652 = vmatpush1.bf16.msra.mxu0 0
        %653 = vmatprep.subr.bf16.mxu0 0
        %654 = vmatpush1.bf16.msra.mxu0 0
        %655 = vmatprep.subr.bf16.mxu0 0
        %656 = vmatpush1.bf16.msra.mxu0 %v641
        %657 = vmatprep.subr.bf16.mxu0 0
        %658 = vmatpush1.bf16.msra.mxu0 %v638
        %659 = vmatprep.subr.bf16.mxu0 0
        %660 = vmatpush2.bf16.msra.mxu0 0
        %661 = vmatprep.subr.bf16.mxu0 0
        %662 = vmatpush2.bf16.msra.mxu0 0
        %663 = vmatprep.subr.bf16.mxu0 0
        %664 = vmatpush2.bf16.msra.mxu0 0
        %665 = vmatprep.subr.bf16.mxu0 0
        %666 = vmatpush2.bf16.msra.mxu0 0
        %667 = vmatprep.subr.bf16.mxu0 0
        %668 = vmatpush2.bf16.msra.mxu0 0
        %669 = vmatprep.subr.bf16.mxu0 0
        %670 = vmatpush2.bf16.msra.mxu0 0
        %671 = vmatprep.subr.bf16.mxu0 0
        %672 = vmatpush2.bf16.msra.mxu0 0
        %673 = vmatprep.subr.bf16.mxu0 0
        %674 = vmatpush2.bf16.msra.mxu0 0
        %675 = vmatprep.mubr.bf16.mxu0 0
        %676 = vmatmul.mubr.bf16.gmra.mxu0 %v586
        %v677 = vpop.f32.mrf.mxu0
        %v678 = vadd.f32 0.0, %v677
        %v679 = vpop.f32.mrf.mxu0
        %v680 = vpop.f32.mrf.mxu0
        %v681 = vadd.f32 0.0, %v680
        %v682 = vpop.f32.mrf.mxu0
        %683 = vdwg.mxu0
        %v684 = vpack.c.bf16 %v681, %v678
        %s685 = scalar_lea.vmem %s521, 48
        %v686 = vld [vmem:[%s685] sm:$0xff]
        %v687 = vld [vmem:[%s685 + $0x8] sm:$0xff]
        %v688 = vld [vmem:[%s685 + $0x10] sm:$0xff]
        %v689 = vpack.c.bf16 %v687, %v686
        %v690 = vpack.c.bf16 %v688, %v688
        %v692 = vsel %vm588, %v690, 0
        %694 = vmatprep.subr.bf16.mxu0 0
        %695 = vmatpush1.bf16.msra.mxu0 0
        %696 = vmatprep.subr.bf16.mxu0 0
        %697 = vmatpush1.bf16.msra.mxu0 0
        %698 = vmatprep.subr.bf16.mxu0 0
        %699 = vmatpush1.bf16.msra.mxu0 0
        %700 = vmatprep.subr.bf16.mxu0 0
        %701 = vmatpush1.bf16.msra.mxu0 0
        %702 = vmatprep.subr.bf16.mxu0 0
        %703 = vmatpush1.bf16.msra.mxu0 0
        %704 = vmatprep.subr.bf16.mxu0 0
        %705 = vmatpush1.bf16.msra.mxu0 0
        %706 = vmatprep.subr.bf16.mxu0 0
        %707 = vmatpush1.bf16.msra.mxu0 %v692
        %708 = vmatprep.subr.bf16.mxu0 0
        %709 = vmatpush1.bf16.msra.mxu0 %v689
        %710 = vmatprep.subr.bf16.mxu0 0
        %711 = vmatpush2.bf16.msra.mxu0 0
        %712 = vmatprep.subr.bf16.mxu0 0
        %713 = vmatpush2.bf16.msra.mxu0 0
        %714 = vmatprep.subr.bf16.mxu0 0
        %715 = vmatpush2.bf16.msra.mxu0 0
        %716 = vmatprep.subr.bf16.mxu0 0
        %717 = vmatpush2.bf16.msra.mxu0 0
        %718 = vmatprep.subr.bf16.mxu0 0
        %719 = vmatpush2.bf16.msra.mxu0 0
        %720 = vmatprep.subr.bf16.mxu0 0
        %721 = vmatpush2.bf16.msra.mxu0 0
        %722 = vmatprep.subr.bf16.mxu0 0
        %723 = vmatpush2.bf16.msra.mxu0 0
        %724 = vmatprep.subr.bf16.mxu0 0
        %725 = vmatpush2.bf16.msra.mxu0 0
        %726 = vmatprep.mubr.bf16.mxu0 0
        %727 = vmatmul.mubr.bf16.gmra.mxu0 %v586
        %v728 = vpop.f32.mrf.mxu0
        %v729 = vadd.f32 0.0, %v728
        %v730 = vpop.f32.mrf.mxu0
        %v731 = vpop.f32.mrf.mxu0
        %v732 = vadd.f32 0.0, %v731
        %v733 = vpop.f32.mrf.mxu0
        %734 = vdwg.mxu0
        %v735 = vpack.c.bf16 %v732, %v729
        %v740 = vunpack.c.l.b16 %v570
        %v741 = vunpack.c.l.b16 %v571
        %v742 = vunpack.c.l.b16 %v572
        %v743 = vunpack.c.l.b16 %v573
        %v744 = vpack.c.b16 %v741, %v740
        %v745 = vpack.c.b16 %v743, %v742
        %vm748 = vcmask 261120
        %v750 = vsel %vm748, %v633, 0
        %v753 = vsel %vm748, %v684, 0
        %v756 = vsel %vm748, %v735, 0
        %758 = vmatprep.subr.bf16.mxu0 0
        %759 = vmatpush1.bf16.msra.mxu0 0
        %760 = vmatprep.subr.bf16.mxu0 0
        %761 = vmatpush1.bf16.msra.mxu0 0
        %762 = vmatprep.subr.bf16.mxu0 0
        %763 = vmatpush1.bf16.msra.mxu0 0
        %764 = vmatprep.subr.bf16.mxu0 0
        %765 = vmatpush1.bf16.msra.mxu0 0
        %766 = vmatprep.subr.bf16.mxu0 0
        %767 = vmatpush1.bf16.msra.mxu0 0
        %768 = vmatprep.subr.bf16.mxu0 0
        %769 = vmatpush1.bf16.msra.mxu0 0
        %770 = vmatprep.subr.bf16.mxu0 0
        %771 = vmatpush1.bf16.msra.mxu0 %v745
        %772 = vmatprep.subr.bf16.mxu0 0
        %773 = vmatpush1.bf16.msra.mxu0 %v744
        %774 = vmatprep.subr.bf16.mxu0 0
        %775 = vmatpush2.bf16.msra.mxu0 0
        %776 = vmatprep.subr.bf16.mxu0 0
        %777 = vmatpush2.bf16.msra.mxu0 0
        %778 = vmatprep.subr.bf16.mxu0 0
        %779 = vmatpush2.bf16.msra.mxu0 0
        %780 = vmatprep.subr.bf16.mxu0 0
        %781 = vmatpush2.bf16.msra.mxu0 0
        %782 = vmatprep.subr.bf16.mxu0 0
        %783 = vmatpush2.bf16.msra.mxu0 0
        %784 = vmatprep.subr.bf16.mxu0 0
        %785 = vmatpush2.bf16.msra.mxu0 0
        %786 = vmatprep.subr.bf16.mxu0 0
        %787 = vmatpush2.bf16.msra.mxu0 0
        %788 = vmatprep.subr.bf16.mxu0 0
        %789 = vmatpush2.bf16.msra.mxu0 0
        %790 = vmatprep.mubr.bf16.mxu0 0
        %791 = vmatmul.mubr.bf16.gmra.mxu0 %v750
        %v792 = vpop.f32.mrf.mxu0
        %v793 = vadd.f32 0.0, %v792
        %v794 = vpop.f32.mrf.mxu0
        %v795 = vpop.f32.mrf.mxu0
        %v796 = vadd.f32 0.0, %v795
        %v797 = vpop.f32.mrf.mxu0
        %798 = vmatprep.mubr.bf16.mxu0 0
        %799 = vmatmul.mubr.bf16.gmra.mxu0 %v753
        %v800 = vpop.f32.mrf.mxu0
        %v801 = vadd.f32 0.0, %v800
        %v802 = vpop.f32.mrf.mxu0
        %v803 = vpop.f32.mrf.mxu0
        %v804 = vadd.f32 0.0, %v803
        %v805 = vpop.f32.mrf.mxu0
        %806 = vmatprep.mubr.bf16.mxu0 0
        %807 = vmatmul.mubr.bf16.gmra.mxu0 %v756
        %v808 = vpop.f32.mrf.mxu0
        %v809 = vadd.f32 0.0, %v808
        %v810 = vpop.f32.mrf.mxu0
        %v811 = vpop.f32.mrf.mxu0
        %v812 = vadd.f32 0.0, %v811
        %v813 = vpop.f32.mrf.mxu0
        %814 = vdwg.mxu0
        %s815 = sadd.s32 %s561, 2
        %s816 = sld [smem:[#allocation2 + %s815]]
        // Predicated region
        $region53: #{augmentation_sceneflow_finetuning_forward.3} parent=47 // pred_check
          %p817 = pneg %p567
        $region54: #{augmentation_sceneflow_finetuning_forward.3} parent=47 // pred_check_branch
          %819 = sbr.rel (%p817) target = $region56
        $region55: #{augmentation_sceneflow_finetuning_forward.3} parent=47 // pred_region
          %vm820 = vcmp.gt.f32.partialorder %v793, 0.0
          %vm821 = vcmp.gt.f32.partialorder %v796, 0.0
          %v822 = vsel %vm820, %v793, 1.0
          %v823 = vsel %vm821, %v796, 1.0
          %v824 = vlog2.pop %v822
          %v825 = vmul.f32 %v824, 0.6931472
          %v826 = vlog2.pop %v823
          %v827 = vmul.f32 %v826, 0.6931472
          %v828 = vstv %s562
          %v829 = vmul.f32 %v828, %v825
          %v830 = vmul.f32 %v828, %v827
          %v831 = vmul.f32 %v829, 1.442695
          %v832 = vpow.pop %v831
          %v833 = vmul.f32 %v830, 1.442695
          %v834 = vpow.pop %v833
          %v835 = vsel %vm820, %v832, 0.0
          %v836 = vsel %vm821, %v834, 0.0
          %s837 = smul.f32 %s564, %s816
          %v838 = vstv %s837
          %v839 = vmul.f32 %v835, %v838
          %v840 = vmul.f32 %v836, %v838
          %v841 = vmax.f32 %v839, 0.0
          %v842 = vmax.f32 %v840, 0.0
          %v843 = vmin.f32 %v841, 1.0
          %v844 = vmin.f32 %v842, 1.0
          %845 = vst.msk [vmem:[%s490] sm:$0xff] %vm584, %v843
          %846 = vst.msk [vmem:[%s490 + $0x8] sm:$0xff] %vm584, %v844
        $region56: #{augmentation_sceneflow_finetuning_forward.3} parent=47 // pred_fallthru
          _
        %p847 = pneg %p567
        // Predicated region
        $region57: #{augmentation_sceneflow_finetuning_forward.3} parent=47 // pred_check
          _
        $region58: #{augmentation_sceneflow_finetuning_forward.3} parent=47 // pred_check_branch
          %849 = sbr.rel (%p567) target = $region60
        $region59: #{augmentation_sceneflow_finetuning_forward.3} parent=47 // pred_region
          %850 = vst.msk [vmem:[%s490] sm:$0xff] %vm584, %v793
          %851 = vst.msk [vmem:[%s490 + $0x8] sm:$0xff] %vm584, %v796
        $region60: #{augmentation_sceneflow_finetuning_forward.3} parent=47 // pred_fallthru
          _
        %s852 = sadd.s32 %s561, 3
        %s853 = sld [smem:[#allocation2 + %s852]]
        // Predicated region
        $region61: #{augmentation_sceneflow_finetuning_forward.3} parent=47 // pred_check
          %p854 = pneg %p567
        $region62: #{augmentation_sceneflow_finetuning_forward.3} parent=47 // pred_check_branch
          %856 = sbr.rel (%p854) target = $region64
        $region63: #{augmentation_sceneflow_finetuning_forward.3} parent=47 // pred_region
          %vm857 = vcmp.gt.f32.partialorder %v801, 0.0
          %vm858 = vcmp.gt.f32.partialorder %v804, 0.0
          %v859 = vsel %vm857, %v801, 1.0
          %v860 = vsel %vm858, %v804, 1.0
          %v861 = vlog2.pop %v859
          %v862 = vmul.f32 %v861, 0.6931472
          %v863 = vlog2.pop %v860
          %v864 = vmul.f32 %v863, 0.6931472
          %v865 = vstv %s562
          %v866 = vmul.f32 %v865, %v862
          %v867 = vmul.f32 %v865, %v864
          %v868 = vmul.f32 %v866, 1.442695
          %v869 = vpow.pop %v868
          %v870 = vmul.f32 %v867, 1.442695
          %v871 = vpow.pop %v870
          %v872 = vsel %vm857, %v869, 0.0
          %v873 = vsel %vm858, %v871, 0.0
          %s874 = smul.f32 %s564, %s853
          %v875 = vstv %s874
          %v876 = vmul.f32 %v872, %v875
          %v877 = vmul.f32 %v873, %v875
          %v878 = vmax.f32 %v876, 0.0
          %v879 = vmax.f32 %v877, 0.0
          %v880 = vmin.f32 %v878, 1.0
          %v881 = vmin.f32 %v879, 1.0
          %s882 = scalar_lea.vmem %s490, 16 [#allocation5]
          %883 = vst.msk [vmem:[%s882] sm:$0xff] %vm584, %v880
          %884 = vst.msk [vmem:[%s882 + $0x8] sm:$0xff] %vm584, %v881
        $region64: #{augmentation_sceneflow_finetuning_forward.3} parent=47 // pred_fallthru
          _
        %p885 = pneg %p567
        // Predicated region
        $region65: #{augmentation_sceneflow_finetuning_forward.3} parent=47 // pred_check
          _
        $region66: #{augmentation_sceneflow_finetuning_forward.3} parent=47 // pred_check_branch
          %887 = sbr.rel (%p567) target = $region68
        $region67: #{augmentation_sceneflow_finetuning_forward.3} parent=47 // pred_region
          %s888 = scalar_lea.vmem %s490, 16 [#allocation5]
          %889 = vst.msk [vmem:[%s888] sm:$0xff] %vm584, %v801
          %890 = vst.msk [vmem:[%s888 + $0x8] sm:$0xff] %vm584, %v804
        $region68: #{augmentation_sceneflow_finetuning_forward.3} parent=47 // pred_fallthru
          _
        %s891 = sadd.s32 %s561, 4
        %s892 = sld [smem:[#allocation2 + %s891]]
        // Predicated region
        $region69: #{augmentation_sceneflow_finetuning_forward.3} parent=47 // pred_check
          %p893 = pneg %p567
        $region70: #{augmentation_sceneflow_finetuning_forward.3} parent=47 // pred_check_branch
          %895 = sbr.rel (%p893) target = $region72
        $region71: #{augmentation_sceneflow_finetuning_forward.3} parent=47 // pred_region
          %vm896 = vcmp.gt.f32.partialorder %v809, 0.0
          %vm897 = vcmp.gt.f32.partialorder %v812, 0.0
          %v898 = vsel %vm896, %v809, 1.0
          %v899 = vsel %vm897, %v812, 1.0
          %v900 = vlog2.pop %v898
          %v901 = vmul.f32 %v900, 0.6931472
          %v902 = vlog2.pop %v899
          %v903 = vmul.f32 %v902, 0.6931472
          %v904 = vstv %s562
          %v905 = vmul.f32 %v904, %v901
          %v906 = vmul.f32 %v904, %v903
          %v907 = vmul.f32 %v905, 1.442695
          %v908 = vpow.pop %v907
          %v909 = vmul.f32 %v906, 1.442695
          %v910 = vpow.pop %v909
          %v911 = vsel %vm896, %v908, 0.0
          %v912 = vsel %vm897, %v910, 0.0
          %s913 = smul.f32 %s564, %s892
          %v914 = vstv %s913
          %v915 = vmul.f32 %v911, %v914
          %v916 = vmul.f32 %v912, %v914
          %v917 = vmax.f32 %v915, 0.0
          %v918 = vmax.f32 %v916, 0.0
          %v919 = vmin.f32 %v917, 1.0
          %v920 = vmin.f32 %v918, 1.0
          %s921 = scalar_lea.vmem %s490, 32 [#allocation5]
          %922 = vst.msk [vmem:[%s921] sm:$0xff] %vm584, %v919
          %923 = vst.msk [vmem:[%s921 + $0x8] sm:$0xff] %vm584, %v920
        $region72: #{augmentation_sceneflow_finetuning_forward.3} parent=47 // pred_fallthru
          _
        %p924 = pneg %p567
        // Predicated region
        $region73: #{augmentation_sceneflow_finetuning_forward.3} parent=47 // pred_check
          _
        $region74: #{augmentation_sceneflow_finetuning_forward.3} parent=47 // pred_check_branch
          %926 = sbr.rel (%p567) target = $region76
        $region75: #{augmentation_sceneflow_finetuning_forward.3} parent=47 // pred_region
          %s927 = scalar_lea.vmem %s490, 32 [#allocation5]
          %928 = vst.msk [vmem:[%s927] sm:$0xff] %vm584, %v809
          %929 = vst.msk [vmem:[%s927 + $0x8] sm:$0xff] %vm584, %v812
        $region76: #{augmentation_sceneflow_finetuning_forward.3} parent=47 // pred_fallthru
          _
        %v930 = vld [vmem:[%s532] sm:$0xff]
        %v931 = vld [vmem:[%s532 + $0x8] sm:$0xff]
        %v932 = vld [vmem:[%s532 + $0x10] sm:$0xff]
        %v933 = vpack.c.bf16 %v931, %v930
        %v934 = vpack.c.bf16 %v932, %v932
        %v936 = vsel %vm588, %v934, 0
        %938 = vmatprep.subr.bf16.mxu0 0
        %939 = vmatpush1.bf16.msra.mxu0 0
        %940 = vmatprep.subr.bf16.mxu0 0
        %941 = vmatpush1.bf16.msra.mxu0 0
        %942 = vmatprep.subr.bf16.mxu0 0
        %943 = vmatpush1.bf16.msra.mxu0 0
        %944 = vmatprep.subr.bf16.mxu0 0
        %945 = vmatpush1.bf16.msra.mxu0 0
        %946 = vmatprep.subr.bf16.mxu0 0
        %947 = vmatpush1.bf16.msra.mxu0 0
        %948 = vmatprep.subr.bf16.mxu0 0
        %949 = vmatpush1.bf16.msra.mxu0 0
        %950 = vmatprep.subr.bf16.mxu0 0
        %951 = vmatpush1.bf16.msra.mxu0 %v936
        %952 = vmatprep.subr.bf16.mxu0 0
        %953 = vmatpush1.bf16.msra.mxu0 %v933
        %954 = vmatprep.subr.bf16.mxu0 0
        %955 = vmatpush2.bf16.msra.mxu0 0
        %956 = vmatprep.subr.bf16.mxu0 0
        %957 = vmatpush2.bf16.msra.mxu0 0
        %958 = vmatprep.subr.bf16.mxu0 0
        %959 = vmatpush2.bf16.msra.mxu0 0
        %960 = vmatprep.subr.bf16.mxu0 0
        %961 = vmatpush2.bf16.msra.mxu0 0
        %962 = vmatprep.subr.bf16.mxu0 0
        %963 = vmatpush2.bf16.msra.mxu0 0
        %964 = vmatprep.subr.bf16.mxu0 0
        %965 = vmatpush2.bf16.msra.mxu0 0
        %966 = vmatprep.subr.bf16.mxu0 0
        %967 = vmatpush2.bf16.msra.mxu0 0
        %968 = vmatprep.subr.bf16.mxu0 0
        %969 = vmatpush2.bf16.msra.mxu0 0
        %970 = vmatprep.mubr.bf16.mxu0 0
        %971 = vmatmul.mubr.bf16.gmra.mxu0 %v586
        %v972 = vpop.f32.mrf.mxu0
        %v973 = vadd.f32 0.0, %v972
        %v974 = vpop.f32.mrf.mxu0
        %v975 = vpop.f32.mrf.mxu0
        %v976 = vadd.f32 0.0, %v975
        %v977 = vpop.f32.mrf.mxu0
        %978 = vdwg.mxu0
        %v979 = vpack.c.bf16 %v976, %v973
        %s980 = scalar_lea.vmem %s532, 24
        %v981 = vld [vmem:[%s980] sm:$0xff]
        %v982 = vld [vmem:[%s980 + $0x8] sm:$0xff]
        %v983 = vld [vmem:[%s980 + $0x10] sm:$0xff]
        %v984 = vpack.c.bf16 %v982, %v981
        %v985 = vpack.c.bf16 %v983, %v983
        %v987 = vsel %vm588, %v985, 0
        %989 = vmatprep.subr.bf16.mxu0 0
        %990 = vmatpush1.bf16.msra.mxu0 0
        %991 = vmatprep.subr.bf16.mxu0 0
        %992 = vmatpush1.bf16.msra.mxu0 0
        %993 = vmatprep.subr.bf16.mxu0 0
        %994 = vmatpush1.bf16.msra.mxu0 0
        %995 = vmatprep.subr.bf16.mxu0 0
        %996 = vmatpush1.bf16.msra.mxu0 0
        %997 = vmatprep.subr.bf16.mxu0 0
        %998 = vmatpush1.bf16.msra.mxu0 0
        %999 = vmatprep.subr.bf16.mxu0 0
        %1000 = vmatpush1.bf16.msra.mxu0 0
        %1001 = vmatprep.subr.bf16.mxu0 0
        %1002 = vmatpush1.bf16.msra.mxu0 %v987
        %1003 = vmatprep.subr.bf16.mxu0 0
        %1004 = vmatpush1.bf16.msra.mxu0 %v984
        %1005 = vmatprep.subr.bf16.mxu0 0
        %1006 = vmatpush2.bf16.msra.mxu0 0
        %1007 = vmatprep.subr.bf16.mxu0 0
        %1008 = vmatpush2.bf16.msra.mxu0 0
        %1009 = vmatprep.subr.bf16.mxu0 0
        %1010 = vmatpush2.bf16.msra.mxu0 0
        %1011 = vmatprep.subr.bf16.mxu0 0
        %1012 = vmatpush2.bf16.msra.mxu0 0
        %1013 = vmatprep.subr.bf16.mxu0 0
        %1014 = vmatpush2.bf16.msra.mxu0 0
        %1015 = vmatprep.subr.bf16.mxu0 0
        %1016 = vmatpush2.bf16.msra.mxu0 0
        %1017 = vmatprep.subr.bf16.mxu0 0
        %1018 = vmatpush2.bf16.msra.mxu0 0
        %1019 = vmatprep.subr.bf16.mxu0 0
        %1020 = vmatpush2.bf16.msra.mxu0 0
        %1021 = vmatprep.mubr.bf16.mxu0 0
        %1022 = vmatmul.mubr.bf16.gmra.mxu0 %v586
        %v1023 = vpop.f32.mrf.mxu0
        %v1024 = vadd.f32 0.0, %v1023
        %v1025 = vpop.f32.mrf.mxu0
        %v1026 = vpop.f32.mrf.mxu0
        %v1027 = vadd.f32 0.0, %v1026
        %v1028 = vpop.f32.mrf.mxu0
        %1029 = vdwg.mxu0
        %v1030 = vpack.c.bf16 %v1027, %v1024
        %s1031 = scalar_lea.vmem %s532, 48
        %v1032 = vld [vmem:[%s1031] sm:$0xff]
        %v1033 = vld [vmem:[%s1031 + $0x8] sm:$0xff]
        %v1034 = vld [vmem:[%s1031 + $0x10] sm:$0xff]
        %v1035 = vpack.c.bf16 %v1033, %v1032
        %v1036 = vpack.c.bf16 %v1034, %v1034
        %v1038 = vsel %vm588, %v1036, 0
        %1040 = vmatprep.subr.bf16.mxu0 0
        %1041 = vmatpush1.bf16.msra.mxu0 0
        %1042 = vmatprep.subr.bf16.mxu0 0
        %1043 = vmatpush1.bf16.msra.mxu0 0
        %1044 = vmatprep.subr.bf16.mxu0 0
        %1045 = vmatpush1.bf16.msra.mxu0 0
        %1046 = vmatprep.subr.bf16.mxu0 0
        %1047 = vmatpush1.bf16.msra.mxu0 0
        %1048 = vmatprep.subr.bf16.mxu0 0
        %1049 = vmatpush1.bf16.msra.mxu0 0
        %1050 = vmatprep.subr.bf16.mxu0 0
        %1051 = vmatpush1.bf16.msra.mxu0 0
        %1052 = vmatprep.subr.bf16.mxu0 0
        %1053 = vmatpush1.bf16.msra.mxu0 %v1038
        %1054 = vmatprep.subr.bf16.mxu0 0
        %1055 = vmatpush1.bf16.msra.mxu0 %v1035
        %1056 = vmatprep.subr.bf16.mxu0 0
        %1057 = vmatpush2.bf16.msra.mxu0 0
        %1058 = vmatprep.subr.bf16.mxu0 0
        %1059 = vmatpush2.bf16.msra.mxu0 0
        %1060 = vmatprep.subr.bf16.mxu0 0
        %1061 = vmatpush2.bf16.msra.mxu0 0
        %1062 = vmatprep.subr.bf16.mxu0 0
        %1063 = vmatpush2.bf16.msra.mxu0 0
        %1064 = vmatprep.subr.bf16.mxu0 0
        %1065 = vmatpush2.bf16.msra.mxu0 0
        %1066 = vmatprep.subr.bf16.mxu0 0
        %1067 = vmatpush2.bf16.msra.mxu0 0
        %1068 = vmatprep.subr.bf16.mxu0 0
        %1069 = vmatpush2.bf16.msra.mxu0 0
        %1070 = vmatprep.subr.bf16.mxu0 0
        %1071 = vmatpush2.bf16.msra.mxu0 0
        %1072 = vmatprep.mubr.bf16.mxu0 0
        %1073 = vmatmul.mubr.bf16.gmra.mxu0 %v586
        %v1074 = vpop.f32.mrf.mxu0
        %v1075 = vadd.f32 0.0, %v1074
        %v1076 = vpop.f32.mrf.mxu0
        %v1077 = vpop.f32.mrf.mxu0
        %v1078 = vadd.f32 0.0, %v1077
        %v1079 = vpop.f32.mrf.mxu0
        %1080 = vdwg.mxu0
        %v1081 = vpack.c.bf16 %v1078, %v1075
        %v1083 = vsel %vm748, %v979, 0
        %v1086 = vsel %vm748, %v1030, 0
        %v1089 = vsel %vm748, %v1081, 0
        %1091 = vmatprep.subr.bf16.mxu0 0
        %1092 = vmatpush1.bf16.msra.mxu0 0
        %1093 = vmatprep.subr.bf16.mxu0 0
        %1094 = vmatpush1.bf16.msra.mxu0 0
        %1095 = vmatprep.subr.bf16.mxu0 0
        %1096 = vmatpush1.bf16.msra.mxu0 0
        %1097 = vmatprep.subr.bf16.mxu0 0
        %1098 = vmatpush1.bf16.msra.mxu0 0
        %1099 = vmatprep.subr.bf16.mxu0 0
        %1100 = vmatpush1.bf16.msra.mxu0 0
        %1101 = vmatprep.subr.bf16.mxu0 0
        %1102 = vmatpush1.bf16.msra.mxu0 0
        %1103 = vmatprep.subr.bf16.mxu0 0
        %1104 = vmatpush1.bf16.msra.mxu0 %v745
        %1105 = vmatprep.subr.bf16.mxu0 0
        %1106 = vmatpush1.bf16.msra.mxu0 %v744
        %1107 = vmatprep.subr.bf16.mxu0 0
        %1108 = vmatpush2.bf16.msra.mxu0 0
        %1109 = vmatprep.subr.bf16.mxu0 0
        %1110 = vmatpush2.bf16.msra.mxu0 0
        %1111 = vmatprep.subr.bf16.mxu0 0
        %1112 = vmatpush2.bf16.msra.mxu0 0
        %1113 = vmatprep.subr.bf16.mxu0 0
        %1114 = vmatpush2.bf16.msra.mxu0 0
        %1115 = vmatprep.subr.bf16.mxu0 0
        %1116 = vmatpush2.bf16.msra.mxu0 0
        %1117 = vmatprep.subr.bf16.mxu0 0
        %1118 = vmatpush2.bf16.msra.mxu0 0
        %1119 = vmatprep.subr.bf16.mxu0 0
        %1120 = vmatpush2.bf16.msra.mxu0 0
        %1121 = vmatprep.subr.bf16.mxu0 0
        %1122 = vmatpush2.bf16.msra.mxu0 0
        %1123 = vmatprep.mubr.bf16.mxu0 0
        %1124 = vmatmul.mubr.bf16.gmra.mxu0 %v1083
        %v1125 = vpop.f32.mrf.mxu0
        %v1126 = vadd.f32 0.0, %v1125
        %v1127 = vpop.f32.mrf.mxu0
        %v1128 = vpop.f32.mrf.mxu0
        %v1129 = vadd.f32 0.0, %v1128
        %v1130 = vpop.f32.mrf.mxu0
        %1131 = vmatprep.mubr.bf16.mxu0 0
        %1132 = vmatmul.mubr.bf16.gmra.mxu0 %v1086
        %v1133 = vpop.f32.mrf.mxu0
        %v1134 = vadd.f32 0.0, %v1133
        %v1135 = vpop.f32.mrf.mxu0
        %v1136 = vpop.f32.mrf.mxu0
        %v1137 = vadd.f32 0.0, %v1136
        %v1138 = vpop.f32.mrf.mxu0
        %1139 = vmatprep.mubr.bf16.mxu0 0
        %1140 = vmatmul.mubr.bf16.gmra.mxu0 %v1089
        %v1141 = vpop.f32.mrf.mxu0
        %v1142 = vadd.f32 0.0, %v1141
        %v1143 = vpop.f32.mrf.mxu0
        %v1144 = vpop.f32.mrf.mxu0
        %v1145 = vadd.f32 0.0, %v1144
        %v1146 = vpop.f32.mrf.mxu0
        %1147 = vdwg.mxu0
        %s1148 = sld [smem:[#allocation2 + %s815]]
        // Predicated region
        $region77: #{augmentation_sceneflow_finetuning_forward.3} parent=47 // pred_check
          %p1149 = pneg %p567
        $region78: #{augmentation_sceneflow_finetuning_forward.3} parent=47 // pred_check_branch
          %1151 = sbr.rel (%p1149) target = $region80
        $region79: #{augmentation_sceneflow_finetuning_forward.3} parent=47 // pred_region
          %vm1152 = vcmp.gt.f32.partialorder %v1126, 0.0
          %vm1153 = vcmp.gt.f32.partialorder %v1129, 0.0
          %v1154 = vsel %vm1152, %v1126, 1.0
          %v1155 = vsel %vm1153, %v1129, 1.0
          %v1156 = vlog2.pop %v1154
          %v1157 = vmul.f32 %v1156, 0.6931472
          %v1158 = vlog2.pop %v1155
          %v1159 = vmul.f32 %v1158, 0.6931472
          %v1160 = vstv %s562
          %v1161 = vmul.f32 %v1160, %v1157
          %v1162 = vmul.f32 %v1160, %v1159
          %v1163 = vmul.f32 %v1161, 1.442695
          %v1164 = vpow.pop %v1163
          %v1165 = vmul.f32 %v1162, 1.442695
          %v1166 = vpow.pop %v1165
          %v1167 = vsel %vm1152, %v1164, 0.0
          %v1168 = vsel %vm1153, %v1166, 0.0
          %s1169 = smul.f32 %s564, %s1148
          %v1170 = vstv %s1169
          %v1171 = vmul.f32 %v1167, %v1170
          %v1172 = vmul.f32 %v1168, %v1170
          %v1173 = vmax.f32 %v1171, 0.0
          %v1174 = vmax.f32 %v1172, 0.0
          %v1175 = vmin.f32 %v1173, 1.0
          %v1176 = vmin.f32 %v1174, 1.0
          %1177 = vst.msk [vmem:[%s497] sm:$0xff] %vm584, %v1175
          %1178 = vst.msk [vmem:[%s497 + $0x8] sm:$0xff] %vm584, %v1176
        $region80: #{augmentation_sceneflow_finetuning_forward.3} parent=47 // pred_fallthru
          _
        %p1179 = pneg %p567
        // Predicated region
        $region81: #{augmentation_sceneflow_finetuning_forward.3} parent=47 // pred_check
          _
        $region82: #{augmentation_sceneflow_finetuning_forward.3} parent=47 // pred_check_branch
          %1181 = sbr.rel (%p567) target = $region84
        $region83: #{augmentation_sceneflow_finetuning_forward.3} parent=47 // pred_region
          %1182 = vst.msk [vmem:[%s497] sm:$0xff] %vm584, %v1126
          %1183 = vst.msk [vmem:[%s497 + $0x8] sm:$0xff] %vm584, %v1129
        $region84: #{augmentation_sceneflow_finetuning_forward.3} parent=47 // pred_fallthru
          _
        %s1184 = sld [smem:[#allocation2 + %s852]]
        // Predicated region
        $region85: #{augmentation_sceneflow_finetuning_forward.3} parent=47 // pred_check
          %p1185 = pneg %p567
        $region86: #{augmentation_sceneflow_finetuning_forward.3} parent=47 // pred_check_branch
          %1187 = sbr.rel (%p1185) target = $region88
        $region87: #{augmentation_sceneflow_finetuning_forward.3} parent=47 // pred_region
          %vm1188 = vcmp.gt.f32.partialorder %v1134, 0.0
          %vm1189 = vcmp.gt.f32.partialorder %v1137, 0.0
          %v1190 = vsel %vm1188, %v1134, 1.0
          %v1191 = vsel %vm1189, %v1137, 1.0
          %v1192 = vlog2.pop %v1190
          %v1193 = vmul.f32 %v1192, 0.6931472
          %v1194 = vlog2.pop %v1191
          %v1195 = vmul.f32 %v1194, 0.6931472
          %v1196 = vstv %s562
          %v1197 = vmul.f32 %v1196, %v1193
          %v1198 = vmul.f32 %v1196, %v1195
          %v1199 = vmul.f32 %v1197, 1.442695
          %v1200 = vpow.pop %v1199
          %v1201 = vmul.f32 %v1198, 1.442695
          %v1202 = vpow.pop %v1201
          %v1203 = vsel %vm1188, %v1200, 0.0
          %v1204 = vsel %vm1189, %v1202, 0.0
          %s1205 = smul.f32 %s564, %s1184
          %v1206 = vstv %s1205
          %v1207 = vmul.f32 %v1203, %v1206
          %v1208 = vmul.f32 %v1204, %v1206
          %v1209 = vmax.f32 %v1207, 0.0
          %v1210 = vmax.f32 %v1208, 0.0
          %v1211 = vmin.f32 %v1209, 1.0
          %v1212 = vmin.f32 %v1210, 1.0
          %s1213 = scalar_lea.vmem %s497, 16 [#allocation6]
          %1214 = vst.msk [vmem:[%s1213] sm:$0xff] %vm584, %v1211
          %1215 = vst.msk [vmem:[%s1213 + $0x8] sm:$0xff] %vm584, %v1212
        $region88: #{augmentation_sceneflow_finetuning_forward.3} parent=47 // pred_fallthru
          _
        %p1216 = pneg %p567
        // Predicated region
        $region89: #{augmentation_sceneflow_finetuning_forward.3} parent=47 // pred_check
          _
        $region90: #{augmentation_sceneflow_finetuning_forward.3} parent=47 // pred_check_branch
          %1218 = sbr.rel (%p567) target = $region92
        $region91: #{augmentation_sceneflow_finetuning_forward.3} parent=47 // pred_region
          %s1219 = scalar_lea.vmem %s497, 16 [#allocation6]
          %1220 = vst.msk [vmem:[%s1219] sm:$0xff] %vm584, %v1134
          %1221 = vst.msk [vmem:[%s1219 + $0x8] sm:$0xff] %vm584, %v1137
        $region92: #{augmentation_sceneflow_finetuning_forward.3} parent=47 // pred_fallthru
          _
        %s1222 = sld [smem:[#allocation2 + %s891]]
        // Predicated region
        $region93: #{augmentation_sceneflow_finetuning_forward.3} parent=47 // pred_check
          %p1223 = pneg %p567
        $region94: #{augmentation_sceneflow_finetuning_forward.3} parent=47 // pred_check_branch
          %1225 = sbr.rel (%p1223) target = $region96
        $region95: #{augmentation_sceneflow_finetuning_forward.3} parent=47 // pred_region
          %vm1226 = vcmp.gt.f32.partialorder %v1142, 0.0
          %vm1227 = vcmp.gt.f32.partialorder %v1145, 0.0
          %v1228 = vsel %vm1226, %v1142, 1.0
          %v1229 = vsel %vm1227, %v1145, 1.0
          %v1230 = vlog2.pop %v1228
          %v1231 = vmul.f32 %v1230, 0.6931472
          %v1232 = vlog2.pop %v1229
          %v1233 = vmul.f32 %v1232, 0.6931472
          %v1234 = vstv %s562
          %v1235 = vmul.f32 %v1234, %v1231
          %v1236 = vmul.f32 %v1234, %v1233
          %v1237 = vmul.f32 %v1235, 1.442695
          %v1238 = vpow.pop %v1237
          %v1239 = vmul.f32 %v1236, 1.442695
          %v1240 = vpow.pop %v1239
          %v1241 = vsel %vm1226, %v1238, 0.0
          %v1242 = vsel %vm1227, %v1240, 0.0
          %s1243 = smul.f32 %s564, %s1222
          %v1244 = vstv %s1243
          %v1245 = vmul.f32 %v1241, %v1244
          %v1246 = vmul.f32 %v1242, %v1244
          %v1247 = vmax.f32 %v1245, 0.0
          %v1248 = vmax.f32 %v1246, 0.0
          %v1249 = vmin.f32 %v1247, 1.0
          %v1250 = vmin.f32 %v1248, 1.0
          %s1251 = scalar_lea.vmem %s497, 32 [#allocation6]
          %1252 = vst.msk [vmem:[%s1251] sm:$0xff] %vm584, %v1249
          %1253 = vst.msk [vmem:[%s1251 + $0x8] sm:$0xff] %vm584, %v1250
        $region96: #{augmentation_sceneflow_finetuning_forward.3} parent=47 // pred_fallthru
          _
        %p1254 = pneg %p567
        // Predicated region
        $region97: #{augmentation_sceneflow_finetuning_forward.3} parent=47 // pred_check
          _
        $region98: #{augmentation_sceneflow_finetuning_forward.3} parent=47 // pred_check_branch
          %1256 = sbr.rel (%p567) target = $region100
        $region99: #{augmentation_sceneflow_finetuning_forward.3} parent=47 // pred_region
          %s1257 = scalar_lea.vmem %s497, 32 [#allocation6]
          %1258 = vst.msk [vmem:[%s1257] sm:$0xff] %vm584, %v1142
          %1259 = vst.msk [vmem:[%s1257 + $0x8] sm:$0xff] %vm584, %v1145
        $region100: #{augmentation_sceneflow_finetuning_forward.3} parent=47 // pred_fallthru
          _
        %v1260 = vld [vmem:[%s543] sm:$0xff]
        %v1261 = vld [vmem:[%s543 + $0x8] sm:$0xff]
        %v1262 = vld [vmem:[%s543 + $0x10] sm:$0xff]
        %v1263 = vpack.c.bf16 %v1261, %v1260
        %v1264 = vpack.c.bf16 %v1262, %v1262
        %v1266 = vsel %vm588, %v1264, 0
        %1268 = vmatprep.subr.bf16.mxu0 0
        %1269 = vmatpush1.bf16.msra.mxu0 0
        %1270 = vmatprep.subr.bf16.mxu0 0
        %1271 = vmatpush1.bf16.msra.mxu0 0
        %1272 = vmatprep.subr.bf16.mxu0 0
        %1273 = vmatpush1.bf16.msra.mxu0 0
        %1274 = vmatprep.subr.bf16.mxu0 0
        %1275 = vmatpush1.bf16.msra.mxu0 0
        %1276 = vmatprep.subr.bf16.mxu0 0
        %1277 = vmatpush1.bf16.msra.mxu0 0
        %1278 = vmatprep.subr.bf16.mxu0 0
        %1279 = vmatpush1.bf16.msra.mxu0 0
        %1280 = vmatprep.subr.bf16.mxu0 0
        %1281 = vmatpush1.bf16.msra.mxu0 %v1266
        %1282 = vmatprep.subr.bf16.mxu0 0
        %1283 = vmatpush1.bf16.msra.mxu0 %v1263
        %1284 = vmatprep.subr.bf16.mxu0 0
        %1285 = vmatpush2.bf16.msra.mxu0 0
        %1286 = vmatprep.subr.bf16.mxu0 0
        %1287 = vmatpush2.bf16.msra.mxu0 0
        %1288 = vmatprep.subr.bf16.mxu0 0
        %1289 = vmatpush2.bf16.msra.mxu0 0
        %1290 = vmatprep.subr.bf16.mxu0 0
        %1291 = vmatpush2.bf16.msra.mxu0 0
        %1292 = vmatprep.subr.bf16.mxu0 0
        %1293 = vmatpush2.bf16.msra.mxu0 0
        %1294 = vmatprep.subr.bf16.mxu0 0
        %1295 = vmatpush2.bf16.msra.mxu0 0
        %1296 = vmatprep.subr.bf16.mxu0 0
        %1297 = vmatpush2.bf16.msra.mxu0 0
        %1298 = vmatprep.subr.bf16.mxu0 0
        %1299 = vmatpush2.bf16.msra.mxu0 0
        %1300 = vmatprep.mubr.bf16.mxu0 0
        %1301 = vmatmul.mubr.bf16.gmra.mxu0 %v586
        %v1302 = vpop.f32.mrf.mxu0
        %v1303 = vadd.f32 0.0, %v1302
        %v1304 = vpop.f32.mrf.mxu0
        %v1305 = vpop.f32.mrf.mxu0
        %v1306 = vadd.f32 0.0, %v1305
        %v1307 = vpop.f32.mrf.mxu0
        %1308 = vdwg.mxu0
        %v1309 = vpack.c.bf16 %v1306, %v1303
        %s1310 = scalar_lea.vmem %s543, 24
        %v1311 = vld [vmem:[%s1310] sm:$0xff]
        %v1312 = vld [vmem:[%s1310 + $0x8] sm:$0xff]
        %v1313 = vld [vmem:[%s1310 + $0x10] sm:$0xff]
        %v1314 = vpack.c.bf16 %v1312, %v1311
        %v1315 = vpack.c.bf16 %v1313, %v1313
        %v1317 = vsel %vm588, %v1315, 0
        %1319 = vmatprep.subr.bf16.mxu0 0
        %1320 = vmatpush1.bf16.msra.mxu0 0
        %1321 = vmatprep.subr.bf16.mxu0 0
        %1322 = vmatpush1.bf16.msra.mxu0 0
        %1323 = vmatprep.subr.bf16.mxu0 0
        %1324 = vmatpush1.bf16.msra.mxu0 0
        %1325 = vmatprep.subr.bf16.mxu0 0
        %1326 = vmatpush1.bf16.msra.mxu0 0
        %1327 = vmatprep.subr.bf16.mxu0 0
        %1328 = vmatpush1.bf16.msra.mxu0 0
        %1329 = vmatprep.subr.bf16.mxu0 0
        %1330 = vmatpush1.bf16.msra.mxu0 0
        %1331 = vmatprep.subr.bf16.mxu0 0
        %1332 = vmatpush1.bf16.msra.mxu0 %v1317
        %1333 = vmatprep.subr.bf16.mxu0 0
        %1334 = vmatpush1.bf16.msra.mxu0 %v1314
        %1335 = vmatprep.subr.bf16.mxu0 0
        %1336 = vmatpush2.bf16.msra.mxu0 0
        %1337 = vmatprep.subr.bf16.mxu0 0
        %1338 = vmatpush2.bf16.msra.mxu0 0
        %1339 = vmatprep.subr.bf16.mxu0 0
        %1340 = vmatpush2.bf16.msra.mxu0 0
        %1341 = vmatprep.subr.bf16.mxu0 0
        %1342 = vmatpush2.bf16.msra.mxu0 0
        %1343 = vmatprep.subr.bf16.mxu0 0
        %1344 = vmatpush2.bf16.msra.mxu0 0
        %1345 = vmatprep.subr.bf16.mxu0 0
        %1346 = vmatpush2.bf16.msra.mxu0 0
        %1347 = vmatprep.subr.bf16.mxu0 0
        %1348 = vmatpush2.bf16.msra.mxu0 0
        %1349 = vmatprep.subr.bf16.mxu0 0
        %1350 = vmatpush2.bf16.msra.mxu0 0
        %1351 = vmatprep.mubr.bf16.mxu0 0
        %1352 = vmatmul.mubr.bf16.gmra.mxu0 %v586
        %v1353 = vpop.f32.mrf.mxu0
        %v1354 = vadd.f32 0.0, %v1353
        %v1355 = vpop.f32.mrf.mxu0
        %v1356 = vpop.f32.mrf.mxu0
        %v1357 = vadd.f32 0.0, %v1356
        %v1358 = vpop.f32.mrf.mxu0
        %1359 = vdwg.mxu0
        %v1360 = vpack.c.bf16 %v1357, %v1354
        %s1361 = scalar_lea.vmem %s543, 48
        %v1362 = vld [vmem:[%s1361] sm:$0xff]
        %v1363 = vld [vmem:[%s1361 + $0x8] sm:$0xff]
        %v1364 = vld [vmem:[%s1361 + $0x10] sm:$0xff]
        %v1365 = vpack.c.bf16 %v1363, %v1362
        %v1366 = vpack.c.bf16 %v1364, %v1364
        %v1368 = vsel %vm588, %v1366, 0
        %1370 = vmatprep.subr.bf16.mxu0 0
        %1371 = vmatpush1.bf16.msra.mxu0 0
        %1372 = vmatprep.subr.bf16.mxu0 0
        %1373 = vmatpush1.bf16.msra.mxu0 0
        %1374 = vmatprep.subr.bf16.mxu0 0
        %1375 = vmatpush1.bf16.msra.mxu0 0
        %1376 = vmatprep.subr.bf16.mxu0 0
        %1377 = vmatpush1.bf16.msra.mxu0 0
        %1378 = vmatprep.subr.bf16.mxu0 0
        %1379 = vmatpush1.bf16.msra.mxu0 0
        %1380 = vmatprep.subr.bf16.mxu0 0
        %1381 = vmatpush1.bf16.msra.mxu0 0
        %1382 = vmatprep.subr.bf16.mxu0 0
        %1383 = vmatpush1.bf16.msra.mxu0 %v1368
        %1384 = vmatprep.subr.bf16.mxu0 0
        %1385 = vmatpush1.bf16.msra.mxu0 %v1365
        %1386 = vmatprep.subr.bf16.mxu0 0
        %1387 = vmatpush2.bf16.msra.mxu0 0
        %1388 = vmatprep.subr.bf16.mxu0 0
        %1389 = vmatpush2.bf16.msra.mxu0 0
        %1390 = vmatprep.subr.bf16.mxu0 0
        %1391 = vmatpush2.bf16.msra.mxu0 0
        %1392 = vmatprep.subr.bf16.mxu0 0
        %1393 = vmatpush2.bf16.msra.mxu0 0
        %1394 = vmatprep.subr.bf16.mxu0 0
        %1395 = vmatpush2.bf16.msra.mxu0 0
        %1396 = vmatprep.subr.bf16.mxu0 0
        %1397 = vmatpush2.bf16.msra.mxu0 0
        %1398 = vmatprep.subr.bf16.mxu0 0
        %1399 = vmatpush2.bf16.msra.mxu0 0
        %1400 = vmatprep.subr.bf16.mxu0 0
        %1401 = vmatpush2.bf16.msra.mxu0 0
        %1402 = vmatprep.mubr.bf16.mxu0 0
        %1403 = vmatmul.mubr.bf16.gmra.mxu0 %v586
        %v1404 = vpop.f32.mrf.mxu0
        %v1405 = vadd.f32 0.0, %v1404
        %v1406 = vpop.f32.mrf.mxu0
        %v1407 = vpop.f32.mrf.mxu0
        %v1408 = vadd.f32 0.0, %v1407
        %v1409 = vpop.f32.mrf.mxu0
        %1410 = vdwg.mxu0
        %v1411 = vpack.c.bf16 %v1408, %v1405
        %v1413 = vsel %vm748, %v1309, 0
        %v1416 = vsel %vm748, %v1360, 0
        %v1419 = vsel %vm748, %v1411, 0
        %1421 = vmatprep.subr.bf16.mxu0 0
        %1422 = vmatpush1.bf16.msra.mxu0 0
        %1423 = vmatprep.subr.bf16.mxu0 0
        %1424 = vmatpush1.bf16.msra.mxu0 0
        %1425 = vmatprep.subr.bf16.mxu0 0
        %1426 = vmatpush1.bf16.msra.mxu0 0
        %1427 = vmatprep.subr.bf16.mxu0 0
        %1428 = vmatpush1.bf16.msra.mxu0 0
        %1429 = vmatprep.subr.bf16.mxu0 0
        %1430 = vmatpush1.bf16.msra.mxu0 0
        %1431 = vmatprep.subr.bf16.mxu0 0
        %1432 = vmatpush1.bf16.msra.mxu0 0
        %1433 = vmatprep.subr.bf16.mxu0 0
        %1434 = vmatpush1.bf16.msra.mxu0 %v745
        %1435 = vmatprep.subr.bf16.mxu0 0
        %1436 = vmatpush1.bf16.msra.mxu0 %v744
        %1437 = vmatprep.subr.bf16.mxu0 0
        %1438 = vmatpush2.bf16.msra.mxu0 0
        %1439 = vmatprep.subr.bf16.mxu0 0
        %1440 = vmatpush2.bf16.msra.mxu0 0
        %1441 = vmatprep.subr.bf16.mxu0 0
        %1442 = vmatpush2.bf16.msra.mxu0 0
        %1443 = vmatprep.subr.bf16.mxu0 0
        %1444 = vmatpush2.bf16.msra.mxu0 0
        %1445 = vmatprep.subr.bf16.mxu0 0
        %1446 = vmatpush2.bf16.msra.mxu0 0
        %1447 = vmatprep.subr.bf16.mxu0 0
        %1448 = vmatpush2.bf16.msra.mxu0 0
        %1449 = vmatprep.subr.bf16.mxu0 0
        %1450 = vmatpush2.bf16.msra.mxu0 0
        %1451 = vmatprep.subr.bf16.mxu0 0
        %1452 = vmatpush2.bf16.msra.mxu0 0
        %1453 = vmatprep.mubr.bf16.mxu0 0
        %1454 = vmatmul.mubr.bf16.gmra.mxu0 %v1413
        %v1455 = vpop.f32.mrf.mxu0
        %v1456 = vadd.f32 0.0, %v1455
        %v1457 = vpop.f32.mrf.mxu0
        %v1458 = vpop.f32.mrf.mxu0
        %v1459 = vadd.f32 0.0, %v1458
        %v1460 = vpop.f32.mrf.mxu0
        %1461 = vmatprep.mubr.bf16.mxu0 0
        %1462 = vmatmul.mubr.bf16.gmra.mxu0 %v1416
        %v1463 = vpop.f32.mrf.mxu0
        %v1464 = vadd.f32 0.0, %v1463
        %v1465 = vpop.f32.mrf.mxu0
        %v1466 = vpop.f32.mrf.mxu0
        %v1467 = vadd.f32 0.0, %v1466
        %v1468 = vpop.f32.mrf.mxu0
        %1469 = vmatprep.mubr.bf16.mxu0 0
        %1470 = vmatmul.mubr.bf16.gmra.mxu0 %v1419
        %v1471 = vpop.f32.mrf.mxu0
        %v1472 = vadd.f32 0.0, %v1471
        %v1473 = vpop.f32.mrf.mxu0
        %v1474 = vpop.f32.mrf.mxu0
        %v1475 = vadd.f32 0.0, %v1474
        %v1476 = vpop.f32.mrf.mxu0
        %1477 = vdwg.mxu0
        %s1478 = sld [smem:[#allocation2 + %s815]]
        // Predicated region
        $region101: #{augmentation_sceneflow_finetuning_forward.3} parent=47 // pred_check
          %p1479 = pneg %p567
        $region102: #{augmentation_sceneflow_finetuning_forward.3} parent=47 // pred_check_branch
          %1481 = sbr.rel (%p1479) target = $region104
        $region103: #{augmentation_sceneflow_finetuning_forward.3} parent=47 // pred_region
          %vm1482 = vcmp.gt.f32.partialorder %v1456, 0.0
          %vm1483 = vcmp.gt.f32.partialorder %v1459, 0.0
          %v1484 = vsel %vm1482, %v1456, 1.0
          %v1485 = vsel %vm1483, %v1459, 1.0
          %v1486 = vlog2.pop %v1484
          %v1487 = vmul.f32 %v1486, 0.6931472
          %v1488 = vlog2.pop %v1485
          %v1489 = vmul.f32 %v1488, 0.6931472
          %v1490 = vstv %s562
          %v1491 = vmul.f32 %v1490, %v1487
          %v1492 = vmul.f32 %v1490, %v1489
          %v1493 = vmul.f32 %v1491, 1.442695
          %v1494 = vpow.pop %v1493
          %v1495 = vmul.f32 %v1492, 1.442695
          %v1496 = vpow.pop %v1495
          %v1497 = vsel %vm1482, %v1494, 0.0
          %v1498 = vsel %vm1483, %v1496, 0.0
          %s1499 = smul.f32 %s564, %s1478
          %v1500 = vstv %s1499
          %v1501 = vmul.f32 %v1497, %v1500
          %v1502 = vmul.f32 %v1498, %v1500
          %v1503 = vmax.f32 %v1501, 0.0
          %v1504 = vmax.f32 %v1502, 0.0
          %v1505 = vmin.f32 %v1503, 1.0
          %v1506 = vmin.f32 %v1504, 1.0
          %1507 = vst.msk [vmem:[%s504] sm:$0xff] %vm584, %v1505
          %1508 = vst.msk [vmem:[%s504 + $0x8] sm:$0xff] %vm584, %v1506
        $region104: #{augmentation_sceneflow_finetuning_forward.3} parent=47 // pred_fallthru
          _
        %p1509 = pneg %p567
        // Predicated region
        $region105: #{augmentation_sceneflow_finetuning_forward.3} parent=47 // pred_check
          _
        $region106: #{augmentation_sceneflow_finetuning_forward.3} parent=47 // pred_check_branch
          %1511 = sbr.rel (%p567) target = $region108
        $region107: #{augmentation_sceneflow_finetuning_forward.3} parent=47 // pred_region
          %1512 = vst.msk [vmem:[%s504] sm:$0xff] %vm584, %v1456
          %1513 = vst.msk [vmem:[%s504 + $0x8] sm:$0xff] %vm584, %v1459
        $region108: #{augmentation_sceneflow_finetuning_forward.3} parent=47 // pred_fallthru
          _
        %s1514 = sld [smem:[#allocation2 + %s852]]
        // Predicated region
        $region109: #{augmentation_sceneflow_finetuning_forward.3} parent=47 // pred_check
          %p1515 = pneg %p567
        $region110: #{augmentation_sceneflow_finetuning_forward.3} parent=47 // pred_check_branch
          %1517 = sbr.rel (%p1515) target = $region112
        $region111: #{augmentation_sceneflow_finetuning_forward.3} parent=47 // pred_region
          %vm1518 = vcmp.gt.f32.partialorder %v1464, 0.0
          %vm1519 = vcmp.gt.f32.partialorder %v1467, 0.0
          %v1520 = vsel %vm1518, %v1464, 1.0
          %v1521 = vsel %vm1519, %v1467, 1.0
          %v1522 = vlog2.pop %v1520
          %v1523 = vmul.f32 %v1522, 0.6931472
          %v1524 = vlog2.pop %v1521
          %v1525 = vmul.f32 %v1524, 0.6931472
          %v1526 = vstv %s562
          %v1527 = vmul.f32 %v1526, %v1523
          %v1528 = vmul.f32 %v1526, %v1525
          %v1529 = vmul.f32 %v1527, 1.442695
          %v1530 = vpow.pop %v1529
          %v1531 = vmul.f32 %v1528, 1.442695
          %v1532 = vpow.pop %v1531
          %v1533 = vsel %vm1518, %v1530, 0.0
          %v1534 = vsel %vm1519, %v1532, 0.0
          %s1535 = smul.f32 %s564, %s1514
          %v1536 = vstv %s1535
          %v1537 = vmul.f32 %v1533, %v1536
          %v1538 = vmul.f32 %v1534, %v1536
          %v1539 = vmax.f32 %v1537, 0.0
          %v1540 = vmax.f32 %v1538, 0.0
          %v1541 = vmin.f32 %v1539, 1.0
          %v1542 = vmin.f32 %v1540, 1.0
          %s1543 = scalar_lea.vmem %s504, 16 [#allocation8]
          %1544 = vst.msk [vmem:[%s1543] sm:$0xff] %vm584, %v1541
          %1545 = vst.msk [vmem:[%s1543 + $0x8] sm:$0xff] %vm584, %v1542
        $region112: #{augmentation_sceneflow_finetuning_forward.3} parent=47 // pred_fallthru
          _
        %p1546 = pneg %p567
        // Predicated region
        $region113: #{augmentation_sceneflow_finetuning_forward.3} parent=47 // pred_check
          _
        $region114: #{augmentation_sceneflow_finetuning_forward.3} parent=47 // pred_check_branch
          %1548 = sbr.rel (%p567) target = $region116
        $region115: #{augmentation_sceneflow_finetuning_forward.3} parent=47 // pred_region
          %s1549 = scalar_lea.vmem %s504, 16 [#allocation8]
          %1550 = vst.msk [vmem:[%s1549] sm:$0xff] %vm584, %v1464
          %1551 = vst.msk [vmem:[%s1549 + $0x8] sm:$0xff] %vm584, %v1467
        $region116: #{augmentation_sceneflow_finetuning_forward.3} parent=47 // pred_fallthru
          _
        %s1552 = sld [smem:[#allocation2 + %s891]]
        // Predicated region
        $region117: #{augmentation_sceneflow_finetuning_forward.3} parent=47 // pred_check
          %p1553 = pneg %p567
        $region118: #{augmentation_sceneflow_finetuning_forward.3} parent=47 // pred_check_branch
          %1555 = sbr.rel (%p1553) target = $region120
        $region119: #{augmentation_sceneflow_finetuning_forward.3} parent=47 // pred_region
          %vm1556 = vcmp.gt.f32.partialorder %v1472, 0.0
          %vm1557 = vcmp.gt.f32.partialorder %v1475, 0.0
          %v1558 = vsel %vm1556, %v1472, 1.0
          %v1559 = vsel %vm1557, %v1475, 1.0
          %v1560 = vlog2.pop %v1558
          %v1561 = vmul.f32 %v1560, 0.6931472
          %v1562 = vlog2.pop %v1559
          %v1563 = vmul.f32 %v1562, 0.6931472
          %v1564 = vstv %s562
          %v1565 = vmul.f32 %v1564, %v1561
          %v1566 = vmul.f32 %v1564, %v1563
          %v1567 = vmul.f32 %v1565, 1.442695
          %v1568 = vpow.pop %v1567
          %v1569 = vmul.f32 %v1566, 1.442695
          %v1570 = vpow.pop %v1569
          %v1571 = vsel %vm1556, %v1568, 0.0
          %v1572 = vsel %vm1557, %v1570, 0.0
          %s1573 = smul.f32 %s564, %s1552
          %v1574 = vstv %s1573
          %v1575 = vmul.f32 %v1571, %v1574
          %v1576 = vmul.f32 %v1572, %v1574
          %v1577 = vmax.f32 %v1575, 0.0
          %v1578 = vmax.f32 %v1576, 0.0
          %v1579 = vmin.f32 %v1577, 1.0
          %v1580 = vmin.f32 %v1578, 1.0
          %s1581 = scalar_lea.vmem %s504, 32 [#allocation8]
          %1582 = vst.msk [vmem:[%s1581] sm:$0xff] %vm584, %v1579
          %1583 = vst.msk [vmem:[%s1581 + $0x8] sm:$0xff] %vm584, %v1580
        $region120: #{augmentation_sceneflow_finetuning_forward.3} parent=47 // pred_fallthru
          _
        %p1584 = pneg %p567
        // Predicated region
        $region121: #{augmentation_sceneflow_finetuning_forward.3} parent=47 // pred_check
          _
        $region122: #{augmentation_sceneflow_finetuning_forward.3} parent=47 // pred_check_branch
          %1586 = sbr.rel (%p567) target = $region124
        $region123: #{augmentation_sceneflow_finetuning_forward.3} parent=47 // pred_region
          %s1587 = scalar_lea.vmem %s504, 32 [#allocation8]
          %1588 = vst.msk [vmem:[%s1587] sm:$0xff] %vm584, %v1472
          %1589 = vst.msk [vmem:[%s1587 + $0x8] sm:$0xff] %vm584, %v1475
        $region124: #{augmentation_sceneflow_finetuning_forward.3} parent=47 // pred_fallthru
          _
        %v1590 = vld [vmem:[%s554] sm:$0xff]
        %v1591 = vld [vmem:[%s554 + $0x8] sm:$0xff]
        %v1592 = vld [vmem:[%s554 + $0x10] sm:$0xff]
        %v1593 = vpack.c.bf16 %v1591, %v1590
        %v1594 = vpack.c.bf16 %v1592, %v1592
        %v1596 = vsel %vm588, %v1594, 0
        %1598 = vmatprep.subr.bf16.mxu0 0
        %1599 = vmatpush1.bf16.msra.mxu0 0
        %1600 = vmatprep.subr.bf16.mxu0 0
        %1601 = vmatpush1.bf16.msra.mxu0 0
        %1602 = vmatprep.subr.bf16.mxu0 0
        %1603 = vmatpush1.bf16.msra.mxu0 0
        %1604 = vmatprep.subr.bf16.mxu0 0
        %1605 = vmatpush1.bf16.msra.mxu0 0
        %1606 = vmatprep.subr.bf16.mxu0 0
        %1607 = vmatpush1.bf16.msra.mxu0 0
        %1608 = vmatprep.subr.bf16.mxu0 0
        %1609 = vmatpush1.bf16.msra.mxu0 0
        %1610 = vmatprep.subr.bf16.mxu0 0
        %1611 = vmatpush1.bf16.msra.mxu0 %v1596
        %1612 = vmatprep.subr.bf16.mxu0 0
        %1613 = vmatpush1.bf16.msra.mxu0 %v1593
        %1614 = vmatprep.subr.bf16.mxu0 0
        %1615 = vmatpush2.bf16.msra.mxu0 0
        %1616 = vmatprep.subr.bf16.mxu0 0
        %1617 = vmatpush2.bf16.msra.mxu0 0
        %1618 = vmatprep.subr.bf16.mxu0 0
        %1619 = vmatpush2.bf16.msra.mxu0 0
        %1620 = vmatprep.subr.bf16.mxu0 0
        %1621 = vmatpush2.bf16.msra.mxu0 0
        %1622 = vmatprep.subr.bf16.mxu0 0
        %1623 = vmatpush2.bf16.msra.mxu0 0
        %1624 = vmatprep.subr.bf16.mxu0 0
        %1625 = vmatpush2.bf16.msra.mxu0 0
        %1626 = vmatprep.subr.bf16.mxu0 0
        %1627 = vmatpush2.bf16.msra.mxu0 0
        %1628 = vmatprep.subr.bf16.mxu0 0
        %1629 = vmatpush2.bf16.msra.mxu0 0
        %1630 = vmatprep.mubr.bf16.mxu0 0
        %1631 = vmatmul.mubr.bf16.gmra.mxu0 %v586
        %v1632 = vpop.f32.mrf.mxu0
        %v1633 = vadd.f32 0.0, %v1632
        %v1634 = vpop.f32.mrf.mxu0
        %v1635 = vpop.f32.mrf.mxu0
        %v1636 = vadd.f32 0.0, %v1635
        %v1637 = vpop.f32.mrf.mxu0
        %1638 = vdwg.mxu0
        %v1639 = vpack.c.bf16 %v1636, %v1633
        %s1640 = scalar_lea.vmem %s554, 24
        %v1641 = vld [vmem:[%s1640] sm:$0xff]
        %v1642 = vld [vmem:[%s1640 + $0x8] sm:$0xff]
        %v1643 = vld [vmem:[%s1640 + $0x10] sm:$0xff]
        %v1644 = vpack.c.bf16 %v1642, %v1641
        %v1645 = vpack.c.bf16 %v1643, %v1643
        %v1647 = vsel %vm588, %v1645, 0
        %1649 = vmatprep.subr.bf16.mxu0 0
        %1650 = vmatpush1.bf16.msra.mxu0 0
        %1651 = vmatprep.subr.bf16.mxu0 0
        %1652 = vmatpush1.bf16.msra.mxu0 0
        %1653 = vmatprep.subr.bf16.mxu0 0
        %1654 = vmatpush1.bf16.msra.mxu0 0
        %1655 = vmatprep.subr.bf16.mxu0 0
        %1656 = vmatpush1.bf16.msra.mxu0 0
        %1657 = vmatprep.subr.bf16.mxu0 0
        %1658 = vmatpush1.bf16.msra.mxu0 0
        %1659 = vmatprep.subr.bf16.mxu0 0
        %1660 = vmatpush1.bf16.msra.mxu0 0
        %1661 = vmatprep.subr.bf16.mxu0 0
        %1662 = vmatpush1.bf16.msra.mxu0 %v1647
        %1663 = vmatprep.subr.bf16.mxu0 0
        %1664 = vmatpush1.bf16.msra.mxu0 %v1644
        %1665 = vmatprep.subr.bf16.mxu0 0
        %1666 = vmatpush2.bf16.msra.mxu0 0
        %1667 = vmatprep.subr.bf16.mxu0 0
        %1668 = vmatpush2.bf16.msra.mxu0 0
        %1669 = vmatprep.subr.bf16.mxu0 0
        %1670 = vmatpush2.bf16.msra.mxu0 0
        %1671 = vmatprep.subr.bf16.mxu0 0
        %1672 = vmatpush2.bf16.msra.mxu0 0
        %1673 = vmatprep.subr.bf16.mxu0 0
        %1674 = vmatpush2.bf16.msra.mxu0 0
        %1675 = vmatprep.subr.bf16.mxu0 0
        %1676 = vmatpush2.bf16.msra.mxu0 0
        %1677 = vmatprep.subr.bf16.mxu0 0
        %1678 = vmatpush2.bf16.msra.mxu0 0
        %1679 = vmatprep.subr.bf16.mxu0 0
        %1680 = vmatpush2.bf16.msra.mxu0 0
        %1681 = vmatprep.mubr.bf16.mxu0 0
        %1682 = vmatmul.mubr.bf16.gmra.mxu0 %v586
        %v1683 = vpop.f32.mrf.mxu0
        %v1684 = vadd.f32 0.0, %v1683
        %v1685 = vpop.f32.mrf.mxu0
        %v1686 = vpop.f32.mrf.mxu0
        %v1687 = vadd.f32 0.0, %v1686
        %v1688 = vpop.f32.mrf.mxu0
        %1689 = vdwg.mxu0
        %v1690 = vpack.c.bf16 %v1687, %v1684
        %s1691 = scalar_lea.vmem %s554, 48
        %v1692 = vld [vmem:[%s1691] sm:$0xff]
        %v1693 = vld [vmem:[%s1691 + $0x8] sm:$0xff]
        %v1694 = vld [vmem:[%s1691 + $0x10] sm:$0xff]
        %v1695 = vpack.c.bf16 %v1693, %v1692
        %v1696 = vpack.c.bf16 %v1694, %v1694
        %v1698 = vsel %vm588, %v1696, 0
        %1700 = vmatprep.subr.bf16.mxu0 0
        %1701 = vmatpush1.bf16.msra.mxu0 0
        %1702 = vmatprep.subr.bf16.mxu0 0
        %1703 = vmatpush1.bf16.msra.mxu0 0
        %1704 = vmatprep.subr.bf16.mxu0 0
        %1705 = vmatpush1.bf16.msra.mxu0 0
        %1706 = vmatprep.subr.bf16.mxu0 0
        %1707 = vmatpush1.bf16.msra.mxu0 0
        %1708 = vmatprep.subr.bf16.mxu0 0
        %1709 = vmatpush1.bf16.msra.mxu0 0
        %1710 = vmatprep.subr.bf16.mxu0 0
        %1711 = vmatpush1.bf16.msra.mxu0 0
        %1712 = vmatprep.subr.bf16.mxu0 0
        %1713 = vmatpush1.bf16.msra.mxu0 %v1698
        %1714 = vmatprep.subr.bf16.mxu0 0
        %1715 = vmatpush1.bf16.msra.mxu0 %v1695
        %1716 = vmatprep.subr.bf16.mxu0 0
        %1717 = vmatpush2.bf16.msra.mxu0 0
        %1718 = vmatprep.subr.bf16.mxu0 0
        %1719 = vmatpush2.bf16.msra.mxu0 0
        %1720 = vmatprep.subr.bf16.mxu0 0
        %1721 = vmatpush2.bf16.msra.mxu0 0
        %1722 = vmatprep.subr.bf16.mxu0 0
        %1723 = vmatpush2.bf16.msra.mxu0 0
        %1724 = vmatprep.subr.bf16.mxu0 0
        %1725 = vmatpush2.bf16.msra.mxu0 0
        %1726 = vmatprep.subr.bf16.mxu0 0
        %1727 = vmatpush2.bf16.msra.mxu0 0
        %1728 = vmatprep.subr.bf16.mxu0 0
        %1729 = vmatpush2.bf16.msra.mxu0 0
        %1730 = vmatprep.subr.bf16.mxu0 0
        %1731 = vmatpush2.bf16.msra.mxu0 0
        %1732 = vmatprep.mubr.bf16.mxu0 0
        %1733 = vmatmul.mubr.bf16.gmra.mxu0 %v586
        %v1734 = vpop.f32.mrf.mxu0
        %v1735 = vadd.f32 0.0, %v1734
        %v1736 = vpop.f32.mrf.mxu0
        %v1737 = vpop.f32.mrf.mxu0
        %v1738 = vadd.f32 0.0, %v1737
        %v1739 = vpop.f32.mrf.mxu0
        %1740 = vdwg.mxu0
        %v1741 = vpack.c.bf16 %v1738, %v1735
        %v1743 = vsel %vm748, %v1639, 0
        %v1746 = vsel %vm748, %v1690, 0
        %v1749 = vsel %vm748, %v1741, 0
        %1751 = vmatprep.subr.bf16.mxu0 0
        %1752 = vmatpush1.bf16.msra.mxu0 0
        %1753 = vmatprep.subr.bf16.mxu0 0
        %1754 = vmatpush1.bf16.msra.mxu0 0
        %1755 = vmatprep.subr.bf16.mxu0 0
        %1756 = vmatpush1.bf16.msra.mxu0 0
        %1757 = vmatprep.subr.bf16.mxu0 0
        %1758 = vmatpush1.bf16.msra.mxu0 0
        %1759 = vmatprep.subr.bf16.mxu0 0
        %1760 = vmatpush1.bf16.msra.mxu0 0
        %1761 = vmatprep.subr.bf16.mxu0 0
        %1762 = vmatpush1.bf16.msra.mxu0 0
        %1763 = vmatprep.subr.bf16.mxu0 0
        %1764 = vmatpush1.bf16.msra.mxu0 %v745
        %1765 = vmatprep.subr.bf16.mxu0 0
        %1766 = vmatpush1.bf16.msra.mxu0 %v744
        %1767 = vmatprep.subr.bf16.mxu0 0
        %1768 = vmatpush2.bf16.msra.mxu0 0
        %1769 = vmatprep.subr.bf16.mxu0 0
        %1770 = vmatpush2.bf16.msra.mxu0 0
        %1771 = vmatprep.subr.bf16.mxu0 0
        %1772 = vmatpush2.bf16.msra.mxu0 0
        %1773 = vmatprep.subr.bf16.mxu0 0
        %1774 = vmatpush2.bf16.msra.mxu0 0
        %1775 = vmatprep.subr.bf16.mxu0 0
        %1776 = vmatpush2.bf16.msra.mxu0 0
        %1777 = vmatprep.subr.bf16.mxu0 0
        %1778 = vmatpush2.bf16.msra.mxu0 0
        %1779 = vmatprep.subr.bf16.mxu0 0
        %1780 = vmatpush2.bf16.msra.mxu0 0
        %1781 = vmatprep.subr.bf16.mxu0 0
        %1782 = vmatpush2.bf16.msra.mxu0 0
        %1783 = vmatprep.mubr.bf16.mxu0 0
        %1784 = vmatmul.mubr.bf16.gmra.mxu0 %v1743
        %v1785 = vpop.f32.mrf.mxu0
        %v1786 = vadd.f32 0.0, %v1785
        %v1787 = vpop.f32.mrf.mxu0
        %v1788 = vpop.f32.mrf.mxu0
        %v1789 = vadd.f32 0.0, %v1788
        %v1790 = vpop.f32.mrf.mxu0
        %1791 = vmatprep.mubr.bf16.mxu0 0
        %1792 = vmatmul.mubr.bf16.gmra.mxu0 %v1746
        %v1793 = vpop.f32.mrf.mxu0
        %v1794 = vadd.f32 0.0, %v1793
        %v1795 = vpop.f32.mrf.mxu0
        %v1796 = vpop.f32.mrf.mxu0
        %v1797 = vadd.f32 0.0, %v1796
        %v1798 = vpop.f32.mrf.mxu0
        %1799 = vmatprep.mubr.bf16.mxu0 0
        %1800 = vmatmul.mubr.bf16.gmra.mxu0 %v1749
        %v1801 = vpop.f32.mrf.mxu0
        %v1802 = vadd.f32 0.0, %v1801
        %v1803 = vpop.f32.mrf.mxu0
        %v1804 = vpop.f32.mrf.mxu0
        %v1805 = vadd.f32 0.0, %v1804
        %v1806 = vpop.f32.mrf.mxu0
        %1807 = vdwg.mxu0
        %s1808 = sld [smem:[#allocation2 + %s815]]
        // Predicated region
        $region125: #{augmentation_sceneflow_finetuning_forward.3} parent=47 // pred_check
          %p1809 = pneg %p567
        $region126: #{augmentation_sceneflow_finetuning_forward.3} parent=47 // pred_check_branch
          %1811 = sbr.rel (%p1809) target = $region128
        $region127: #{augmentation_sceneflow_finetuning_forward.3} parent=47 // pred_region
          %vm1812 = vcmp.gt.f32.partialorder %v1786, 0.0
          %vm1813 = vcmp.gt.f32.partialorder %v1789, 0.0
          %v1814 = vsel %vm1812, %v1786, 1.0
          %v1815 = vsel %vm1813, %v1789, 1.0
          %v1816 = vlog2.pop %v1814
          %v1817 = vmul.f32 %v1816, 0.6931472
          %v1818 = vlog2.pop %v1815
          %v1819 = vmul.f32 %v1818, 0.6931472
          %v1820 = vstv %s562
          %v1821 = vmul.f32 %v1820, %v1817
          %v1822 = vmul.f32 %v1820, %v1819
          %v1823 = vmul.f32 %v1821, 1.442695
          %v1824 = vpow.pop %v1823
          %v1825 = vmul.f32 %v1822, 1.442695
          %v1826 = vpow.pop %v1825
          %v1827 = vsel %vm1812, %v1824, 0.0
          %v1828 = vsel %vm1813, %v1826, 0.0
          %s1829 = smul.f32 %s564, %s1808
          %v1830 = vstv %s1829
          %v1831 = vmul.f32 %v1827, %v1830
          %v1832 = vmul.f32 %v1828, %v1830
          %v1833 = vmax.f32 %v1831, 0.0
          %v1834 = vmax.f32 %v1832, 0.0
          %v1835 = vmin.f32 %v1833, 1.0
          %v1836 = vmin.f32 %v1834, 1.0
          %1837 = vst.msk [vmem:[%s511] sm:$0xff] %vm584, %v1835
          %1838 = vst.msk [vmem:[%s511 + $0x8] sm:$0xff] %vm584, %v1836
        $region128: #{augmentation_sceneflow_finetuning_forward.3} parent=47 // pred_fallthru
          _
        %p1839 = pneg %p567
        // Predicated region
        $region129: #{augmentation_sceneflow_finetuning_forward.3} parent=47 // pred_check
          _
        $region130: #{augmentation_sceneflow_finetuning_forward.3} parent=47 // pred_check_branch
          %1841 = sbr.rel (%p567) target = $region132
        $region131: #{augmentation_sceneflow_finetuning_forward.3} parent=47 // pred_region
          %1842 = vst.msk [vmem:[%s511] sm:$0xff] %vm584, %v1786
          %1843 = vst.msk [vmem:[%s511 + $0x8] sm:$0xff] %vm584, %v1789
        $region132: #{augmentation_sceneflow_finetuning_forward.3} parent=47 // pred_fallthru
          _
        %s1844 = sld [smem:[#allocation2 + %s852]]
        // Predicated region
        $region133: #{augmentation_sceneflow_finetuning_forward.3} parent=47 // pred_check
          %p1845 = pneg %p567
        $region134: #{augmentation_sceneflow_finetuning_forward.3} parent=47 // pred_check_branch
          %1847 = sbr.rel (%p1845) target = $region136
        $region135: #{augmentation_sceneflow_finetuning_forward.3} parent=47 // pred_region
          %vm1848 = vcmp.gt.f32.partialorder %v1794, 0.0
          %vm1849 = vcmp.gt.f32.partialorder %v1797, 0.0
          %v1850 = vsel %vm1848, %v1794, 1.0
          %v1851 = vsel %vm1849, %v1797, 1.0
          %v1852 = vlog2.pop %v1850
          %v1853 = vmul.f32 %v1852, 0.6931472
          %v1854 = vlog2.pop %v1851
          %v1855 = vmul.f32 %v1854, 0.6931472
          %v1856 = vstv %s562
          %v1857 = vmul.f32 %v1856, %v1853
          %v1858 = vmul.f32 %v1856, %v1855
          %v1859 = vmul.f32 %v1857, 1.442695
          %v1860 = vpow.pop %v1859
          %v1861 = vmul.f32 %v1858, 1.442695
          %v1862 = vpow.pop %v1861
          %v1863 = vsel %vm1848, %v1860, 0.0
          %v1864 = vsel %vm1849, %v1862, 0.0
          %s1865 = smul.f32 %s564, %s1844
          %v1866 = vstv %s1865
          %v1867 = vmul.f32 %v1863, %v1866
          %v1868 = vmul.f32 %v1864, %v1866
          %v1869 = vmax.f32 %v1867, 0.0
          %v1870 = vmax.f32 %v1868, 0.0
          %v1871 = vmin.f32 %v1869, 1.0
          %v1872 = vmin.f32 %v1870, 1.0
          %s1873 = scalar_lea.vmem %s511, 16 [#allocation9]
          %1874 = vst.msk [vmem:[%s1873] sm:$0xff] %vm584, %v1871
          %1875 = vst.msk [vmem:[%s1873 + $0x8] sm:$0xff] %vm584, %v1872
        $region136: #{augmentation_sceneflow_finetuning_forward.3} parent=47 // pred_fallthru
          _
        %p1876 = pneg %p567
        // Predicated region
        $region137: #{augmentation_sceneflow_finetuning_forward.3} parent=47 // pred_check
          _
        $region138: #{augmentation_sceneflow_finetuning_forward.3} parent=47 // pred_check_branch
          %1878 = sbr.rel (%p567) target = $region140
        $region139: #{augmentation_sceneflow_finetuning_forward.3} parent=47 // pred_region
          %s1879 = scalar_lea.vmem %s511, 16 [#allocation9]
          %1880 = vst.msk [vmem:[%s1879] sm:$0xff] %vm584, %v1794
          %1881 = vst.msk [vmem:[%s1879 + $0x8] sm:$0xff] %vm584, %v1797
        $region140: #{augmentation_sceneflow_finetuning_forward.3} parent=47 // pred_fallthru
          _
        %s1882 = sld [smem:[#allocation2 + %s891]]
        // Predicated region
        $region141: #{augmentation_sceneflow_finetuning_forward.3} parent=47 // pred_check
          %p1883 = pneg %p567
        $region142: #{augmentation_sceneflow_finetuning_forward.3} parent=47 // pred_check_branch
          %1885 = sbr.rel (%p1883) target = $region144
        $region143: #{augmentation_sceneflow_finetuning_forward.3} parent=47 // pred_region
          %vm1886 = vcmp.gt.f32.partialorder %v1802, 0.0
          %vm1887 = vcmp.gt.f32.partialorder %v1805, 0.0
          %v1888 = vsel %vm1886, %v1802, 1.0
          %v1889 = vsel %vm1887, %v1805, 1.0
          %v1890 = vlog2.pop %v1888
          %v1891 = vmul.f32 %v1890, 0.6931472
          %v1892 = vlog2.pop %v1889
          %v1893 = vmul.f32 %v1892, 0.6931472
          %v1894 = vstv %s562
          %v1895 = vmul.f32 %v1894, %v1891
          %v1896 = vmul.f32 %v1894, %v1893
          %v1897 = vmul.f32 %v1895, 1.442695
          %v1898 = vpow.pop %v1897
          %v1899 = vmul.f32 %v1896, 1.442695
          %v1900 = vpow.pop %v1899
          %v1901 = vsel %vm1886, %v1898, 0.0
          %v1902 = vsel %vm1887, %v1900, 0.0
          %s1903 = smul.f32 %s564, %s1882
          %v1904 = vstv %s1903
          %v1905 = vmul.f32 %v1901, %v1904
          %v1906 = vmul.f32 %v1902, %v1904
          %v1907 = vmax.f32 %v1905, 0.0
          %v1908 = vmax.f32 %v1906, 0.0
          %v1909 = vmin.f32 %v1907, 1.0
          %v1910 = vmin.f32 %v1908, 1.0
          %s1911 = scalar_lea.vmem %s511, 32 [#allocation9]
          %1912 = vst.msk [vmem:[%s1911] sm:$0xff] %vm584, %v1909
          %1913 = vst.msk [vmem:[%s1911 + $0x8] sm:$0xff] %vm584, %v1910
        $region144: #{augmentation_sceneflow_finetuning_forward.3} parent=47 // pred_fallthru
          _
        %p1914 = pneg %p567
        // Predicated region
        $region145: #{augmentation_sceneflow_finetuning_forward.3} parent=47 // pred_check
          _
        $region146: #{augmentation_sceneflow_finetuning_forward.3} parent=47 // pred_check_branch
          %1916 = sbr.rel (%p567) target = $region148
        $region147: #{augmentation_sceneflow_finetuning_forward.3} parent=47 // pred_region
          %s1917 = scalar_lea.vmem %s511, 32 [#allocation9]
          %1918 = vst.msk [vmem:[%s1917] sm:$0xff] %vm584, %v1802
          %1919 = vst.msk [vmem:[%s1917 + $0x8] sm:$0xff] %vm584, %v1805
        $region148: #{augmentation_sceneflow_finetuning_forward.3} parent=47 // pred_fallthru
          _
        %s1920 = sand.u32 %s229, 1
        %s1921 = scalar_lea.sflag [#allocation3], %s1920
        %s1922 = sand.u32 %s229, 1
        %s1923 = smul.addr %s1922, 48
        %s1924 = scalar_lea.vmem [#allocation5], %s1923
        %s1925 = sand.u32 %s32, 1
        %s1926 = scalar_lea.sflag [#allocation7], %s1925
        %s1927 = sand.u32 %s257, 1
        %s1928 = smul.addr %s1927, 48
        %s1929 = scalar_lea.vmem [#allocation6], %s1928
        %s1930 = sand.u32 %s32, 1
        %s1931 = scalar_lea.sflag [#allocation7], %s1930
        %s1932 = sand.u32 %s285, 1
        %s1933 = smul.addr %s1932, 48
        %s1934 = scalar_lea.vmem [#allocation8], %s1933
        %s1935 = sand.u32 %s313, 1
        %s1936 = scalar_lea.sflag [#allocation10], %s1935
        %s1937 = sand.u32 %s313, 1
        %s1938 = smul.addr %s1937, 48
        %s1939 = scalar_lea.vmem [#allocation9], %s1938
        // Predicated region
        $region149: #{augmentation_sceneflow_finetuning_forward.3} parent=47 // pred_check
          %p1940 = pneg %p239
        $region150: #{augmentation_sceneflow_finetuning_forward.3} parent=47 // pred_check_branch
          %1942 = sbr.rel (%p1940) target = $region152
        $region151: #{augmentation_sceneflow_finetuning_forward.3} parent=47 // pred_region
          %s1943 = smul.u32 3, %s37
          %s1945 = ssub.s32 768, 768
          %1946 = vsyncadd %s1921, %s1945
          %s1947 = smul.addr %s1943, 2
          %s1948 = smul.addr %s36, 6
          %s1949 = sadd.s32 %s1947, %s1948
          %s1950 = smul.addr %s1949, 128
          %s1951 = scalar_lea.hbm %s7, %s1950
          %s1952 = sshll.u32 %s1924, 4
          %s1953 = int_to_ptr.vmem [resolvable:$true] %s1952
          %1958 = dma.vmem_to_hbm [thread:$0]  %s1953, 768, %s1951, %s1921, 128, 128, 8
        $region152: #{augmentation_sceneflow_finetuning_forward.3} parent=47 // pred_fallthru
          _
        // Predicated region
        $region153: #{augmentation_sceneflow_finetuning_forward.3} parent=47 // pred_check
          %p1959 = pneg %p267
        $region154: #{augmentation_sceneflow_finetuning_forward.3} parent=47 // pred_check_branch
          %1961 = sbr.rel (%p1959) target = $region156
        $region155: #{augmentation_sceneflow_finetuning_forward.3} parent=47 // pred_region
          %s1962 = smul.u32 3, %s37
          %s1964 = ssub.s32 768, 768
          %1965 = vsyncadd %s1926, %s1964
          %s1966 = smul.addr %s1962, 2
          %s1967 = smul.addr %s36, 6
          %s1968 = sadd.s32 %s1966, %s1967
          %s1969 = smul.addr %s1968, 128
          %s1970 = scalar_lea.hbm %s8, %s1969
          %s1971 = sshll.u32 %s1929, 4
          %s1972 = int_to_ptr.vmem [resolvable:$true] %s1971
          %1977 = dma.vmem_to_hbm [thread:$0]  %s1972, 768, %s1970, %s1926, 128, 128, 8
        $region156: #{augmentation_sceneflow_finetuning_forward.3} parent=47 // pred_fallthru
          _
        // Predicated region
        $region157: #{augmentation_sceneflow_finetuning_forward.3} parent=47 // pred_check
          %p1978 = pneg %p295
        $region158: #{augmentation_sceneflow_finetuning_forward.3} parent=47 // pred_check_branch
          %1980 = sbr.rel (%p1978) target = $region160
        $region159: #{augmentation_sceneflow_finetuning_forward.3} parent=47 // pred_region
          %s1981 = smul.u32 3, %s37
          %s1983 = ssub.s32 768, 768
          %1984 = vsyncadd %s1931, %s1983
          %s1985 = smul.addr %s1981, 2
          %s1986 = smul.addr %s36, 6
          %s1987 = sadd.s32 %s1985, %s1986
          %s1988 = smul.addr %s1987, 128
          %s1989 = scalar_lea.hbm %s9, %s1988
          %s1990 = sshll.u32 %s1934, 4
          %s1991 = int_to_ptr.vmem [resolvable:$true] %s1990
          %1996 = dma.vmem_to_hbm [thread:$0]  %s1991, 768, %s1989, %s1931, 128, 128, 8
        $region160: #{augmentation_sceneflow_finetuning_forward.3} parent=47 // pred_fallthru
          _
        // Predicated region
        $region161: #{augmentation_sceneflow_finetuning_forward.3} parent=47 // pred_check
          %p1997 = pneg %p323
        $region162: #{augmentation_sceneflow_finetuning_forward.3} parent=47 // pred_check_branch
          %1999 = sbr.rel (%p1997) target = $region164
        $region163: #{augmentation_sceneflow_finetuning_forward.3} parent=47 // pred_region
          %s2000 = smul.u32 3, %s37
          %s2002 = ssub.s32 768, 768
          %2003 = vsyncadd %s1936, %s2002
          %s2004 = smul.addr %s2000, 2
          %s2005 = smul.addr %s36, 6
          %s2006 = sadd.s32 %s2004, %s2005
          %s2007 = smul.addr %s2006, 128
          %s2008 = scalar_lea.hbm %s10, %s2007
          %s2009 = sshll.u32 %s1939, 4
          %s2010 = int_to_ptr.vmem [resolvable:$true] %s2009
          %2015 = dma.vmem_to_hbm [thread:$0]  %s2010, 768, %s2008, %s1936, 128, 128, 8
        $region164: #{augmentation_sceneflow_finetuning_forward.3} parent=47 // pred_fallthru
          _
      $region48: #{augmentation_sceneflow_finetuning_forward.3} parent=5 // pred_fallthru
        _
      %p2016 = scmp.le.s32.totalorder 2, %s27
      // Predicated region
      $region165: #{augmentation_sceneflow_finetuning_forward.3} parent=5 // pred_check
        %p2017 = pneg %p2016
      $region166: #{augmentation_sceneflow_finetuning_forward.3} parent=5 // pred_check_branch
        %2019 = sbr.rel (%p2017) target = $region168
      $region167: #{augmentation_sceneflow_finetuning_forward.3} parent=5 // pred_region
        %s2020 = ssub.s32 %s27, 2
        // Predicated region
        $region169: #{augmentation_sceneflow_finetuning_forward.3} parent=167 // pred_check
          %p2021 = pneg %p245
        $region170: #{augmentation_sceneflow_finetuning_forward.3} parent=167 // pred_check_branch
          %2023 = sbr.rel (%p2021) target = $region172
        $region171: #{augmentation_sceneflow_finetuning_forward.3} parent=167 // pred_region
          %s2024 = sand.u32 %s230, 1
          %s2025 = scalar_lea.sflag [#allocation3], %s2024
          %s2026 = sand.u32 %s230, 1
          %s2027 = smul.addr %s2026, 48
          %s2028 = scalar_lea.vmem [#allocation5], %s2027
          %2029 = dma.done %s2025, 768
        $region172: #{augmentation_sceneflow_finetuning_forward.3} parent=167 // pred_fallthru
          _
        // Predicated region
        $region173: #{augmentation_sceneflow_finetuning_forward.3} parent=167 // pred_check
          %p2030 = pneg %p273
        $region174: #{augmentation_sceneflow_finetuning_forward.3} parent=167 // pred_check_branch
          %2032 = sbr.rel (%p2030) target = $region176
        $region175: #{augmentation_sceneflow_finetuning_forward.3} parent=167 // pred_region
          %s2033 = sand.u32 %s33, 1
          %s2034 = scalar_lea.sflag [#allocation7], %s2033
          %s2035 = sand.u32 %s258, 1
          %s2036 = smul.addr %s2035, 48
          %s2037 = scalar_lea.vmem [#allocation6], %s2036
          %2038 = dma.done %s2034, 768
        $region176: #{augmentation_sceneflow_finetuning_forward.3} parent=167 // pred_fallthru
          _
        // Predicated region
        $region177: #{augmentation_sceneflow_finetuning_forward.3} parent=167 // pred_check
          %p2039 = pneg %p301
        $region178: #{augmentation_sceneflow_finetuning_forward.3} parent=167 // pred_check_branch
          %2041 = sbr.rel (%p2039) target = $region180
        $region179: #{augmentation_sceneflow_finetuning_forward.3} parent=167 // pred_region
          %s2042 = sand.u32 %s33, 1
          %s2043 = scalar_lea.sflag [#allocation7], %s2042
          %s2044 = sand.u32 %s286, 1
          %s2045 = smul.addr %s2044, 48
          %s2046 = scalar_lea.vmem [#allocation8], %s2045
          %2047 = dma.done %s2043, 768
        $region180: #{augmentation_sceneflow_finetuning_forward.3} parent=167 // pred_fallthru
          _
        // Predicated region
        $region181: #{augmentation_sceneflow_finetuning_forward.3} parent=167 // pred_check
          %p2048 = pneg %p329
        $region182: #{augmentation_sceneflow_finetuning_forward.3} parent=167 // pred_check_branch
          %2050 = sbr.rel (%p2048) target = $region184
        $region183: #{augmentation_sceneflow_finetuning_forward.3} parent=167 // pred_region
          %s2051 = sand.u32 %s314, 1
          %s2052 = scalar_lea.sflag [#allocation10], %s2051
          %s2053 = sand.u32 %s314, 1
          %s2054 = smul.addr %s2053, 48
          %s2055 = scalar_lea.vmem [#allocation9], %s2054
          %2056 = dma.done %s2052, 768
        $region184: #{augmentation_sceneflow_finetuning_forward.3} parent=167 // pred_fallthru
          _
      $region168: #{augmentation_sceneflow_finetuning_forward.3} parent=5 // pred_fallthru
        _
    $region6: #{augmentation_sceneflow_finetuning_forward.3} parent=1 // loop_footer
      %s31 = sadd.s32 1, %s27
    $region7: #{augmentation_sceneflow_finetuning_forward.3} parent=1 // loop_footer_branch
      %26 = sbr.rel target = $region3
    $region8: #{augmentation_sceneflow_finetuning_forward.3} parent=1 // loop_exit
      _
    %2057 = vsyncpa [#allocation3], 1
    %s2058 = scalar_lea.sflag [#allocation3], 1
    %2059 = vsyncpa %s2058, 1
    %2060 = vsyncpa [#allocation7], 1
    %s2061 = scalar_lea.sflag [#allocation7], 1
    %2062 = vsyncpa %s2061, 1
    %2063 = vsyncpa [#allocation10], 1
    %s2064 = scalar_lea.sflag [#allocation10], 1
    %2065 = vsyncpa %s2064, 1
    %2066 = vsyncpa [#allocation4], 1
    %s2067 = scalar_lea.sflag [#allocation4], 1
    %2068 = vsyncpa %s2067, 1

</llo_original>
